<compile_context>
chip_gen: v7x
topology: tpu7x:2x2x1
jax: 0.10.0
libtpu: 0.0.40
codegen_flags: <defaults>
</compile_context>

<pallas_src>
from functools import partial

import numpy as np
import jax
import jax.numpy as jnp
from jax.experimental import pallas as pl
from jax.experimental.pallas import tpu as pltpu

_MATMUL_PRECISION = jax.lax.Precision.HIGHEST   # see header note


def _round_up(n, m):
    return ((n + m - 1) // m) * m


def _plan_group(q_in, m):
    """Sizing of the hierarchical Kronecker build for a group of m window pixels.

    The last `kb` (least-significant) pixels form a "base" block of R0 = q_in**kb
    rows (smallest power >= 8), padded to R0p rows (multiple of 8 sublanes); the
    remaining pixels are prepended one at a time via sublane-aligned concatenation.
    Padded row index of logical feature f is (f // R0) * R0p + (f % R0).
    Returns (kb, R0, R0p, Rp) with Rp = q_in**(m - kb) * R0p (total padded rows).
    """
    kb, R0 = 0, 1
    while R0 < 8 and kb < m:
        kb += 1
        R0 *= q_in
    R0p = _round_up(R0, 8)
    Rp = (q_in ** (m - kb)) * R0p
    return kb, R0, R0p, Rp


# ---------------------------------------------------------------------------
# Pallas kernels
# ---------------------------------------------------------------------------
def _eps_kernel(win_ref, core_ref, out_ref, *, K2, q_in, q_out, gL, FL, FHp):
    """One lane-dense tile (TN windows) of the EPS contraction.

    win_ref : (K2, q_in, TN)   K2 pixel vectors per window; window index on lanes
    core_ref: (FL, q_out, FHp) prepared core slices (resident)
    out_ref : (q_out, TN)      lane-dense output tile
    """
    TN = win_ref.shape[-1]
    m = K2 - gL                                   # number of "high" pixels

    planes = {}

    def plane(t):
        if t not in planes:
            planes[t] = win_ref[t]                # (q_in, TN), loaded once
        return planes[t]

    def row(t, d):
        return plane(t)[d:d + 1, :]               # (1, TN)

    def kron_group(pixels):
        """(Rp, TN) Kronecker product of the listed pixels' vectors (exact f32, VPU)."""
        mm = len(pixels)
        kb, R0, R0p, _ = _plan_group(q_in, mm)
        # base block: kb least-significant pixels -> R0p sublane-padded rows
        rows = []
        for s in range(R0p):
            ss = min(s, R0 - 1)                   # padded rows repeat a valid combo
            r = None
            for j in range(kb):
                t = pixels[mm - kb + j]
                d = (ss // (q_in ** (kb - 1 - j))) % q_in
                rj = row(t, d)
                r = rj if r is None else r * rj
            rows.append(r)
        cur = jnp.concatenate(rows, axis=0)       # (R0p, TN)
        # prepend the more-significant pixels; all concats stay 8-sublane aligned
        for j in range(mm - kb - 1, -1, -1):
            t = pixels[j]
            cur = jnp.concatenate([row(t, a) * cur for a in range(q_in)], axis=0)
        return cur, R0, R0p

    a_high, _, _ = kron_group(list(range(m)))     # (FHp, TN)
    assert a_high.shape == (FHp, TN)

    if gL >= 2:
        a_low, r0l, r0pl = kron_group(list(range(m, K2)))

    acc = None
    for fL in range(FL):
        # wide-contraction matmul: (q_out, FHp) @ (FHp, TN)
        part = jnp.dot(core_ref[fL], a_high,
                       preferred_element_type=jnp.float32,
                       precision=_MATMUL_PRECISION)            # (q_out, TN)
        if gL == 1:
            part = part * row(K2 - 1, fL)
        elif gL >= 2:
            idx = (fL // r0l) * r0pl + (fL % r0l)
            part = part * a_low[idx:idx + 1, :]
        acc = part if acc is None else acc + part
    out_ref[...] = acc


def _linear_kernel(x_ref, w_ref, b_ref, o_ref):
    o_ref[...] = jnp.dot(x_ref[...], w_ref[...],
                         preferred_element_type=jnp.float32,
                         precision=_MATMUL_PRECISION) + b_ref[...]


# ---------------------------------------------------------------------------
# One-time parameter preparation (hoisted out of the per-call path)
# ---------------------------------------------------------------------------
def prepare_eps_params(cores, kernel_sizes, fh_max=256):
    """Per EPS layer: rearranged core (FL, q_out, FHp) + static meta tuple."""
    cores_p, metas = [], []
    for core, K in zip(cores, kernel_sizes):
        core_np = np.asarray(core, dtype=np.float32)
        K2 = K * K
        q_in = core_np.shape[0]
        q_out = core_np.shape[-1]
        # split legs: m "high" legs (wide MXU contraction, FH <= fh_max), gL "low" legs
        max_h = 1
        while max_h + 1 <= K2 and q_in ** (max_h + 1) <= fh_max:
            max_h += 1
        gL = K2 - max_h
        m = K2 - gL
        FL = q_in ** gL
        FH = q_in ** m
        kb, R0, R0p, FHp = _plan_group(q_in, m)
        G_hi = FH // R0
        # core_flat[f, o] with f = fH*FL + fL and fH = hi*R0 + lo (row-major legs)
        core_5 = core_np.reshape(G_hi, R0, FL, q_out)
        core_p = np.zeros((FL, q_out, G_hi, R0p), np.float32)
        core_p[:, :, :, :R0] = np.transpose(core_5, (2, 3, 0, 1))
        cores_p.append(jnp.asarray(core_p.reshape(FL, q_out, FHp)))
        metas.append((K, q_in, q_out, gL, FL, FHp))
    return tuple(cores_p), tuple(metas)


# ---------------------------------------------------------------------------
# Layers
# ---------------------------------------------------------------------------
def eps_layer(x_cf, core_p, meta, *, max_tile_n=512):
    """Apply one EPS layer.  x_cf: (q_in, B, H, W) channel-first activations."""
    K, q_in, q_out, gL, FL, FHp = meta
    K2 = K * K
    Q, B, H, W = x_cf.shape
    assert Q == q_in
    Hp, Wp = H - K + 1, W - K + 1

    # TODO(synk): fuse window extraction into the kernel (overlapping row-band
    # BlockSpec) to avoid this K^2-replicated wins array in HBM; kept XLA-side here.
    wins = jnp.stack([x_cf[:, :, di:di + Hp, dj:dj + Wp]
                      for di in range(K) for dj in range(K)], axis=0)  # (K2, q_in, B, Hp, Wp)
    N = B * Hp * Wp
    wins = wins.reshape(K2, q_in, N)
    Npad = _round_up(N, 128)
    if Npad != N:
        wins = jnp.pad(wins, ((0, 0), (0, 0), (0, Npad - N)))

    # large lane-dense tile, but capped so medium/large N gives >= 4 parallel steps
    TN = min(max_tile_n, _round_up(pl.cdiv(Npad, 4), 128))
    grid = (pl.cdiv(Npad, TN),)

    # VMEM budget from actual block sizes (+ headroom for the in-kernel Kronecker)
    win_blk = K2 * 8 * TN * 4
    core_blk = FL * max(q_out, 8) * FHp * 4
    out_blk = max(q_out, 8) * TN * 4
    scratch = 6 * FHp * TN * 4 + (FL * TN * 4 if gL >= 2 else 0)
    vmem_limit = int(min(64 << 20,
                         max(16 << 20,
                             2 * (win_blk + core_blk + out_blk) + scratch + (4 << 20))))

    flops_per_win = 2 * FL * q_out * FHp + 2 * FHp + 2 * FL * q_out
    cost = pl.CostEstimate(
        flops=int(Npad) * flops_per_win,
        transcendentals=0,
        bytes_accessed=int(wins.size * 4 + core_p.size * 4 + q_out * Npad * 4))

    out = pl.pallas_call(
        partial(_eps_kernel, K2=K2, q_in=q_in, q_out=q_out, gL=gL, FL=FL, FHp=FHp),
        out_shape=jax.ShapeDtypeStruct((q_out, Npad), jnp.float32),
        grid=grid,
        in_specs=[
            pl.BlockSpec((K2, q_in, TN), lambda i: (0, 0, i)),    # streamed window tiles
            pl.BlockSpec((FL, q_out, FHp), lambda i: (0, 0, 0)),  # resident prepared core
        ],
        out_specs=pl.BlockSpec((q_out, TN), lambda i: (0, i)),
        compiler_params=pltpu.CompilerParams(
            dimension_semantics=("parallel",),
            vmem_limit_bytes=vmem_limit),
        cost_estimate=cost,
    )(wins, core_p)

    # stay channel-first / lane-dense for the next layer (no relayout between layers)
    return out[:, :N].reshape(q_out, B, Hp, Wp)


def linear_layer(x, w, b):
    Bn, Fin = x.shape
    nout = w.shape[1]
    NOUTP = _round_up(nout, 128)            # lane-dense (unmasked) stores
    Bpad = _round_up(Bn, 8)
    TB = min(128, Bpad)

    xp = jnp.pad(x, ((0, Bpad - Bn), (0, 0)))
    wp = jnp.pad(w, ((0, 0), (0, NOUTP - nout)))
    bp = jnp.pad(b, (0, NOUTP - nout)).reshape(1, NOUTP)

    x_blk = TB * _round_up(Fin, 128) * 4
    w_blk = _round_up(Fin, 8) * NOUTP * 4
    o_blk = TB * NOUTP * 4
    vmem_limit = int(min(64 << 20, max(16 << 20, 2 * (x_blk + w_blk + o_blk) + (4 << 20))))

    cost = pl.CostEstimate(
        flops=2 * Bpad * Fin * NOUTP,
        transcendentals=0,
        bytes_accessed=(Bpad * Fin + Fin * NOUTP + NOUTP + Bpad * NOUTP) * 4)

    out = pl.pallas_call(
        _linear_kernel,
        out_shape=jax.ShapeDtypeStruct((Bpad, NOUTP), jnp.float32),
        grid=(pl.cdiv(Bpad, TB),),
        in_specs=[
            pl.BlockSpec((TB, Fin), lambda i: (i, 0)),
            pl.BlockSpec((Fin, NOUTP), lambda i: (0, 0)),
            pl.BlockSpec((1, NOUTP), lambda i: (0, 0)),
        ],
        out_specs=pl.BlockSpec((TB, NOUTP), lambda i: (i, 0)),
        compiler_params=pltpu.CompilerParams(
            dimension_semantics=("parallel",),
            vmem_limit_bytes=vmem_limit),
        cost_estimate=cost,
    )(xp, wp, bp)
    return out[:Bn, :nout]


@partial(jax.jit, static_argnames=("metas",))
def epses_plus_linear_forward(x, cores_p, *, metas, lin_w, lin_b):
    # TODO(synk): training-mode Bernoulli dropout of eps-core components (p < 1 and
    # self.training) is stochastic torch RNG; only the eval / p == 1.0 path of
    # EPSesPlusLinear.forward is implemented here.
    x_cf = jnp.transpose(x, (3, 0, 1, 2))           # (Q0, B, H, W): channel-first, lane-dense N
    for core_p, meta in zip(cores_p, metas):
        x_cf = eps_layer(x_cf, core_p, meta)
    Q, B, Hh, Ww = x_cf.shape
    flat = jnp.transpose(x_cf, (1, 2, 3, 0)).reshape(B, Hh * Ww * Q)  # 'b h w q -> b (h w q)'
    return linear_layer(flat, lin_w, lin_b)


# ---------------------------------------------------------------------------
# Pure-JAX reference (full f32, for correctness check)
# ---------------------------------------------------------------------------
def _eps_reference(x, core, K):
    B, H, W, Q = x.shape
    K2 = K * K
    Hp, Wp = H - K + 1, W - K + 1
    wins = jnp.stack([x[:, di:di + Hp, dj:dj + Wp, :]
                      for di in range(K) for dj in range(K)], axis=3)
    feat = jnp.ones((B, Hp, Wp, 1), x.dtype)
    for t in range(K2):
        feat = (feat[..., :, None] * wins[..., t, None, :]).reshape(B, Hp, Wp, -1)
    core_mat = core.reshape(-1, core.shape[-1])
    return jnp.einsum("bhwf,fo->bhwo", feat, core_mat,
                      precision=jax.lax.Precision.HIGHEST)


def reference_forward(x, cores, kernel_sizes, lin_w, lin_b):
    for core, K in zip(cores, kernel_sizes):
        x = _eps_reference(x, core, K)
    flat = x.reshape(x.shape[0], -1)
    return jnp.dot(flat, lin_w, precision=jax.lax.Precision.HIGHEST) + lin_b


# ---------------------------------------------------------------------------
if __name__ == "__main__":
    key = jax.random.PRNGKey(0)
    B, image_size, Q0 = 2, 8, 2
    epses_specs = ((3, 4), (2, 4))          # (kernel_size, out_quantum_dim)
    kernel_sizes = tuple(K for K, _ in epses_specs)

    k_x, k_c1, k_c2, k_w, k_b = jax.random.split(key, 5)

    # Quantum-feature-mapped input image batch: phi(v) = sqrt(2) * [cos, sin](pi/2 * v)
    pixels = jax.random.uniform(k_x, (B, image_size, image_size), jnp.float32)
    theta = (jnp.pi / 2.0) * pixels
    x = jnp.sqrt(2.0) * jnp.stack([jnp.cos(theta), jnp.sin(theta)], axis=-1)  # (B,H,W,Q0)

    # EPS cores (UnitTheoreticalOutputStd-style deterministic init: randn * q_in^{-K^2/2})
    cores = []
    q_in = Q0
    for (K, q_out), ck in zip(epses_specs, [k_c1, k_c2]):
        shape = (q_in,) * (K * K) + (q_out,)
        std = float(q_in) ** (-(K * K) / 2.0)
        cores.append(jax.random.normal(ck, shape, jnp.float32) * std)
        q_in = q_out

    # Linear layer: in_features = pre_h * pre_w * q_last -> 10 classes.
    pre = image_size - sum(kernel_sizes) + len(kernel_sizes)
    in_features = pre * pre * q_in
    w_std = in_features ** (-0.5) / 4.0
    b_max = in_features ** (-0.5)
    # stored transposed vs torch ((in_features, 10) instead of (10, in_features))
    lin_w = jax.random.normal(k_w, (in_features, 10), jnp.float32) * w_std
    lin_b = jax.random.uniform(k_b, (10,), jnp.float32, -b_max, b_max)

    # One-time parameter prep (rearranged cores + static metas), outside the forward.
    cores_p, metas = prepare_eps_params(cores, kernel_sizes)

    out = epses_plus_linear_forward(x, cores_p, metas=metas, lin_w=lin_w, lin_b=lin_b)
    out = jax.block_until_ready(out)
    assert out.shape == (B, 10)

    ref = jax.block_until_ready(
        reference_forward(x, cores, kernel_sizes, lin_w, lin_b))
    np.testing.assert_allclose(np.asarray(out), np.asarray(ref), rtol=1e-3, atol=1e-3)

    print("KERNEL_OK")
</pallas_src>

<mosaic_0001>
module attributes {stable_mosaic.version = 11 : i64} {
  func.func @_eps_kernel(%arg0: i32, %arg1: memref<4x4x128xf32, #tpu.memory_space<vmem>>, %arg2: memref<1x4x256xf32, #tpu.memory_space<vmem>>, %arg3: memref<4x128xf32, #tpu.memory_space<vmem>>) attributes {dimension_semantics = [#tpu.dimension_semantics<parallel>], iteration_bounds = array<i64: 1>, scalar_prefetch = 0 : i64, scratch_operands = 0 : i64, tpu.core_type = #tpu.core_type<tc>, window_params = [{transform_indices = @transform_0, window_bounds = array<i64: 4, 4, 128>}, {pipeline_mode = #tpu.pipeline_mode<synchronous>, transform_indices = @transform_1, window_bounds = array<i64: 1, 4, 256>}, {transform_indices = @transform_2, window_bounds = array<i64: 4, 128>}]} {
    %c2 = arith.constant 2 : index
    %c0 = arith.constant 0 : index
    %c0_0 = arith.constant 0 : index
    %0 = vector.load %arg1[%c2, %c0, %c0_0] : memref<4x4x128xf32, #tpu.memory_space<vmem>>, vector<1x4x128xf32>
    %1 = vector.shape_cast %0 : vector<1x4x128xf32> to vector<4x128xf32>
    %2 = vector.extract_strided_slice %1 {offsets = [0, 0], sizes = [1, 128], strides = [1, 1]} : vector<4x128xf32> to vector<1x128xf32>
    %c3 = arith.constant 3 : index
    %c0_1 = arith.constant 0 : index
    %c0_2 = arith.constant 0 : index
    %3 = vector.load %arg1[%c3, %c0_1, %c0_2] : memref<4x4x128xf32, #tpu.memory_space<vmem>>, vector<1x4x128xf32>
    %4 = vector.shape_cast %3 : vector<1x4x128xf32> to vector<4x128xf32>
    %5 = vector.extract_strided_slice %4 {offsets = [0, 0], sizes = [1, 128], strides = [1, 1]} : vector<4x128xf32> to vector<1x128xf32>
    %6 = arith.mulf %2, %5 : vector<1x128xf32>
    %7 = vector.extract_strided_slice %1 {offsets = [0, 0], sizes = [1, 128], strides = [1, 1]} : vector<4x128xf32> to vector<1x128xf32>
    %8 = vector.extract_strided_slice %4 {offsets = [1, 0], sizes = [1, 128], strides = [1, 1]} : vector<4x128xf32> to vector<1x128xf32>
    %9 = arith.mulf %7, %8 : vector<1x128xf32>
    %10 = vector.extract_strided_slice %1 {offsets = [0, 0], sizes = [1, 128], strides = [1, 1]} : vector<4x128xf32> to vector<1x128xf32>
    %11 = vector.extract_strided_slice %4 {offsets = [2, 0], sizes = [1, 128], strides = [1, 1]} : vector<4x128xf32> to vector<1x128xf32>
    %12 = arith.mulf %10, %11 : vector<1x128xf32>
    %13 = vector.extract_strided_slice %1 {offsets = [0, 0], sizes = [1, 128], strides = [1, 1]} : vector<4x128xf32> to vector<1x128xf32>
    %14 = vector.extract_strided_slice %4 {offsets = [3, 0], sizes = [1, 128], strides = [1, 1]} : vector<4x128xf32> to vector<1x128xf32>
    %15 = arith.mulf %13, %14 : vector<1x128xf32>
    %16 = vector.extract_strided_slice %1 {offsets = [1, 0], sizes = [1, 128], strides = [1, 1]} : vector<4x128xf32> to vector<1x128xf32>
    %17 = vector.extract_strided_slice %4 {offsets = [0, 0], sizes = [1, 128], strides = [1, 1]} : vector<4x128xf32> to vector<1x128xf32>
    %18 = arith.mulf %16, %17 : vector<1x128xf32>
    %19 = vector.extract_strided_slice %1 {offsets = [1, 0], sizes = [1, 128], strides = [1, 1]} : vector<4x128xf32> to vector<1x128xf32>
    %20 = vector.extract_strided_slice %4 {offsets = [1, 0], sizes = [1, 128], strides = [1, 1]} : vector<4x128xf32> to vector<1x128xf32>
    %21 = arith.mulf %19, %20 : vector<1x128xf32>
    %22 = vector.extract_strided_slice %1 {offsets = [1, 0], sizes = [1, 128], strides = [1, 1]} : vector<4x128xf32> to vector<1x128xf32>
    %23 = vector.extract_strided_slice %4 {offsets = [2, 0], sizes = [1, 128], strides = [1, 1]} : vector<4x128xf32> to vector<1x128xf32>
    %24 = arith.mulf %22, %23 : vector<1x128xf32>
    %25 = vector.extract_strided_slice %1 {offsets = [1, 0], sizes = [1, 128], strides = [1, 1]} : vector<4x128xf32> to vector<1x128xf32>
    %26 = vector.extract_strided_slice %4 {offsets = [3, 0], sizes = [1, 128], strides = [1, 1]} : vector<4x128xf32> to vector<1x128xf32>
    %27 = arith.mulf %25, %26 : vector<1x128xf32>
    %28 = vector.extract_strided_slice %1 {offsets = [2, 0], sizes = [1, 128], strides = [1, 1]} : vector<4x128xf32> to vector<1x128xf32>
    %29 = vector.extract_strided_slice %4 {offsets = [0, 0], sizes = [1, 128], strides = [1, 1]} : vector<4x128xf32> to vector<1x128xf32>
    %30 = arith.mulf %28, %29 : vector<1x128xf32>
    %31 = vector.extract_strided_slice %1 {offsets = [2, 0], sizes = [1, 128], strides = [1, 1]} : vector<4x128xf32> to vector<1x128xf32>
    %32 = vector.extract_strided_slice %4 {offsets = [1, 0], sizes = [1, 128], strides = [1, 1]} : vector<4x128xf32> to vector<1x128xf32>
    %33 = arith.mulf %31, %32 : vector<1x128xf32>
    %34 = vector.extract_strided_slice %1 {offsets = [2, 0], sizes = [1, 128], strides = [1, 1]} : vector<4x128xf32> to vector<1x128xf32>
    %35 = vector.extract_strided_slice %4 {offsets = [2, 0], sizes = [1, 128], strides = [1, 1]} : vector<4x128xf32> to vector<1x128xf32>
    %36 = arith.mulf %34, %35 : vector<1x128xf32>
    %37 = vector.extract_strided_slice %1 {offsets = [2, 0], sizes = [1, 128], strides = [1, 1]} : vector<4x128xf32> to vector<1x128xf32>
    %38 = vector.extract_strided_slice %4 {offsets = [3, 0], sizes = [1, 128], strides = [1, 1]} : vector<4x128xf32> to vector<1x128xf32>
    %39 = arith.mulf %37, %38 : vector<1x128xf32>
    %40 = vector.extract_strided_slice %1 {offsets = [3, 0], sizes = [1, 128], strides = [1, 1]} : vector<4x128xf32> to vector<1x128xf32>
    %41 = vector.extract_strided_slice %4 {offsets = [0, 0], sizes = [1, 128], strides = [1, 1]} : vector<4x128xf32> to vector<1x128xf32>
    %42 = arith.mulf %40, %41 : vector<1x128xf32>
    %43 = vector.extract_strided_slice %1 {offsets = [3, 0], sizes = [1, 128], strides = [1, 1]} : vector<4x128xf32> to vector<1x128xf32>
    %44 = vector.extract_strided_slice %4 {offsets = [1, 0], sizes = [1, 128], strides = [1, 1]} : vector<4x128xf32> to vector<1x128xf32>
    %45 = arith.mulf %43, %44 : vector<1x128xf32>
    %46 = vector.extract_strided_slice %1 {offsets = [3, 0], sizes = [1, 128], strides = [1, 1]} : vector<4x128xf32> to vector<1x128xf32>
    %47 = vector.extract_strided_slice %4 {offsets = [2, 0], sizes = [1, 128], strides = [1, 1]} : vector<4x128xf32> to vector<1x128xf32>
    %48 = arith.mulf %46, %47 : vector<1x128xf32>
    %49 = vector.extract_strided_slice %1 {offsets = [3, 0], sizes = [1, 128], strides = [1, 1]} : vector<4x128xf32> to vector<1x128xf32>
    %50 = vector.extract_strided_slice %4 {offsets = [3, 0], sizes = [1, 128], strides = [1, 1]} : vector<4x128xf32> to vector<1x128xf32>
    %51 = arith.mulf %49, %50 : vector<1x128xf32>
    %52 = tpu.concatenate %6, %9, %12, %15, %18, %21, %24, %27, %30, %33, %36, %39, %42, %45, %48, %51 in 0 : vector<1x128xf32>, vector<1x128xf32>, vector<1x128xf32>, vector<1x128xf32>, vector<1x128xf32>, vector<1x128xf32>, vector<1x128xf32>, vector<1x128xf32>, vector<1x128xf32>, vector<1x128xf32>, vector<1x128xf32>, vector<1x128xf32>, vector<1x128xf32>, vector<1x128xf32>, vector<1x128xf32>, vector<1x128xf32> -> vector<16x128xf32>
    %c1 = arith.constant 1 : index
    %c0_3 = arith.constant 0 : index
    %c0_4 = arith.constant 0 : index
    %53 = vector.load %arg1[%c1, %c0_3, %c0_4] : memref<4x4x128xf32, #tpu.memory_space<vmem>>, vector<1x4x128xf32>
    %54 = vector.shape_cast %53 : vector<1x4x128xf32> to vector<4x128xf32>
    %55 = vector.extract_strided_slice %54 {offsets = [0, 0], sizes = [1, 128], strides = [1, 1]} : vector<4x128xf32> to vector<1x128xf32>
    %56 = vector.broadcast %55 : vector<1x128xf32> to vector<16x128xf32>
    %57 = arith.mulf %56, %52 : vector<16x128xf32>
    %58 = vector.extract_strided_slice %54 {offsets = [1, 0], sizes = [1, 128], strides = [1, 1]} : vector<4x128xf32> to vector<1x128xf32>
    %59 = vector.broadcast %58 : vector<1x128xf32> to vector<16x128xf32>
    %60 = arith.mulf %59, %52 : vector<16x128xf32>
    %61 = vector.extract_strided_slice %54 {offsets = [2, 0], sizes = [1, 128], strides = [1, 1]} : vector<4x128xf32> to vector<1x128xf32>
    %62 = vector.broadcast %61 : vector<1x128xf32> to vector<16x128xf32>
    %63 = arith.mulf %62, %52 : vector<16x128xf32>
    %64 = vector.extract_strided_slice %54 {offsets = [3, 0], sizes = [1, 128], strides = [1, 1]} : vector<4x128xf32> to vector<1x128xf32>
    %65 = vector.broadcast %64 : vector<1x128xf32> to vector<16x128xf32>
    %66 = arith.mulf %65, %52 : vector<16x128xf32>
    %67 = tpu.concatenate %57, %60, %63, %66 in 0 : vector<16x128xf32>, vector<16x128xf32>, vector<16x128xf32>, vector<16x128xf32> -> vector<64x128xf32>
    %c0_5 = arith.constant 0 : index
    %c0_6 = arith.constant 0 : index
    %c0_7 = arith.constant 0 : index
    %68 = vector.load %arg1[%c0_5, %c0_6, %c0_7] : memref<4x4x128xf32, #tpu.memory_space<vmem>>, vector<1x4x128xf32>
    %69 = vector.shape_cast %68 : vector<1x4x128xf32> to vector<4x128xf32>
    %70 = vector.extract_strided_slice %69 {offsets = [0, 0], sizes = [1, 128], strides = [1, 1]} : vector<4x128xf32> to vector<1x128xf32>
    %71 = vector.broadcast %70 : vector<1x128xf32> to vector<64x128xf32>
    %72 = arith.mulf %71, %67 : vector<64x128xf32>
    %73 = vector.extract_strided_slice %69 {offsets = [1, 0], sizes = [1, 128], strides = [1, 1]} : vector<4x128xf32> to vector<1x128xf32>
    %74 = vector.broadcast %73 : vector<1x128xf32> to vector<64x128xf32>
    %75 = arith.mulf %74, %67 : vector<64x128xf32>
    %76 = vector.extract_strided_slice %69 {offsets = [2, 0], sizes = [1, 128], strides = [1, 1]} : vector<4x128xf32> to vector<1x128xf32>
    %77 = vector.broadcast %76 : vector<1x128xf32> to vector<64x128xf32>
    %78 = arith.mulf %77, %67 : vector<64x128xf32>
    %79 = vector.extract_strided_slice %69 {offsets = [3, 0], sizes = [1, 128], strides = [1, 1]} : vector<4x128xf32> to vector<1x128xf32>
    %80 = vector.broadcast %79 : vector<1x128xf32> to vector<64x128xf32>
    %81 = arith.mulf %80, %67 : vector<64x128xf32>
    %82 = tpu.concatenate %72, %75, %78, %81 in 0 : vector<64x128xf32>, vector<64x128xf32>, vector<64x128xf32>, vector<64x128xf32> -> vector<256x128xf32>
    %c0_8 = arith.constant 0 : index
    %c0_9 = arith.constant 0 : index
    %c0_10 = arith.constant 0 : index
    %83 = vector.load %arg2[%c0_8, %c0_9, %c0_10] : memref<1x4x256xf32, #tpu.memory_space<vmem>>, vector<1x4x256xf32>
    %84 = vector.shape_cast %83 : vector<1x4x256xf32> to vector<4x256xf32>
    %cst = arith.constant dense<0.000000e+00> : vector<4x128xf32>
    %85 = tpu.matmul %84, %82, %cst {dimension_numbers = #tpu.dot_dimension_numbers<[1], [0], [0], [1], [0, 0, 1, 1], [], []>, precision = #tpu.contract_precision<fp32>} : vector<4x256xf32>, vector<256x128xf32>, vector<4x128xf32> -> vector<4x128xf32>
    %c0_11 = arith.constant 0 : index
    %c0_12 = arith.constant 0 : index
    %86 = vector.load %arg3[%c0_11, %c0_12] : memref<4x128xf32, #tpu.memory_space<vmem>>, vector<4x128xf32>
    tpu.vector_store %arg3[%c0_11, %c0_12], %85 {strides = array<i32>} : memref<4x128xf32, #tpu.memory_space<vmem>>, vector<4x128xf32>,
    return
  }
  func.func @transform_0(%arg0: i32) -> (i32, i32, i32) {
    %c0_i32 = arith.constant 0 : i32
    %c0_i32_0 = arith.constant 0 : i32
    %c0_i32_1 = arith.constant 0 : i32
    return %c0_i32, %c0_i32_0, %arg0 : i32, i32, i32
  }
  func.func @transform_1(%arg0: i32) -> (i32, i32, i32) {
    %c0_i32 = arith.constant 0 : i32
    %c0_i32_0 = arith.constant 0 : i32
    %c0_i32_1 = arith.constant 0 : i32
    %c0_i32_2 = arith.constant 0 : i32
    return %c0_i32, %c0_i32_0, %c0_i32_1 : i32, i32, i32
  }
  func.func @transform_2(%arg0: i32) -> (i32, i32) {
    %c0_i32 = arith.constant 0 : i32
    %c0_i32_0 = arith.constant 0 : i32
    return %c0_i32, %arg0 : i32, i32
  }
}

module attributes {stable_mosaic.version = 11 : i64} {
  func.func @_eps_kernel(%arg0: i32, %arg1: memref<9x2x128xf32, #tpu.memory_space<vmem>>, %arg2: memref<2x4x256xf32, #tpu.memory_space<vmem>>, %arg3: memref<4x128xf32, #tpu.memory_space<vmem>>) attributes {dimension_semantics = [#tpu.dimension_semantics<parallel>], iteration_bounds = array<i64: 1>, scalar_prefetch = 0 : i64, scratch_operands = 0 : i64, tpu.core_type = #tpu.core_type<tc>, window_params = [{transform_indices = @transform_0, window_bounds = array<i64: 9, 2, 128>}, {pipeline_mode = #tpu.pipeline_mode<synchronous>, transform_indices = @transform_1, window_bounds = array<i64: 2, 4, 256>}, {transform_indices = @transform_2, window_bounds = array<i64: 4, 128>}]} {
    %c5 = arith.constant 5 : index
    %c0 = arith.constant 0 : index
    %c0_0 = arith.constant 0 : index
    %0 = vector.load %arg1[%c5, %c0, %c0_0] : memref<9x2x128xf32, #tpu.memory_space<vmem>>, vector<1x2x128xf32>
    %1 = vector.shape_cast %0 : vector<1x2x128xf32> to vector<2x128xf32>
    %2 = vector.extract_strided_slice %1 {offsets = [0, 0], sizes = [1, 128], strides = [1, 1]} : vector<2x128xf32> to vector<1x128xf32>
    %c6 = arith.constant 6 : index
    %c0_1 = arith.constant 0 : index
    %c0_2 = arith.constant 0 : index
    %3 = vector.load %arg1[%c6, %c0_1, %c0_2] : memref<9x2x128xf32, #tpu.memory_space<vmem>>, vector<1x2x128xf32>
    %4 = vector.shape_cast %3 : vector<1x2x128xf32> to vector<2x128xf32>
    %5 = vector.extract_strided_slice %4 {offsets = [0, 0], sizes = [1, 128], strides = [1, 1]} : vector<2x128xf32> to vector<1x128xf32>
    %6 = arith.mulf %2, %5 : vector<1x128xf32>
    %c7 = arith.constant 7 : index
    %c0_3 = arith.constant 0 : index
    %c0_4 = arith.constant 0 : index
    %7 = vector.load %arg1[%c7, %c0_3, %c0_4] : memref<9x2x128xf32, #tpu.memory_space<vmem>>, vector<1x2x128xf32>
    %8 = vector.shape_cast %7 : vector<1x2x128xf32> to vector<2x128xf32>
    %9 = vector.extract_strided_slice %8 {offsets = [0, 0], sizes = [1, 128], strides = [1, 1]} : vector<2x128xf32> to vector<1x128xf32>
    %10 = arith.mulf %6, %9 : vector<1x128xf32>
    %11 = vector.extract_strided_slice %1 {offsets = [0, 0], sizes = [1, 128], strides = [1, 1]} : vector<2x128xf32> to vector<1x128xf32>
    %12 = vector.extract_strided_slice %4 {offsets = [0, 0], sizes = [1, 128], strides = [1, 1]} : vector<2x128xf32> to vector<1x128xf32>
    %13 = arith.mulf %11, %12 : vector<1x128xf32>
    %14 = vector.extract_strided_slice %8 {offsets = [1, 0], sizes = [1, 128], strides = [1, 1]} : vector<2x128xf32> to vector<1x128xf32>
    %15 = arith.mulf %13, %14 : vector<1x128xf32>
    %16 = vector.extract_strided_slice %1 {offsets = [0, 0], sizes = [1, 128], strides = [1, 1]} : vector<2x128xf32> to vector<1x128xf32>
    %17 = vector.extract_strided_slice %4 {offsets = [1, 0], sizes = [1, 128], strides = [1, 1]} : vector<2x128xf32> to vector<1x128xf32>
    %18 = arith.mulf %16, %17 : vector<1x128xf32>
    %19 = vector.extract_strided_slice %8 {offsets = [0, 0], sizes = [1, 128], strides = [1, 1]} : vector<2x128xf32> to vector<1x128xf32>
    %20 = arith.mulf %18, %19 : vector<1x128xf32>
    %21 = vector.extract_strided_slice %1 {offsets = [0, 0], sizes = [1, 128], strides = [1, 1]} : vector<2x128xf32> to vector<1x128xf32>
    %22 = vector.extract_strided_slice %4 {offsets = [1, 0], sizes = [1, 128], strides = [1, 1]} : vector<2x128xf32> to vector<1x128xf32>
    %23 = arith.mulf %21, %22 : vector<1x128xf32>
    %24 = vector.extract_strided_slice %8 {offsets = [1, 0], sizes = [1, 128], strides = [1, 1]} : vector<2x128xf32> to vector<1x128xf32>
    %25 = arith.mulf %23, %24 : vector<1x128xf32>
    %26 = vector.extract_strided_slice %1 {offsets = [1, 0], sizes = [1, 128], strides = [1, 1]} : vector<2x128xf32> to vector<1x128xf32>
    %27 = vector.extract_strided_slice %4 {offsets = [0, 0], sizes = [1, 128], strides = [1, 1]} : vector<2x128xf32> to vector<1x128xf32>
    %28 = arith.mulf %26, %27 : vector<1x128xf32>
    %29 = vector.extract_strided_slice %8 {offsets = [0, 0], sizes = [1, 128], strides = [1, 1]} : vector<2x128xf32> to vector<1x128xf32>
    %30 = arith.mulf %28, %29 : vector<1x128xf32>
    %31 = vector.extract_strided_slice %1 {offsets = [1, 0], sizes = [1, 128], strides = [1, 1]} : vector<2x128xf32> to vector<1x128xf32>
    %32 = vector.extract_strided_slice %4 {offsets = [0, 0], sizes = [1, 128], strides = [1, 1]} : vector<2x128xf32> to vector<1x128xf32>
    %33 = arith.mulf %31, %32 : vector<1x128xf32>
    %34 = vector.extract_strided_slice %8 {offsets = [1, 0], sizes = [1, 128], strides = [1, 1]} : vector<2x128xf32> to vector<1x128xf32>
    %35 = arith.mulf %33, %34 : vector<1x128xf32>
    %36 = vector.extract_strided_slice %1 {offsets = [1, 0], sizes = [1, 128], strides = [1, 1]} : vector<2x128xf32> to vector<1x128xf32>
    %37 = vector.extract_strided_slice %4 {offsets = [1, 0], sizes = [1, 128], strides = [1, 1]} : vector<2x128xf32> to vector<1x128xf32>
    %38 = arith.mulf %36, %37 : vector<1x128xf32>
    %39 = vector.extract_strided_slice %8 {offsets = [0, 0], sizes = [1, 128], strides = [1, 1]} : vector<2x128xf32> to vector<1x128xf32>
    %40 = arith.mulf %38, %39 : vector<1x128xf32>
    %41 = vector.extract_strided_slice %1 {offsets = [1, 0], sizes = [1, 128], strides = [1, 1]} : vector<2x128xf32> to vector<1x128xf32>
    %42 = vector.extract_strided_slice %4 {offsets = [1, 0], sizes = [1, 128], strides = [1, 1]} : vector<2x128xf32> to vector<1x128xf32>
    %43 = arith.mulf %41, %42 : vector<1x128xf32>
    %44 = vector.extract_strided_slice %8 {offsets = [1, 0], sizes = [1, 128], strides = [1, 1]} : vector<2x128xf32> to vector<1x128xf32>
    %45 = arith.mulf %43, %44 : vector<1x128xf32>
    %46 = tpu.concatenate %10, %15, %20, %25, %30, %35, %40, %45 in 0 : vector<1x128xf32>, vector<1x128xf32>, vector<1x128xf32>, vector<1x128xf32>, vector<1x128xf32>, vector<1x128xf32>, vector<1x128xf32>, vector<1x128xf32> -> vector<8x128xf32>
    %c4 = arith.constant 4 : index
    %c0_5 = arith.constant 0 : index
    %c0_6 = arith.constant 0 : index
    %47 = vector.load %arg1[%c4, %c0_5, %c0_6] : memref<9x2x128xf32, #tpu.memory_space<vmem>>, vector<1x2x128xf32>
    %48 = vector.shape_cast %47 : vector<1x2x128xf32> to vector<2x128xf32>
    %49 = vector.extract_strided_slice %48 {offsets = [0, 0], sizes = [1, 128], strides = [1, 1]} : vector<2x128xf32> to vector<1x128xf32>
    %50 = vector.broadcast %49 : vector<1x128xf32> to vector<8x128xf32>
    %51 = arith.mulf %50, %46 : vector<8x128xf32>
    %52 = vector.extract_strided_slice %48 {offsets = [1, 0], sizes = [1, 128], strides = [1, 1]} : vector<2x128xf32> to vector<1x128xf32>
    %53 = vector.broadcast %52 : vector<1x128xf32> to vector<8x128xf32>
    %54 = arith.mulf %53, %46 : vector<8x128xf32>
    %55 = tpu.concatenate %51, %54 in 0 : vector<8x128xf32>, vector<8x128xf32> -> vector<16x128xf32>
    %c3 = arith.constant 3 : index
    %c0_7 = arith.constant 0 : index
    %c0_8 = arith.constant 0 : index
    %56 = vector.load %arg1[%c3, %c0_7, %c0_8] : memref<9x2x128xf32, #tpu.memory_space<vmem>>, vector<1x2x128xf32>
    %57 = vector.shape_cast %56 : vector<1x2x128xf32> to vector<2x128xf32>
    %58 = vector.extract_strided_slice %57 {offsets = [0, 0], sizes = [1, 128], strides = [1, 1]} : vector<2x128xf32> to vector<1x128xf32>
    %59 = vector.broadcast %58 : vector<1x128xf32> to vector<16x128xf32>
    %60 = arith.mulf %59, %55 : vector<16x128xf32>
    %61 = vector.extract_strided_slice %57 {offsets = [1, 0], sizes = [1, 128], strides = [1, 1]} : vector<2x128xf32> to vector<1x128xf32>
    %62 = vector.broadcast %61 : vector<1x128xf32> to vector<16x128xf32>
    %63 = arith.mulf %62, %55 : vector<16x128xf32>
    %64 = tpu.concatenate %60, %63 in 0 : vector<16x128xf32>, vector<16x128xf32> -> vector<32x128xf32>
    %c2 = arith.constant 2 : index
    %c0_9 = arith.constant 0 : index
    %c0_10 = arith.constant 0 : index
    %65 = vector.load %arg1[%c2, %c0_9, %c0_10] : memref<9x2x128xf32, #tpu.memory_space<vmem>>, vector<1x2x128xf32>
    %66 = vector.shape_cast %65 : vector<1x2x128xf32> to vector<2x128xf32>
    %67 = vector.extract_strided_slice %66 {offsets = [0, 0], sizes = [1, 128], strides = [1, 1]} : vector<2x128xf32> to vector<1x128xf32>
    %68 = vector.broadcast %67 : vector<1x128xf32> to vector<32x128xf32>
    %69 = arith.mulf %68, %64 : vector<32x128xf32>
    %70 = vector.extract_strided_slice %66 {offsets = [1, 0], sizes = [1, 128], strides = [1, 1]} : vector<2x128xf32> to vector<1x128xf32>
    %71 = vector.broadcast %70 : vector<1x128xf32> to vector<32x128xf32>
    %72 = arith.mulf %71, %64 : vector<32x128xf32>
    %73 = tpu.concatenate %69, %72 in 0 : vector<32x128xf32>, vector<32x128xf32> -> vector<64x128xf32>
    %c1 = arith.constant 1 : index
    %c0_11 = arith.constant 0 : index
    %c0_12 = arith.constant 0 : index
    %74 = vector.load %arg1[%c1, %c0_11, %c0_12] : memref<9x2x128xf32, #tpu.memory_space<vmem>>, vector<1x2x128xf32>
    %75 = vector.shape_cast %74 : vector<1x2x128xf32> to vector<2x128xf32>
    %76 = vector.extract_strided_slice %75 {offsets = [0, 0], sizes = [1, 128], strides = [1, 1]} : vector<2x128xf32> to vector<1x128xf32>
    %77 = vector.broadcast %76 : vector<1x128xf32> to vector<64x128xf32>
    %78 = arith.mulf %77, %73 : vector<64x128xf32>
    %79 = vector.extract_strided_slice %75 {offsets = [1, 0], sizes = [1, 128], strides = [1, 1]} : vector<2x128xf32> to vector<1x128xf32>
    %80 = vector.broadcast %79 : vector<1x128xf32> to vector<64x128xf32>
    %81 = arith.mulf %80, %73 : vector<64x128xf32>
    %82 = tpu.concatenate %78, %81 in 0 : vector<64x128xf32>, vector<64x128xf32> -> vector<128x128xf32>
    %c0_13 = arith.constant 0 : index
    %c0_14 = arith.constant 0 : index
    %c0_15 = arith.constant 0 : index
    %83 = vector.load %arg1[%c0_13, %c0_14, %c0_15] : memref<9x2x128xf32, #tpu.memory_space<vmem>>, vector<1x2x128xf32>
    %84 = vector.shape_cast %83 : vector<1x2x128xf32> to vector<2x128xf32>
    %85 = vector.extract_strided_slice %84 {offsets = [0, 0], sizes = [1, 128], strides = [1, 1]} : vector<2x128xf32> to vector<1x128xf32>
    %86 = vector.broadcast %85 : vector<1x128xf32> to vector<128x128xf32>
    %87 = arith.mulf %86, %82 : vector<128x128xf32>
    %88 = vector.extract_strided_slice %84 {offsets = [1, 0], sizes = [1, 128], strides = [1, 1]} : vector<2x128xf32> to vector<1x128xf32>
    %89 = vector.broadcast %88 : vector<1x128xf32> to vector<128x128xf32>
    %90 = arith.mulf %89, %82 : vector<128x128xf32>
    %91 = tpu.concatenate %87, %90 in 0 : vector<128x128xf32>, vector<128x128xf32> -> vector<256x128xf32>
    %c0_16 = arith.constant 0 : index
    %c0_17 = arith.constant 0 : index
    %c0_18 = arith.constant 0 : index
    %92 = vector.load %arg2[%c0_16, %c0_17, %c0_18] : memref<2x4x256xf32, #tpu.memory_space<vmem>>, vector<1x4x256xf32>
    %93 = vector.shape_cast %92 : vector<1x4x256xf32> to vector<4x256xf32>
    %cst = arith.constant dense<0.000000e+00> : vector<4x128xf32>
    %94 = tpu.matmul %93, %91, %cst {dimension_numbers = #tpu.dot_dimension_numbers<[1], [0], [0], [1], [0, 0, 1, 1], [], []>, precision = #tpu.contract_precision<fp32>} : vector<4x256xf32>, vector<256x128xf32>, vector<4x128xf32> -> vector<4x128xf32>
    %c8 = arith.constant 8 : index
    %c0_19 = arith.constant 0 : index
    %c0_20 = arith.constant 0 : index
    %95 = vector.load %arg1[%c8, %c0_19, %c0_20] : memref<9x2x128xf32, #tpu.memory_space<vmem>>, vector<1x2x128xf32>
    %96 = vector.shape_cast %95 : vector<1x2x128xf32> to vector<2x128xf32>
    %97 = vector.extract_strided_slice %96 {offsets = [0, 0], sizes = [1, 128], strides = [1, 1]} : vector<2x128xf32> to vector<1x128xf32>
    %98 = vector.broadcast %97 : vector<1x128xf32> to vector<4x128xf32>
    %99 = arith.mulf %94, %98 : vector<4x128xf32>
    %c1_21 = arith.constant 1 : index
    %c0_22 = arith.constant 0 : index
    %c0_23 = arith.constant 0 : index
    %100 = vector.load %arg2[%c1_21, %c0_22, %c0_23] : memref<2x4x256xf32, #tpu.memory_space<vmem>>, vector<1x4x256xf32>
    %101 = vector.shape_cast %100 : vector<1x4x256xf32> to vector<4x256xf32>
    %cst_24 = arith.constant dense<0.000000e+00> : vector<4x128xf32>
    %102 = tpu.matmul %101, %91, %cst_24 {dimension_numbers = #tpu.dot_dimension_numbers<[1], [0], [0], [1], [0, 0, 1, 1], [], []>, precision = #tpu.contract_precision<fp32>} : vector<4x256xf32>, vector<256x128xf32>, vector<4x128xf32> -> vector<4x128xf32>
    %103 = vector.extract_strided_slice %96 {offsets = [1, 0], sizes = [1, 128], strides = [1, 1]} : vector<2x128xf32> to vector<1x128xf32>
    %104 = vector.broadcast %103 : vector<1x128xf32> to vector<4x128xf32>
    %105 = arith.mulf %102, %104 : vector<4x128xf32>
    %106 = arith.addf %99, %105 : vector<4x128xf32>
    %c0_25 = arith.constant 0 : index
    %c0_26 = arith.constant 0 : index
    %107 = vector.load %arg3[%c0_25, %c0_26] : memref<4x128xf32, #tpu.memory_space<vmem>>, vector<4x128xf32>
    tpu.vector_store %arg3[%c0_25, %c0_26], %106 {strides = array<i32>} : memref<4x128xf32, #tpu.memory_space<vmem>>, vector<4x128xf32>,
    return
  }
  func.func @transform_0(%arg0: i32) -> (i32, i32, i32) {
    %c0_i32 = arith.constant 0 : i32
    %c0_i32_0 = arith.constant 0 : i32
    %c0_i32_1 = arith.constant 0 : i32
    return %c0_i32, %c0_i32_0, %arg0 : i32, i32, i32
  }
  func.func @transform_1(%arg0: i32) -> (i32, i32, i32) {
    %c0_i32 = arith.constant 0 : i32
    %c0_i32_0 = arith.constant 0 : i32
    %c0_i32_1 = arith.constant 0 : i32
    %c0_i32_2 = arith.constant 0 : i32
    return %c0_i32, %c0_i32_0, %c0_i32_1 : i32, i32, i32
  }
  func.func @transform_2(%arg0: i32) -> (i32, i32) {
    %c0_i32 = arith.constant 0 : i32
    %c0_i32_0 = arith.constant 0 : i32
    return %c0_i32, %arg0 : i32, i32
  }
}

module attributes {stable_mosaic.version = 11 : i64} {
  func.func @_linear_kernel(%arg0: i32, %arg1: memref<8x100xf32, #tpu.memory_space<vmem>>, %arg2: memref<100x128xf32, #tpu.memory_space<vmem>>, %arg3: memref<1x128xf32, #tpu.memory_space<vmem>>, %arg4: memref<8x128xf32, #tpu.memory_space<vmem>>) attributes {dimension_semantics = [#tpu.dimension_semantics<parallel>], iteration_bounds = array<i64: 1>, scalar_prefetch = 0 : i64, scratch_operands = 0 : i64, tpu.core_type = #tpu.core_type<tc>, window_params = [{transform_indices = @transform_0, window_bounds = array<i64: 8, 100>}, {pipeline_mode = #tpu.pipeline_mode<synchronous>, transform_indices = @transform_1, window_bounds = array<i64: 100, 128>}, {pipeline_mode = #tpu.pipeline_mode<synchronous>, transform_indices = @transform_2, window_bounds = array<i64: 1, 128>}, {transform_indices = @transform_3, window_bounds = array<i64: 8, 128>}]} {
    %c0 = arith.constant 0 : index
    %c0_0 = arith.constant 0 : index
    %0 = vector.load %arg1[%c0, %c0_0] : memref<8x100xf32, #tpu.memory_space<vmem>>, vector<8x100xf32>
    %c0_1 = arith.constant 0 : index
    %c0_2 = arith.constant 0 : index
    %1 = vector.load %arg2[%c0_1, %c0_2] : memref<100x128xf32, #tpu.memory_space<vmem>>, vector<100x128xf32>
    %cst = arith.constant dense<0.000000e+00> : vector<8x128xf32>
    %2 = tpu.matmul %0, %1, %cst {dimension_numbers = #tpu.dot_dimension_numbers<[1], [0], [0], [1], [0, 0, 1, 1], [], []>, precision = #tpu.contract_precision<fp32>} : vector<8x100xf32>, vector<100x128xf32>, vector<8x128xf32> -> vector<8x128xf32>
    %c0_3 = arith.constant 0 : index
    %c0_4 = arith.constant 0 : index
    %3 = vector.load %arg3[%c0_3, %c0_4] : memref<1x128xf32, #tpu.memory_space<vmem>>, vector<1x128xf32>
    %4 = vector.broadcast %3 : vector<1x128xf32> to vector<8x128xf32>
    %5 = arith.addf %2, %4 : vector<8x128xf32>
    %c0_5 = arith.constant 0 : index
    %c0_6 = arith.constant 0 : index
    %6 = vector.load %arg4[%c0_5, %c0_6] : memref<8x128xf32, #tpu.memory_space<vmem>>, vector<8x128xf32>
    tpu.vector_store %arg4[%c0_5, %c0_6], %5 {strides = array<i32>} : memref<8x128xf32, #tpu.memory_space<vmem>>, vector<8x128xf32>,
    return
  }
  func.func @transform_0(%arg0: i32) -> (i32, i32) {
    %c0_i32 = arith.constant 0 : i32
    %c0_i32_0 = arith.constant 0 : i32
    return %arg0, %c0_i32 : i32, i32
  }
  func.func @transform_1(%arg0: i32) -> (i32, i32) {
    %c0_i32 = arith.constant 0 : i32
    %c0_i32_0 = arith.constant 0 : i32
    %c0_i32_1 = arith.constant 0 : i32
    return %c0_i32, %c0_i32_0 : i32, i32
  }
  func.func @transform_2(%arg0: i32) -> (i32, i32) {
    %c0_i32 = arith.constant 0 : i32
    %c0_i32_0 = arith.constant 0 : i32
    %c0_i32_1 = arith.constant 0 : i32
    return %c0_i32, %c0_i32_0 : i32, i32
  }
  func.func @transform_3(%arg0: i32) -> (i32, i32) {
    %c0_i32 = arith.constant 0 : i32
    %c0_i32_0 = arith.constant 0 : i32
    return %arg0, %c0_i32 : i32, i32
  }
}

</mosaic_0001>

<llo_original>
// kernel: epses_plus_linear_forward.5
$region0: #{epses_plus_linear_forward.5}
  #allocation0 [shape = 'u32[]', space=smem, size = 0x4, offset = 0x4, fixed_abs, tag = 'smem constant byte address 0x4 - core index']
  #allocation1 [shape = 'u32[144,128]{1,0:T(1,128)}', space=vmem, size = 0x12000, scoped, tag = 'internal scratch']
  %s0 = inlined_call_operand.vmem [shape: f32[8,100], index: 0, kind: input, shape index: {}]
  %s1 = inlined_call_operand.vmem [shape: f32[100,128], index: 1, kind: input, shape index: {}]
  %s2 = inlined_call_operand.vmem [shape: f32[1,128], index: 2, kind: input, shape index: {}]
  %s3 = inlined_call_operand.vmem [shape: f32[8,128], index: 3, kind: output, shape index: {}]
  %s4 = sld [smem:[#allocation0]]
  $region22: #{epses_plus_linear_forward.5} parent=0
    _
  %s6 = ssub.s32 1, %s4
  %s7 = scalar_select 0, %s6, %s4
  // Predicated region
  $region2: #{epses_plus_linear_forward.5} parent=0 // pred_check
    _
  $region3: #{epses_plus_linear_forward.5} parent=0 // pred_check_branch
    %9 = sbr.rel (0) target = $region5
  $region4: #{epses_plus_linear_forward.5} parent=0 // pred_region
    _
  $region5: #{epses_plus_linear_forward.5} parent=0 // pred_fallthru
    _
  // Predicated region
  $region6: #{epses_plus_linear_forward.5} parent=0 // pred_check
    _
  $region7: #{epses_plus_linear_forward.5} parent=0 // pred_check_branch
    %11 = sbr.rel (0) target = $region9
  $region8: #{epses_plus_linear_forward.5} parent=0 // pred_region
    _
  $region9: #{epses_plus_linear_forward.5} parent=0 // pred_fallthru
    _
  // Predicated region
  $region10: #{epses_plus_linear_forward.5} parent=0 // pred_check
    _
  $region11: #{epses_plus_linear_forward.5} parent=0 // pred_check_branch
    %13 = sbr.rel (0) target = $region13
  $region12: #{epses_plus_linear_forward.5} parent=0 // pred_region
    _
  $region13: #{epses_plus_linear_forward.5} parent=0 // pred_fallthru
    _
  %v14 = vld [vmem:[%s0] sm:$0xff]
  %v15 = vld [vmem:[%s1] sm:$0xff]
  %v16 = vld [vmem:[%s1 + $0x8] sm:$0xff]
  %v17 = vld [vmem:[%s1 + $0x10] sm:$0xff]
  %v18 = vld [vmem:[%s1 + $0x18] sm:$0xff]
  %v19 = vld [vmem:[%s1 + $0x20] sm:$0xff]
  %v20 = vld [vmem:[%s1 + $0x28] sm:$0xff]
  %v21 = vld [vmem:[%s1 + $0x30] sm:$0xff]
  %v22 = vld [vmem:[%s1 + $0x38] sm:$0xff]
  %v23 = vld [vmem:[%s1 + $0x40] sm:$0xff]
  %v24 = vld [vmem:[%s1 + $0x48] sm:$0xff]
  %v25 = vld [vmem:[%s1 + $0x50] sm:$0xff]
  %v26 = vld [vmem:[%s1 + $0x58] sm:$0xff]
  %v27 = vld [vmem:[%s1 + $0x60] sm:$0xf]
  %v28 = vld [vmem:[%s2] sm:$0x1]
  %v30 = vlaneseq
  %v31 = vshrl.u32 %v30, 7
  %v32 = vsub.s32 0, %v31
  %v33 = vrot.slane %v28, %v32
  %vm35 = vcmask 818176
  %v37 = vsel %vm35, %v14, 0
  %vm39 = vcmask 1043456
  %v41 = vsel %vm39, %v27, 0
  %43 = vmatprep.subr.mxu0 0.0
  %v44 = vand.u32 %v15, 4294901760
  %45 = vmatpush1.msra.mxu0 %v44
  %46 = vmatprep.subr.mxu0 0.0
  %v47 = vand.u32 %v16, 4294901760
  %48 = vmatpush1.msra.mxu0 %v47
  %49 = vmatprep.subr.mxu0 0.0
  %v50 = vand.u32 %v17, 4294901760
  %51 = vmatpush1.msra.mxu0 %v50
  %52 = vmatprep.subr.mxu0 0.0
  %v53 = vand.u32 %v18, 4294901760
  %54 = vmatpush1.msra.mxu0 %v53
  %55 = vmatprep.subr.mxu0 0.0
  %v56 = vand.u32 %v19, 4294901760
  %57 = vmatpush1.msra.mxu0 %v56
  %58 = vmatprep.subr.mxu0 0.0
  %v59 = vand.u32 %v20, 4294901760
  %60 = vmatpush1.msra.mxu0 %v59
  %61 = vmatprep.subr.mxu0 0.0
  %v62 = vand.u32 %v21, 4294901760
  %63 = vmatpush1.msra.mxu0 %v62
  %64 = vmatprep.subr.mxu0 0.0
  %v65 = vand.u32 %v22, 4294901760
  %66 = vmatpush1.msra.mxu0 %v65
  %67 = vmatprep.subr.mxu0 0.0
  %v68 = vand.u32 %v23, 4294901760
  %69 = vmatpush1.msra.mxu0 %v68
  %70 = vmatprep.subr.mxu0 0.0
  %v71 = vand.u32 %v24, 4294901760
  %72 = vmatpush1.msra.mxu0 %v71
  %73 = vmatprep.subr.mxu0 0.0
  %v74 = vand.u32 %v25, 4294901760
  %75 = vmatpush1.msra.mxu0 %v74
  %76 = vmatprep.subr.mxu0 0.0
  %v77 = vand.u32 %v26, 4294901760
  %78 = vmatpush1.msra.mxu0 %v77
  %79 = vmatprep.subr.mxu0 0.0
  %v80 = vand.u32 %v41, 4294901760
  %81 = vmatpush1.msra.mxu0 %v80
  %82 = vmatprep.subr.mxu0 0.0
  %83 = vmatpush1.msra.mxu0 0.0
  %84 = vmatprep.subr.mxu0 0.0
  %85 = vmatpush1.msra.mxu0 0.0
  %86 = vmatprep.subr.mxu0 0.0
  %87 = vmatpush1.msra.mxu0 0.0
  %88 = vmatprep.subr.mxu0 0.0
  %89 = vmatpush1.msra.mxu0 0.0
  %90 = vmatprep.subr.mxu0 0.0
  %91 = vmatpush1.msra.mxu0 0.0
  %92 = vmatprep.subr.mxu0 0.0
  %93 = vmatpush1.msra.mxu0 0.0
  %94 = vmatprep.subr.mxu0 0.0
  %95 = vmatpush1.msra.mxu0 0.0
  %96 = vmatprep.subr.mxu0 0.0
  %97 = vmatpush1.msra.mxu0 0.0
  %98 = vmatprep.subr.mxu0 0.0
  %99 = vmatpush1.msra.mxu0 0.0
  %100 = vmatprep.subr.mxu0 0.0
  %101 = vmatpush1.msra.mxu0 0.0
  %102 = vmatprep.subr.mxu0 0.0
  %103 = vmatpush1.msra.mxu0 0.0
  %104 = vmatprep.subr.mxu0 0.0
  %105 = vmatpush1.msra.mxu0 0.0
  %106 = vmatprep.subr.mxu0 0.0
  %107 = vmatpush1.msra.mxu0 0.0
  %108 = vmatprep.subr.mxu0 0.0
  %109 = vmatpush1.msra.mxu0 0.0
  %110 = vmatprep.subr.mxu0 0.0
  %111 = vmatpush1.msra.mxu0 0.0
  %112 = vmatprep.subr.mxu0 0.0
  %113 = vmatpush1.msra.mxu0 0.0
  %114 = vmatprep.subr.mxu0 0.0
  %115 = vmatpush1.msra.mxu0 0.0
  %116 = vmatprep.subr.mxu0 0.0
  %117 = vmatpush1.msra.mxu0 0.0
  %118 = vmatprep.subr.mxu0 0.0
  %119 = vmatpush1.msra.mxu0 0.0
  %120 = vmatprep.mubr.f32.mxu0 0.0
  %v121 = vand.u32 %v37, 4294901760
  %v122 = vsub.f32 %v37, %v121
  %v123 = vand.u32 %v122, 4294901760
  %v124 = vsub.f32 %v122, %v123
  %v125 = vand.u32 %v124, 4294901760
  %126 = vmatmul.mubr.f32.gmra.mrb[0].mxu0 %v125
  %v127 = vpop.f32.mrb[0].mxu0
  %v128 = vadd.f32 %v33, %v127
  %v129 = vpop.f32.mrb[0].mxu0
  %130 = vdwg.mxu0
  %131 = vmatprep.subr.mxu0 0.0
  %v132 = vand.u32 %v15, 4294901760
  %v133 = vsub.f32 %v15, %v132
  %v134 = vand.u32 %v133, 4294901760
  %v135 = vsub.f32 %v133, %v134
  %v136 = vand.u32 %v135, 4294901760
  %137 = vmatpush1.msra.mxu0 %v136
  %138 = vmatprep.subr.mxu0 0.0
  %v139 = vand.u32 %v16, 4294901760
  %v140 = vsub.f32 %v16, %v139
  %v141 = vand.u32 %v140, 4294901760
  %v142 = vsub.f32 %v140, %v141
  %v143 = vand.u32 %v142, 4294901760
  %144 = vmatpush1.msra.mxu0 %v143
  %145 = vmatprep.subr.mxu0 0.0
  %v146 = vand.u32 %v17, 4294901760
  %v147 = vsub.f32 %v17, %v146
  %v148 = vand.u32 %v147, 4294901760
  %v149 = vsub.f32 %v147, %v148
  %v150 = vand.u32 %v149, 4294901760
  %151 = vmatpush1.msra.mxu0 %v150
  %152 = vmatprep.subr.mxu0 0.0
  %v153 = vand.u32 %v18, 4294901760
  %v154 = vsub.f32 %v18, %v153
  %v155 = vand.u32 %v154, 4294901760
  %v156 = vsub.f32 %v154, %v155
  %v157 = vand.u32 %v156, 4294901760
  %158 = vmatpush1.msra.mxu0 %v157
  %159 = vmatprep.subr.mxu0 0.0
  %v160 = vand.u32 %v19, 4294901760
  %v161 = vsub.f32 %v19, %v160
  %v162 = vand.u32 %v161, 4294901760
  %v163 = vsub.f32 %v161, %v162
  %v164 = vand.u32 %v163, 4294901760
  %165 = vmatpush1.msra.mxu0 %v164
  %166 = vmatprep.subr.mxu0 0.0
  %v167 = vand.u32 %v20, 4294901760
  %v168 = vsub.f32 %v20, %v167
  %v169 = vand.u32 %v168, 4294901760
  %v170 = vsub.f32 %v168, %v169
  %v171 = vand.u32 %v170, 4294901760
  %172 = vmatpush1.msra.mxu0 %v171
  %173 = vmatprep.subr.mxu0 0.0
  %v174 = vand.u32 %v21, 4294901760
  %v175 = vsub.f32 %v21, %v174
  %v176 = vand.u32 %v175, 4294901760
  %v177 = vsub.f32 %v175, %v176
  %v178 = vand.u32 %v177, 4294901760
  %179 = vmatpush1.msra.mxu0 %v178
  %180 = vmatprep.subr.mxu0 0.0
  %v181 = vand.u32 %v22, 4294901760
  %v182 = vsub.f32 %v22, %v181
  %v183 = vand.u32 %v182, 4294901760
  %v184 = vsub.f32 %v182, %v183
  %v185 = vand.u32 %v184, 4294901760
  %186 = vmatpush1.msra.mxu0 %v185
  %187 = vmatprep.subr.mxu0 0.0
  %v188 = vand.u32 %v23, 4294901760
  %v189 = vsub.f32 %v23, %v188
  %v190 = vand.u32 %v189, 4294901760
  %v191 = vsub.f32 %v189, %v190
  %v192 = vand.u32 %v191, 4294901760
  %193 = vmatpush1.msra.mxu0 %v192
  %194 = vmatprep.subr.mxu0 0.0
  %v195 = vand.u32 %v24, 4294901760
  %v196 = vsub.f32 %v24, %v195
  %v197 = vand.u32 %v196, 4294901760
  %v198 = vsub.f32 %v196, %v197
  %v199 = vand.u32 %v198, 4294901760
  %200 = vmatpush1.msra.mxu0 %v199
  %201 = vmatprep.subr.mxu0 0.0
  %v202 = vand.u32 %v25, 4294901760
  %v203 = vsub.f32 %v25, %v202
  %v204 = vand.u32 %v203, 4294901760
  %v205 = vsub.f32 %v203, %v204
  %v206 = vand.u32 %v205, 4294901760
  %207 = vmatpush1.msra.mxu0 %v206
  %208 = vmatprep.subr.mxu0 0.0
  %v209 = vand.u32 %v26, 4294901760
  %v210 = vsub.f32 %v26, %v209
  %v211 = vand.u32 %v210, 4294901760
  %v212 = vsub.f32 %v210, %v211
  %v213 = vand.u32 %v212, 4294901760
  %214 = vmatpush1.msra.mxu0 %v213
  %215 = vmatprep.subr.mxu0 0.0
  %v216 = vand.u32 %v41, 4294901760
  %v217 = vsub.f32 %v41, %v216
  %v218 = vand.u32 %v217, 4294901760
  %v219 = vsub.f32 %v217, %v218
  %v220 = vand.u32 %v219, 4294901760
  %221 = vmatpush1.msra.mxu0 %v220
  %222 = vmatprep.subr.mxu0 0.0
  %223 = vmatpush1.msra.mxu0 0.0
  %224 = vmatprep.subr.mxu0 0.0
  %225 = vmatpush1.msra.mxu0 0.0
  %226 = vmatprep.subr.mxu0 0.0
  %227 = vmatpush1.msra.mxu0 0.0
  %228 = vmatprep.subr.mxu0 0.0
  %229 = vmatpush1.msra.mxu0 0.0
  %230 = vmatprep.subr.mxu0 0.0
  %231 = vmatpush1.msra.mxu0 0.0
  %232 = vmatprep.subr.mxu0 0.0
  %233 = vmatpush1.msra.mxu0 0.0
  %234 = vmatprep.subr.mxu0 0.0
  %235 = vmatpush1.msra.mxu0 0.0
  %236 = vmatprep.subr.mxu0 0.0
  %237 = vmatpush1.msra.mxu0 0.0
  %238 = vmatprep.subr.mxu0 0.0
  %239 = vmatpush1.msra.mxu0 0.0
  %240 = vmatprep.subr.mxu0 0.0
  %241 = vmatpush1.msra.mxu0 0.0
  %242 = vmatprep.subr.mxu0 0.0
  %243 = vmatpush1.msra.mxu0 0.0
  %244 = vmatprep.subr.mxu0 0.0
  %245 = vmatpush1.msra.mxu0 0.0
  %246 = vmatprep.subr.mxu0 0.0
  %247 = vmatpush1.msra.mxu0 0.0
  %248 = vmatprep.subr.mxu0 0.0
  %249 = vmatpush1.msra.mxu0 0.0
  %250 = vmatprep.subr.mxu0 0.0
  %251 = vmatpush1.msra.mxu0 0.0
  %252 = vmatprep.subr.mxu0 0.0
  %253 = vmatpush1.msra.mxu0 0.0
  %254 = vmatprep.subr.mxu0 0.0
  %255 = vmatpush1.msra.mxu0 0.0
  %256 = vmatprep.subr.mxu0 0.0
  %257 = vmatpush1.msra.mxu0 0.0
  %258 = vmatprep.subr.mxu0 0.0
  %259 = vmatpush1.msra.mxu0 0.0
  %260 = vmatprep.mubr.f32.mxu0 0.0
  %v261 = vand.u32 %v37, 4294901760
  %262 = vmatmul.mubr.f32.gmra.mrb[0].mxu0 %v261
  %v263 = vpop.f32.mrb[0].mxu0
  %v264 = vadd.f32 %v128, %v263
  %v265 = vpop.f32.mrb[0].mxu0
  %266 = vdwg.mxu0
  %267 = vmatprep.subr.mxu0 0.0
  %v268 = vand.u32 %v15, 4294901760
  %v269 = vsub.f32 %v15, %v268
  %270 = vmatpush1.msra.mxu0 %v269
  %271 = vmatprep.subr.mxu0 0.0
  %v272 = vand.u32 %v16, 4294901760
  %v273 = vsub.f32 %v16, %v272
  %274 = vmatpush1.msra.mxu0 %v273
  %275 = vmatprep.subr.mxu0 0.0
  %v276 = vand.u32 %v17, 4294901760
  %v277 = vsub.f32 %v17, %v276
  %278 = vmatpush1.msra.mxu0 %v277
  %279 = vmatprep.subr.mxu0 0.0
  %v280 = vand.u32 %v18, 4294901760
  %v281 = vsub.f32 %v18, %v280
  %282 = vmatpush1.msra.mxu0 %v281
  %283 = vmatprep.subr.mxu0 0.0
  %v284 = vand.u32 %v19, 4294901760
  %v285 = vsub.f32 %v19, %v284
  %286 = vmatpush1.msra.mxu0 %v285
  %287 = vmatprep.subr.mxu0 0.0
  %v288 = vand.u32 %v20, 4294901760
  %v289 = vsub.f32 %v20, %v288
  %290 = vmatpush1.msra.mxu0 %v289
  %291 = vmatprep.subr.mxu0 0.0
  %v292 = vand.u32 %v21, 4294901760
  %v293 = vsub.f32 %v21, %v292
  %294 = vmatpush1.msra.mxu0 %v293
  %295 = vmatprep.subr.mxu0 0.0
  %v296 = vand.u32 %v22, 4294901760
  %v297 = vsub.f32 %v22, %v296
  %298 = vmatpush1.msra.mxu0 %v297
  %299 = vmatprep.subr.mxu0 0.0
  %v300 = vand.u32 %v23, 4294901760
  %v301 = vsub.f32 %v23, %v300
  %302 = vmatpush1.msra.mxu0 %v301
  %303 = vmatprep.subr.mxu0 0.0
  %v304 = vand.u32 %v24, 4294901760
  %v305 = vsub.f32 %v24, %v304
  %306 = vmatpush1.msra.mxu0 %v305
  %307 = vmatprep.subr.mxu0 0.0
  %v308 = vand.u32 %v25, 4294901760
  %v309 = vsub.f32 %v25, %v308
  %310 = vmatpush1.msra.mxu0 %v309
  %311 = vmatprep.subr.mxu0 0.0
  %v312 = vand.u32 %v26, 4294901760
  %v313 = vsub.f32 %v26, %v312
  %314 = vmatpush1.msra.mxu0 %v313
  %315 = vmatprep.subr.mxu0 0.0
  %v316 = vand.u32 %v41, 4294901760
  %v317 = vsub.f32 %v41, %v316
  %318 = vmatpush1.msra.mxu0 %v317
  %319 = vmatprep.subr.mxu0 0.0
  %320 = vmatpush1.msra.mxu0 0.0
  %321 = vmatprep.subr.mxu0 0.0
  %322 = vmatpush1.msra.mxu0 0.0
  %323 = vmatprep.subr.mxu0 0.0
  %324 = vmatpush1.msra.mxu0 0.0
  %325 = vmatprep.subr.mxu0 0.0
  %326 = vmatpush1.msra.mxu0 0.0
  %327 = vmatprep.subr.mxu0 0.0
  %328 = vmatpush1.msra.mxu0 0.0
  %329 = vmatprep.subr.mxu0 0.0
  %330 = vmatpush1.msra.mxu0 0.0
  %331 = vmatprep.subr.mxu0 0.0
  %332 = vmatpush1.msra.mxu0 0.0
  %333 = vmatprep.subr.mxu0 0.0
  %334 = vmatpush1.msra.mxu0 0.0
  %335 = vmatprep.subr.mxu0 0.0
  %336 = vmatpush1.msra.mxu0 0.0
  %337 = vmatprep.subr.mxu0 0.0
  %338 = vmatpush1.msra.mxu0 0.0
  %339 = vmatprep.subr.mxu0 0.0
  %340 = vmatpush1.msra.mxu0 0.0
  %341 = vmatprep.subr.mxu0 0.0
  %342 = vmatpush1.msra.mxu0 0.0
  %343 = vmatprep.subr.mxu0 0.0
  %344 = vmatpush1.msra.mxu0 0.0
  %345 = vmatprep.subr.mxu0 0.0
  %346 = vmatpush1.msra.mxu0 0.0
  %347 = vmatprep.subr.mxu0 0.0
  %348 = vmatpush1.msra.mxu0 0.0
  %349 = vmatprep.subr.mxu0 0.0
  %350 = vmatpush1.msra.mxu0 0.0
  %351 = vmatprep.subr.mxu0 0.0
  %352 = vmatpush1.msra.mxu0 0.0
  %353 = vmatprep.subr.mxu0 0.0
  %354 = vmatpush1.msra.mxu0 0.0
  %355 = vmatprep.subr.mxu0 0.0
  %356 = vmatpush1.msra.mxu0 0.0
  %357 = vmatprep.mubr.f32.mxu0 0.0
  %v358 = vand.u32 %v37, 4294901760
  %v359 = vsub.f32 %v37, %v358
  %360 = vmatmul.mubr.f32.gmra.mrb[0].mxu0 %v359
  %v361 = vpop.f32.mrb[0].mxu0
  %v362 = vadd.f32 %v264, %v361
  %v363 = vpop.f32.mrb[0].mxu0
  %364 = vdwg.mxu0
  %365 = vmatprep.subr.mxu0 0.0
  %v366 = vand.u32 %v15, 4294901760
  %367 = vmatpush1.msra.mxu0 %v366
  %368 = vmatprep.subr.mxu0 0.0
  %v369 = vand.u32 %v16, 4294901760
  %370 = vmatpush1.msra.mxu0 %v369
  %371 = vmatprep.subr.mxu0 0.0
  %v372 = vand.u32 %v17, 4294901760
  %373 = vmatpush1.msra.mxu0 %v372
  %374 = vmatprep.subr.mxu0 0.0
  %v375 = vand.u32 %v18, 4294901760
  %376 = vmatpush1.msra.mxu0 %v375
  %377 = vmatprep.subr.mxu0 0.0
  %v378 = vand.u32 %v19, 4294901760
  %379 = vmatpush1.msra.mxu0 %v378
  %380 = vmatprep.subr.mxu0 0.0
  %v381 = vand.u32 %v20, 4294901760
  %382 = vmatpush1.msra.mxu0 %v381
  %383 = vmatprep.subr.mxu0 0.0
  %v384 = vand.u32 %v21, 4294901760
  %385 = vmatpush1.msra.mxu0 %v384
  %386 = vmatprep.subr.mxu0 0.0
  %v387 = vand.u32 %v22, 4294901760
  %388 = vmatpush1.msra.mxu0 %v387
  %389 = vmatprep.subr.mxu0 0.0
  %v390 = vand.u32 %v23, 4294901760
  %391 = vmatpush1.msra.mxu0 %v390
  %392 = vmatprep.subr.mxu0 0.0
  %v393 = vand.u32 %v24, 4294901760
  %394 = vmatpush1.msra.mxu0 %v393
  %395 = vmatprep.subr.mxu0 0.0
  %v396 = vand.u32 %v25, 4294901760
  %397 = vmatpush1.msra.mxu0 %v396
  %398 = vmatprep.subr.mxu0 0.0
  %v399 = vand.u32 %v26, 4294901760
  %400 = vmatpush1.msra.mxu0 %v399
  %401 = vmatprep.subr.mxu0 0.0
  %v402 = vand.u32 %v41, 4294901760
  %403 = vmatpush1.msra.mxu0 %v402
  %404 = vmatprep.subr.mxu0 0.0
  %405 = vmatpush1.msra.mxu0 0.0
  %406 = vmatprep.subr.mxu0 0.0
  %407 = vmatpush1.msra.mxu0 0.0
  %408 = vmatprep.subr.mxu0 0.0
  %409 = vmatpush1.msra.mxu0 0.0
  %410 = vmatprep.subr.mxu0 0.0
  %411 = vmatpush1.msra.mxu0 0.0
  %412 = vmatprep.subr.mxu0 0.0
  %413 = vmatpush1.msra.mxu0 0.0
  %414 = vmatprep.subr.mxu0 0.0
  %415 = vmatpush1.msra.mxu0 0.0
  %416 = vmatprep.subr.mxu0 0.0
  %417 = vmatpush1.msra.mxu0 0.0
  %418 = vmatprep.subr.mxu0 0.0
  %419 = vmatpush1.msra.mxu0 0.0
  %420 = vmatprep.subr.mxu0 0.0
  %421 = vmatpush1.msra.mxu0 0.0
  %422 = vmatprep.subr.mxu0 0.0
  %423 = vmatpush1.msra.mxu0 0.0
  %424 = vmatprep.subr.mxu0 0.0
  %425 = vmatpush1.msra.mxu0 0.0
  %426 = vmatprep.subr.mxu0 0.0
  %427 = vmatpush1.msra.mxu0 0.0
  %428 = vmatprep.subr.mxu0 0.0
  %429 = vmatpush1.msra.mxu0 0.0
  %430 = vmatprep.subr.mxu0 0.0
  %431 = vmatpush1.msra.mxu0 0.0
  %432 = vmatprep.subr.mxu0 0.0
  %433 = vmatpush1.msra.mxu0 0.0
  %434 = vmatprep.subr.mxu0 0.0
  %435 = vmatpush1.msra.mxu0 0.0
  %436 = vmatprep.subr.mxu0 0.0
  %437 = vmatpush1.msra.mxu0 0.0
  %438 = vmatprep.subr.mxu0 0.0
  %439 = vmatpush1.msra.mxu0 0.0
  %440 = vmatprep.subr.mxu0 0.0
  %441 = vmatpush1.msra.mxu0 0.0
  %442 = vmatprep.mubr.f32.mxu0 0.0
  %v443 = vand.u32 %v37, 4294901760
  %v444 = vsub.f32 %v37, %v443
  %v445 = vand.u32 %v444, 4294901760
  %446 = vmatmul.mubr.f32.gmra.mrb[0].mxu0 %v445
  %v447 = vpop.f32.mrb[0].mxu0
  %v448 = vadd.f32 %v362, %v447
  %v449 = vpop.f32.mrb[0].mxu0
  %450 = vdwg.mxu0
  %451 = vmatprep.subr.mxu0 0.0
  %v452 = vand.u32 %v15, 4294901760
  %v453 = vsub.f32 %v15, %v452
  %v454 = vand.u32 %v453, 4294901760
  %455 = vmatpush1.msra.mxu0 %v454
  %456 = vmatprep.subr.mxu0 0.0
  %v457 = vand.u32 %v16, 4294901760
  %v458 = vsub.f32 %v16, %v457
  %v459 = vand.u32 %v458, 4294901760
  %460 = vmatpush1.msra.mxu0 %v459
  %461 = vmatprep.subr.mxu0 0.0
  %v462 = vand.u32 %v17, 4294901760
  %v463 = vsub.f32 %v17, %v462
  %v464 = vand.u32 %v463, 4294901760
  %465 = vmatpush1.msra.mxu0 %v464
  %466 = vmatprep.subr.mxu0 0.0
  %v467 = vand.u32 %v18, 4294901760
  %v468 = vsub.f32 %v18, %v467
  %v469 = vand.u32 %v468, 4294901760
  %470 = vmatpush1.msra.mxu0 %v469
  %471 = vmatprep.subr.mxu0 0.0
  %v472 = vand.u32 %v19, 4294901760
  %v473 = vsub.f32 %v19, %v472
  %v474 = vand.u32 %v473, 4294901760
  %475 = vmatpush1.msra.mxu0 %v474
  %476 = vmatprep.subr.mxu0 0.0
  %v477 = vand.u32 %v20, 4294901760
  %v478 = vsub.f32 %v20, %v477
  %v479 = vand.u32 %v478, 4294901760
  %480 = vmatpush1.msra.mxu0 %v479
  %481 = vmatprep.subr.mxu0 0.0
  %v482 = vand.u32 %v21, 4294901760
  %v483 = vsub.f32 %v21, %v482
  %v484 = vand.u32 %v483, 4294901760
  %485 = vmatpush1.msra.mxu0 %v484
  %486 = vmatprep.subr.mxu0 0.0
  %v487 = vand.u32 %v22, 4294901760
  %v488 = vsub.f32 %v22, %v487
  %v489 = vand.u32 %v488, 4294901760
  %490 = vmatpush1.msra.mxu0 %v489
  %491 = vmatprep.subr.mxu0 0.0
  %v492 = vand.u32 %v23, 4294901760
  %v493 = vsub.f32 %v23, %v492
  %v494 = vand.u32 %v493, 4294901760
  %495 = vmatpush1.msra.mxu0 %v494
  %496 = vmatprep.subr.mxu0 0.0
  %v497 = vand.u32 %v24, 4294901760
  %v498 = vsub.f32 %v24, %v497
  %v499 = vand.u32 %v498, 4294901760
  %500 = vmatpush1.msra.mxu0 %v499
  %501 = vmatprep.subr.mxu0 0.0
  %v502 = vand.u32 %v25, 4294901760
  %v503 = vsub.f32 %v25, %v502
  %v504 = vand.u32 %v503, 4294901760
  %505 = vmatpush1.msra.mxu0 %v504
  %506 = vmatprep.subr.mxu0 0.0
  %v507 = vand.u32 %v26, 4294901760
  %v508 = vsub.f32 %v26, %v507
  %v509 = vand.u32 %v508, 4294901760
  %510 = vmatpush1.msra.mxu0 %v509
  %511 = vmatprep.subr.mxu0 0.0
  %v512 = vand.u32 %v41, 4294901760
  %v513 = vsub.f32 %v41, %v512
  %v514 = vand.u32 %v513, 4294901760
  %515 = vmatpush1.msra.mxu0 %v514
  %516 = vmatprep.subr.mxu0 0.0
  %517 = vmatpush1.msra.mxu0 0.0
  %518 = vmatprep.subr.mxu0 0.0
  %519 = vmatpush1.msra.mxu0 0.0
  %520 = vmatprep.subr.mxu0 0.0
  %521 = vmatpush1.msra.mxu0 0.0
  %522 = vmatprep.subr.mxu0 0.0
  %523 = vmatpush1.msra.mxu0 0.0
  %524 = vmatprep.subr.mxu0 0.0
  %525 = vmatpush1.msra.mxu0 0.0
  %526 = vmatprep.subr.mxu0 0.0
  %527 = vmatpush1.msra.mxu0 0.0
  %528 = vmatprep.subr.mxu0 0.0
  %529 = vmatpush1.msra.mxu0 0.0
  %530 = vmatprep.subr.mxu0 0.0
  %531 = vmatpush1.msra.mxu0 0.0
  %532 = vmatprep.subr.mxu0 0.0
  %533 = vmatpush1.msra.mxu0 0.0
  %534 = vmatprep.subr.mxu0 0.0
  %535 = vmatpush1.msra.mxu0 0.0
  %536 = vmatprep.subr.mxu0 0.0
  %537 = vmatpush1.msra.mxu0 0.0
  %538 = vmatprep.subr.mxu0 0.0
  %539 = vmatpush1.msra.mxu0 0.0
  %540 = vmatprep.subr.mxu0 0.0
  %541 = vmatpush1.msra.mxu0 0.0
  %542 = vmatprep.subr.mxu0 0.0
  %543 = vmatpush1.msra.mxu0 0.0
  %544 = vmatprep.subr.mxu0 0.0
  %545 = vmatpush1.msra.mxu0 0.0
  %546 = vmatprep.subr.mxu0 0.0
  %547 = vmatpush1.msra.mxu0 0.0
  %548 = vmatprep.subr.mxu0 0.0
  %549 = vmatpush1.msra.mxu0 0.0
  %550 = vmatprep.subr.mxu0 0.0
  %551 = vmatpush1.msra.mxu0 0.0
  %552 = vmatprep.subr.mxu0 0.0
  %553 = vmatpush1.msra.mxu0 0.0
  %554 = vmatprep.mubr.f32.mxu0 0.0
  %v555 = vand.u32 %v37, 4294901760
  %556 = vmatmul.mubr.f32.gmra.mrb[0].mxu0 %v555
  %v557 = vpop.f32.mrb[0].mxu0
  %v558 = vadd.f32 %v448, %v557
  %v559 = vpop.f32.mrb[0].mxu0
  %560 = vdwg.mxu0
  %561 = vmatprep.subr.mxu0 0.0
  %v562 = vand.u32 %v15, 4294901760
  %563 = vmatpush1.msra.mxu0 %v562
  %564 = vmatprep.subr.mxu0 0.0
  %v565 = vand.u32 %v16, 4294901760
  %566 = vmatpush1.msra.mxu0 %v565
  %567 = vmatprep.subr.mxu0 0.0
  %v568 = vand.u32 %v17, 4294901760
  %569 = vmatpush1.msra.mxu0 %v568
  %570 = vmatprep.subr.mxu0 0.0
  %v571 = vand.u32 %v18, 4294901760
  %572 = vmatpush1.msra.mxu0 %v571
  %573 = vmatprep.subr.mxu0 0.0
  %v574 = vand.u32 %v19, 4294901760
  %575 = vmatpush1.msra.mxu0 %v574
  %576 = vmatprep.subr.mxu0 0.0
  %v577 = vand.u32 %v20, 4294901760
  %578 = vmatpush1.msra.mxu0 %v577
  %579 = vmatprep.subr.mxu0 0.0
  %v580 = vand.u32 %v21, 4294901760
  %581 = vmatpush1.msra.mxu0 %v580
  %582 = vmatprep.subr.mxu0 0.0
  %v583 = vand.u32 %v22, 4294901760
  %584 = vmatpush1.msra.mxu0 %v583
  %585 = vmatprep.subr.mxu0 0.0
  %v586 = vand.u32 %v23, 4294901760
  %587 = vmatpush1.msra.mxu0 %v586
  %588 = vmatprep.subr.mxu0 0.0
  %v589 = vand.u32 %v24, 4294901760
  %590 = vmatpush1.msra.mxu0 %v589
  %591 = vmatprep.subr.mxu0 0.0
  %v592 = vand.u32 %v25, 4294901760
  %593 = vmatpush1.msra.mxu0 %v592
  %594 = vmatprep.subr.mxu0 0.0
  %v595 = vand.u32 %v26, 4294901760
  %596 = vmatpush1.msra.mxu0 %v595
  %597 = vmatprep.subr.mxu0 0.0
  %v598 = vand.u32 %v41, 4294901760
  %599 = vmatpush1.msra.mxu0 %v598
  %600 = vmatprep.subr.mxu0 0.0
  %601 = vmatpush1.msra.mxu0 0.0
  %602 = vmatprep.subr.mxu0 0.0
  %603 = vmatpush1.msra.mxu0 0.0
  %604 = vmatprep.subr.mxu0 0.0
  %605 = vmatpush1.msra.mxu0 0.0
  %606 = vmatprep.subr.mxu0 0.0
  %607 = vmatpush1.msra.mxu0 0.0
  %608 = vmatprep.subr.mxu0 0.0
  %609 = vmatpush1.msra.mxu0 0.0
  %610 = vmatprep.subr.mxu0 0.0
  %611 = vmatpush1.msra.mxu0 0.0
  %612 = vmatprep.subr.mxu0 0.0
  %613 = vmatpush1.msra.mxu0 0.0
  %614 = vmatprep.subr.mxu0 0.0
  %615 = vmatpush1.msra.mxu0 0.0
  %616 = vmatprep.subr.mxu0 0.0
  %617 = vmatpush1.msra.mxu0 0.0
  %618 = vmatprep.subr.mxu0 0.0
  %619 = vmatpush1.msra.mxu0 0.0
  %620 = vmatprep.subr.mxu0 0.0
  %621 = vmatpush1.msra.mxu0 0.0
  %622 = vmatprep.subr.mxu0 0.0
  %623 = vmatpush1.msra.mxu0 0.0
  %624 = vmatprep.subr.mxu0 0.0
  %625 = vmatpush1.msra.mxu0 0.0
  %626 = vmatprep.subr.mxu0 0.0
  %627 = vmatpush1.msra.mxu0 0.0
  %628 = vmatprep.subr.mxu0 0.0
  %629 = vmatpush1.msra.mxu0 0.0
  %630 = vmatprep.subr.mxu0 0.0
  %631 = vmatpush1.msra.mxu0 0.0
  %632 = vmatprep.subr.mxu0 0.0
  %633 = vmatpush1.msra.mxu0 0.0
  %634 = vmatprep.subr.mxu0 0.0
  %635 = vmatpush1.msra.mxu0 0.0
  %636 = vmatprep.subr.mxu0 0.0
  %637 = vmatpush1.msra.mxu0 0.0
  %638 = vmatprep.mubr.f32.mxu0 0.0
  %v639 = vand.u32 %v37, 4294901760
  %640 = vmatmul.mubr.f32.gmra.mrb[0].mxu0 %v639
  %v641 = vpop.f32.mrb[0].mxu0
  %v642 = vadd.f32 %v558, %v641
  %v643 = vpop.f32.mrb[0].mxu0
  %644 = vdwg.mxu0
  %645 = vst [vmem:[%s3] sm:$0xff] %v642
  // Predicated region
  $region14: #{epses_plus_linear_forward.5} parent=0 // pred_check
    _
  $region15: #{epses_plus_linear_forward.5} parent=0 // pred_check_branch
    %647 = sbr.rel (0) target = $region17
  $region16: #{epses_plus_linear_forward.5} parent=0 // pred_region
    _
  $region17: #{epses_plus_linear_forward.5} parent=0 // pred_fallthru
    _
  // Predicated region
  $region18: #{epses_plus_linear_forward.5} parent=0 // pred_check
    _
  $region19: #{epses_plus_linear_forward.5} parent=0 // pred_check_branch
    %649 = sbr.rel (0) target = $region21
  $region20: #{epses_plus_linear_forward.5} parent=0 // pred_region
    _
  $region21: #{epses_plus_linear_forward.5} parent=0 // pred_fallthru
    _

// kernel: epses_plus_linear_forward.4
$region0: #{epses_plus_linear_forward.4}
  #allocation0 [shape = 'u32[]', space=smem, size = 0x4, offset = 0x4, fixed_abs, tag = 'smem constant byte address 0x4 - core index']
  #allocation1 [shape = 'u32[144,128]{1,0:T(1,128)}', space=vmem, size = 0x12000, scoped, tag = 'internal scratch']
  %s0 = inlined_call_operand.vmem [shape: f32[4,4,128], index: 0, kind: input, shape index: {}]
  %s1 = inlined_call_operand.vmem [shape: f32[1,4,256], index: 1, kind: input, shape index: {}]
  %s2 = inlined_call_operand.vmem [shape: f32[4,128], index: 2, kind: output, shape index: {}]
  %s3 = sld [smem:[#allocation0]]
  $region18: #{epses_plus_linear_forward.4} parent=0
    _
  %s5 = ssub.s32 1, %s3
  %s6 = scalar_select 0, %s5, %s3
  // Predicated region
  $region2: #{epses_plus_linear_forward.4} parent=0 // pred_check
    _
  $region3: #{epses_plus_linear_forward.4} parent=0 // pred_check_branch
    %8 = sbr.rel (0) target = $region5
  $region4: #{epses_plus_linear_forward.4} parent=0 // pred_region
    _
  $region5: #{epses_plus_linear_forward.4} parent=0 // pred_fallthru
    _
  // Predicated region
  $region6: #{epses_plus_linear_forward.4} parent=0 // pred_check
    _
  $region7: #{epses_plus_linear_forward.4} parent=0 // pred_check_branch
    %10 = sbr.rel (0) target = $region9
  $region8: #{epses_plus_linear_forward.4} parent=0 // pred_region
    _
  $region9: #{epses_plus_linear_forward.4} parent=0 // pred_fallthru
    _
  %s11 = scalar_lea.vmem %s0, 8
  %v12 = vld [vmem:[%s11] sm:$0xf]
  %s13 = scalar_lea.vmem %s0, 12
  %v14 = vld [vmem:[%s13] sm:$0xf]
  %v15 = vmul.f32 %v12, %v14
  %v17 = vrot.slane %v14, 1
  %v19 = vmul.f32 %v12, %v17
  %v20 = vrot.slane %v14, 2
  %v22 = vmul.f32 %v12, %v20
  %v23 = vrot.slane %v14, 3
  %v25 = vmul.f32 %v12, %v23
  %v26 = vrot.slane %v14, 7
  %v28 = vmul.f32 %v12, %v26
  %v29 = vrot.slane %v14, 6
  %v31 = vmul.f32 %v12, %v29
  %v32 = vrot.slane %v14, 5
  %v34 = vmul.f32 %v12, %v32
  %v36 = vrot.slane %v19, 7
  %v39 = vrot.slane %v22, 6
  %v42 = vrot.slane %v25, 5
  %v45 = vrot.slane %v28, 5
  %v48 = vrot.slane %v15, 4
  %v50 = vrot.slane %v19, 3
  %v52 = vrot.slane %v22, 2
  %v55 = vrot.slane %v31, 2
  %v57 = vrot.slane %v28, 1
  %v60 = vrot.slane %v34, 7
  %v62 = vrot.slane %v31, 6
  %vm64 = vcmask 1040384
  %v65 = vsel %vm64, %v15, %v36
  %vm66 = vcmask 1041408
  %v67 = vsel %vm66, %v65, %v39
  %vm68 = vcmask 1042432
  %v69 = vsel %vm68, %v67, %v42
  %vm70 = vcmask 1043456
  %v71 = vsel %vm70, %v69, %v45
  %vm72 = vcmask 1044480
  %v73 = vsel %vm72, %v71, %v48
  %vm74 = vcmask 1045504
  %v75 = vsel %vm74, %v73, %v50
  %vm76 = vcmask 1046528
  %v77 = vsel %vm76, %v75, %v52
  %v78 = vsel %vm64, %v55, %v57
  %v79 = vsel %vm66, %v78, %v15
  %v80 = vsel %vm68, %v79, %v36
  %v81 = vsel %vm70, %v80, %v60
  %v82 = vsel %vm72, %v81, %v62
  %v83 = vsel %vm74, %v82, %v45
  %v84 = vsel %vm76, %v83, %v48
  %s85 = scalar_lea.vmem %s0, 4
  %v86 = vld [vmem:[%s85] sm:$0xf]
  %v87 = vlaneseq
  %v88 = vshrl.u32 %v87, 7
  %v89 = vsub.s32 0, %v88
  %v90 = vrot.slane %v86, %v89
  %v91 = vmul.f32 %v90, %v77
  %v92 = vmul.f32 %v90, %v84
  %v93 = vlaneseq
  %v94 = vshrl.u32 %v93, 7
  %v95 = vsub.s32 1, %v94
  %v96 = vrot.slane %v86, %v95
  %v97 = vmul.f32 %v96, %v77
  %v98 = vmul.f32 %v96, %v84
  %v99 = vlaneseq
  %v100 = vshrl.u32 %v99, 7
  %v101 = vsub.s32 2, %v100
  %v102 = vrot.slane %v86, %v101
  %v103 = vmul.f32 %v102, %v77
  %v104 = vmul.f32 %v102, %v84
  %v105 = vlaneseq
  %v106 = vshrl.u32 %v105, 7
  %v107 = vsub.s32 3, %v106
  %v108 = vrot.slane %v86, %v107
  %v109 = vmul.f32 %v108, %v77
  %v110 = vmul.f32 %v108, %v84
  %v111 = vld [vmem:[%s0] sm:$0xf]
  %v112 = vlaneseq
  %v113 = vshrl.u32 %v112, 7
  %v114 = vsub.s32 0, %v113
  %v115 = vrot.slane %v111, %v114
  %v116 = vmul.f32 %v115, %v91
  %v117 = vmul.f32 %v115, %v92
  %v118 = vmul.f32 %v115, %v97
  %v119 = vmul.f32 %v115, %v98
  %v120 = vmul.f32 %v115, %v103
  %v121 = vmul.f32 %v115, %v104
  %v122 = vmul.f32 %v115, %v109
  %v123 = vmul.f32 %v115, %v110
  %v124 = vlaneseq
  %v125 = vshrl.u32 %v124, 7
  %v126 = vsub.s32 1, %v125
  %v127 = vrot.slane %v111, %v126
  %v128 = vmul.f32 %v127, %v91
  %v129 = vmul.f32 %v127, %v92
  %v130 = vmul.f32 %v127, %v97
  %v131 = vmul.f32 %v127, %v98
  %v132 = vmul.f32 %v127, %v103
  %v133 = vmul.f32 %v127, %v104
  %v134 = vmul.f32 %v127, %v109
  %v135 = vmul.f32 %v127, %v110
  %v136 = vlaneseq
  %v137 = vshrl.u32 %v136, 7
  %v138 = vsub.s32 2, %v137
  %v139 = vrot.slane %v111, %v138
  %v140 = vmul.f32 %v139, %v91
  %v141 = vmul.f32 %v139, %v92
  %v142 = vmul.f32 %v139, %v97
  %v143 = vmul.f32 %v139, %v98
  %v144 = vmul.f32 %v139, %v103
  %v145 = vmul.f32 %v139, %v104
  %v146 = vmul.f32 %v139, %v109
  %v147 = vmul.f32 %v139, %v110
  %v148 = vlaneseq
  %v149 = vshrl.u32 %v148, 7
  %v150 = vsub.s32 3, %v149
  %v151 = vrot.slane %v111, %v150
  %v152 = vmul.f32 %v151, %v91
  %v153 = vmul.f32 %v151, %v92
  %v154 = vmul.f32 %v151, %v97
  %v155 = vmul.f32 %v151, %v98
  %v156 = vmul.f32 %v151, %v103
  %v157 = vmul.f32 %v151, %v104
  %v158 = vmul.f32 %v151, %v109
  %v159 = vmul.f32 %v151, %v110
  %v160 = vld [vmem:[%s1] sm:$0xff]
  %v162 = vcombine.high %v160, %v160
  %164 = vmatprep.subr.mxu0 0.0
  %v165 = vand.u32 %v116, 4294901760
  %166 = vmatpush1.msra.mxu0 %v165
  %167 = vmatprep.subr.mxu0 0.0
  %v168 = vand.u32 %v117, 4294901760
  %169 = vmatpush1.msra.mxu0 %v168
  %170 = vmatprep.subr.mxu0 0.0
  %v171 = vand.u32 %v118, 4294901760
  %172 = vmatpush1.msra.mxu0 %v171
  %173 = vmatprep.subr.mxu0 0.0
  %v174 = vand.u32 %v119, 4294901760
  %175 = vmatpush1.msra.mxu0 %v174
  %176 = vmatprep.subr.mxu0 0.0
  %v177 = vand.u32 %v120, 4294901760
  %178 = vmatpush1.msra.mxu0 %v177
  %179 = vmatprep.subr.mxu0 0.0
  %v180 = vand.u32 %v121, 4294901760
  %181 = vmatpush1.msra.mxu0 %v180
  %182 = vmatprep.subr.mxu0 0.0
  %v183 = vand.u32 %v122, 4294901760
  %184 = vmatpush1.msra.mxu0 %v183
  %185 = vmatprep.subr.mxu0 0.0
  %v186 = vand.u32 %v123, 4294901760
  %187 = vmatpush1.msra.mxu0 %v186
  %188 = vmatprep.subr.mxu0 0.0
  %v189 = vand.u32 %v128, 4294901760
  %190 = vmatpush1.msra.mxu0 %v189
  %191 = vmatprep.subr.mxu0 0.0
  %v192 = vand.u32 %v129, 4294901760
  %193 = vmatpush1.msra.mxu0 %v192
  %194 = vmatprep.subr.mxu0 0.0
  %v195 = vand.u32 %v130, 4294901760
  %196 = vmatpush1.msra.mxu0 %v195
  %197 = vmatprep.subr.mxu0 0.0
  %v198 = vand.u32 %v131, 4294901760
  %199 = vmatpush1.msra.mxu0 %v198
  %200 = vmatprep.subr.mxu0 0.0
  %v201 = vand.u32 %v132, 4294901760
  %202 = vmatpush1.msra.mxu0 %v201
  %203 = vmatprep.subr.mxu0 0.0
  %v204 = vand.u32 %v133, 4294901760
  %205 = vmatpush1.msra.mxu0 %v204
  %206 = vmatprep.subr.mxu0 0.0
  %v207 = vand.u32 %v134, 4294901760
  %208 = vmatpush1.msra.mxu0 %v207
  %209 = vmatprep.subr.mxu0 0.0
  %v210 = vand.u32 %v135, 4294901760
  %211 = vmatpush1.msra.mxu0 %v210
  %212 = vmatprep.subr.mxu0 0.0
  %v213 = vand.u32 %v140, 4294901760
  %214 = vmatpush1.msra.mxu0 %v213
  %215 = vmatprep.subr.mxu0 0.0
  %v216 = vand.u32 %v141, 4294901760
  %217 = vmatpush1.msra.mxu0 %v216
  %218 = vmatprep.subr.mxu0 0.0
  %v219 = vand.u32 %v142, 4294901760
  %220 = vmatpush1.msra.mxu0 %v219
  %221 = vmatprep.subr.mxu0 0.0
  %v222 = vand.u32 %v143, 4294901760
  %223 = vmatpush1.msra.mxu0 %v222
  %224 = vmatprep.subr.mxu0 0.0
  %v225 = vand.u32 %v144, 4294901760
  %226 = vmatpush1.msra.mxu0 %v225
  %227 = vmatprep.subr.mxu0 0.0
  %v228 = vand.u32 %v145, 4294901760
  %229 = vmatpush1.msra.mxu0 %v228
  %230 = vmatprep.subr.mxu0 0.0
  %v231 = vand.u32 %v146, 4294901760
  %232 = vmatpush1.msra.mxu0 %v231
  %233 = vmatprep.subr.mxu0 0.0
  %v234 = vand.u32 %v147, 4294901760
  %235 = vmatpush1.msra.mxu0 %v234
  %236 = vmatprep.subr.mxu0 0.0
  %v237 = vand.u32 %v152, 4294901760
  %238 = vmatpush1.msra.mxu0 %v237
  %239 = vmatprep.subr.mxu0 0.0
  %v240 = vand.u32 %v153, 4294901760
  %241 = vmatpush1.msra.mxu0 %v240
  %242 = vmatprep.subr.mxu0 0.0
  %v243 = vand.u32 %v154, 4294901760
  %244 = vmatpush1.msra.mxu0 %v243
  %245 = vmatprep.subr.mxu0 0.0
  %v246 = vand.u32 %v155, 4294901760
  %247 = vmatpush1.msra.mxu0 %v246
  %248 = vmatprep.subr.mxu0 0.0
  %v249 = vand.u32 %v156, 4294901760
  %250 = vmatpush1.msra.mxu0 %v249
  %251 = vmatprep.subr.mxu0 0.0
  %v252 = vand.u32 %v157, 4294901760
  %253 = vmatpush1.msra.mxu0 %v252
  %254 = vmatprep.subr.mxu0 0.0
  %v255 = vand.u32 %v158, 4294901760
  %256 = vmatpush1.msra.mxu0 %v255
  %257 = vmatprep.subr.mxu0 0.0
  %v258 = vand.u32 %v159, 4294901760
  %259 = vmatpush1.msra.mxu0 %v258
  %v260 = vand.u32 %v162, 4294901760
  %v261 = vsub.f32 %v162, %v260
  %v262 = vand.u32 %v261, 4294901760
  %v263 = vsub.f32 %v261, %v262
  %v264 = vand.u32 %v263, 4294901760
  %265 = vmatprep.mubr.f32.mxu0 %v264
  %v266 = vand.u32 %v160, 4294901760
  %v267 = vsub.f32 %v160, %v266
  %v268 = vand.u32 %v267, 4294901760
  %v269 = vsub.f32 %v267, %v268
  %v270 = vand.u32 %v269, 4294901760
  %271 = vmatmul.mubr.f32.gmra.mrb[0].mxu0 %v270
  %v272 = vpop.f32.mrb[0].mxu0
  %v273 = vadd.f32 0.0, %v272
  %v274 = vpop.f32.mrb[0].mxu0
  %275 = vdwg.mxu0
  %276 = vmatprep.subr.mxu0 0.0
  %v277 = vand.u32 %v116, 4294901760
  %v278 = vsub.f32 %v116, %v277
  %v279 = vand.u32 %v278, 4294901760
  %v280 = vsub.f32 %v278, %v279
  %v281 = vand.u32 %v280, 4294901760
  %282 = vmatpush1.msra.mxu0 %v281
  %283 = vmatprep.subr.mxu0 0.0
  %v284 = vand.u32 %v117, 4294901760
  %v285 = vsub.f32 %v117, %v284
  %v286 = vand.u32 %v285, 4294901760
  %v287 = vsub.f32 %v285, %v286
  %v288 = vand.u32 %v287, 4294901760
  %289 = vmatpush1.msra.mxu0 %v288
  %290 = vmatprep.subr.mxu0 0.0
  %v291 = vand.u32 %v118, 4294901760
  %v292 = vsub.f32 %v118, %v291
  %v293 = vand.u32 %v292, 4294901760
  %v294 = vsub.f32 %v292, %v293
  %v295 = vand.u32 %v294, 4294901760
  %296 = vmatpush1.msra.mxu0 %v295
  %297 = vmatprep.subr.mxu0 0.0
  %v298 = vand.u32 %v119, 4294901760
  %v299 = vsub.f32 %v119, %v298
  %v300 = vand.u32 %v299, 4294901760
  %v301 = vsub.f32 %v299, %v300
  %v302 = vand.u32 %v301, 4294901760
  %303 = vmatpush1.msra.mxu0 %v302
  %304 = vmatprep.subr.mxu0 0.0
  %v305 = vand.u32 %v120, 4294901760
  %v306 = vsub.f32 %v120, %v305
  %v307 = vand.u32 %v306, 4294901760
  %v308 = vsub.f32 %v306, %v307
  %v309 = vand.u32 %v308, 4294901760
  %310 = vmatpush1.msra.mxu0 %v309
  %311 = vmatprep.subr.mxu0 0.0
  %v312 = vand.u32 %v121, 4294901760
  %v313 = vsub.f32 %v121, %v312
  %v314 = vand.u32 %v313, 4294901760
  %v315 = vsub.f32 %v313, %v314
  %v316 = vand.u32 %v315, 4294901760
  %317 = vmatpush1.msra.mxu0 %v316
  %318 = vmatprep.subr.mxu0 0.0
  %v319 = vand.u32 %v122, 4294901760
  %v320 = vsub.f32 %v122, %v319
  %v321 = vand.u32 %v320, 4294901760
  %v322 = vsub.f32 %v320, %v321
  %v323 = vand.u32 %v322, 4294901760
  %324 = vmatpush1.msra.mxu0 %v323
  %325 = vmatprep.subr.mxu0 0.0
  %v326 = vand.u32 %v123, 4294901760
  %v327 = vsub.f32 %v123, %v326
  %v328 = vand.u32 %v327, 4294901760
  %v329 = vsub.f32 %v327, %v328
  %v330 = vand.u32 %v329, 4294901760
  %331 = vmatpush1.msra.mxu0 %v330
  %332 = vmatprep.subr.mxu0 0.0
  %v333 = vand.u32 %v128, 4294901760
  %v334 = vsub.f32 %v128, %v333
  %v335 = vand.u32 %v334, 4294901760
  %v336 = vsub.f32 %v334, %v335
  %v337 = vand.u32 %v336, 4294901760
  %338 = vmatpush1.msra.mxu0 %v337
  %339 = vmatprep.subr.mxu0 0.0
  %v340 = vand.u32 %v129, 4294901760
  %v341 = vsub.f32 %v129, %v340
  %v342 = vand.u32 %v341, 4294901760
  %v343 = vsub.f32 %v341, %v342
  %v344 = vand.u32 %v343, 4294901760
  %345 = vmatpush1.msra.mxu0 %v344
  %346 = vmatprep.subr.mxu0 0.0
  %v347 = vand.u32 %v130, 4294901760
  %v348 = vsub.f32 %v130, %v347
  %v349 = vand.u32 %v348, 4294901760
  %v350 = vsub.f32 %v348, %v349
  %v351 = vand.u32 %v350, 4294901760
  %352 = vmatpush1.msra.mxu0 %v351
  %353 = vmatprep.subr.mxu0 0.0
  %v354 = vand.u32 %v131, 4294901760
  %v355 = vsub.f32 %v131, %v354
  %v356 = vand.u32 %v355, 4294901760
  %v357 = vsub.f32 %v355, %v356
  %v358 = vand.u32 %v357, 4294901760
  %359 = vmatpush1.msra.mxu0 %v358
  %360 = vmatprep.subr.mxu0 0.0
  %v361 = vand.u32 %v132, 4294901760
  %v362 = vsub.f32 %v132, %v361
  %v363 = vand.u32 %v362, 4294901760
  %v364 = vsub.f32 %v362, %v363
  %v365 = vand.u32 %v364, 4294901760
  %366 = vmatpush1.msra.mxu0 %v365
  %367 = vmatprep.subr.mxu0 0.0
  %v368 = vand.u32 %v133, 4294901760
  %v369 = vsub.f32 %v133, %v368
  %v370 = vand.u32 %v369, 4294901760
  %v371 = vsub.f32 %v369, %v370
  %v372 = vand.u32 %v371, 4294901760
  %373 = vmatpush1.msra.mxu0 %v372
  %374 = vmatprep.subr.mxu0 0.0
  %v375 = vand.u32 %v134, 4294901760
  %v376 = vsub.f32 %v134, %v375
  %v377 = vand.u32 %v376, 4294901760
  %v378 = vsub.f32 %v376, %v377
  %v379 = vand.u32 %v378, 4294901760
  %380 = vmatpush1.msra.mxu0 %v379
  %381 = vmatprep.subr.mxu0 0.0
  %v382 = vand.u32 %v135, 4294901760
  %v383 = vsub.f32 %v135, %v382
  %v384 = vand.u32 %v383, 4294901760
  %v385 = vsub.f32 %v383, %v384
  %v386 = vand.u32 %v385, 4294901760
  %387 = vmatpush1.msra.mxu0 %v386
  %388 = vmatprep.subr.mxu0 0.0
  %v389 = vand.u32 %v140, 4294901760
  %v390 = vsub.f32 %v140, %v389
  %v391 = vand.u32 %v390, 4294901760
  %v392 = vsub.f32 %v390, %v391
  %v393 = vand.u32 %v392, 4294901760
  %394 = vmatpush1.msra.mxu0 %v393
  %395 = vmatprep.subr.mxu0 0.0
  %v396 = vand.u32 %v141, 4294901760
  %v397 = vsub.f32 %v141, %v396
  %v398 = vand.u32 %v397, 4294901760
  %v399 = vsub.f32 %v397, %v398
  %v400 = vand.u32 %v399, 4294901760
  %401 = vmatpush1.msra.mxu0 %v400
  %402 = vmatprep.subr.mxu0 0.0
  %v403 = vand.u32 %v142, 4294901760
  %v404 = vsub.f32 %v142, %v403
  %v405 = vand.u32 %v404, 4294901760
  %v406 = vsub.f32 %v404, %v405
  %v407 = vand.u32 %v406, 4294901760
  %408 = vmatpush1.msra.mxu0 %v407
  %409 = vmatprep.subr.mxu0 0.0
  %v410 = vand.u32 %v143, 4294901760
  %v411 = vsub.f32 %v143, %v410
  %v412 = vand.u32 %v411, 4294901760
  %v413 = vsub.f32 %v411, %v412
  %v414 = vand.u32 %v413, 4294901760
  %415 = vmatpush1.msra.mxu0 %v414
  %416 = vmatprep.subr.mxu0 0.0
  %v417 = vand.u32 %v144, 4294901760
  %v418 = vsub.f32 %v144, %v417
  %v419 = vand.u32 %v418, 4294901760
  %v420 = vsub.f32 %v418, %v419
  %v421 = vand.u32 %v420, 4294901760
  %422 = vmatpush1.msra.mxu0 %v421
  %423 = vmatprep.subr.mxu0 0.0
  %v424 = vand.u32 %v145, 4294901760
  %v425 = vsub.f32 %v145, %v424
  %v426 = vand.u32 %v425, 4294901760
  %v427 = vsub.f32 %v425, %v426
  %v428 = vand.u32 %v427, 4294901760
  %429 = vmatpush1.msra.mxu0 %v428
  %430 = vmatprep.subr.mxu0 0.0
  %v431 = vand.u32 %v146, 4294901760
  %v432 = vsub.f32 %v146, %v431
  %v433 = vand.u32 %v432, 4294901760
  %v434 = vsub.f32 %v432, %v433
  %v435 = vand.u32 %v434, 4294901760
  %436 = vmatpush1.msra.mxu0 %v435
  %437 = vmatprep.subr.mxu0 0.0
  %v438 = vand.u32 %v147, 4294901760
  %v439 = vsub.f32 %v147, %v438
  %v440 = vand.u32 %v439, 4294901760
  %v441 = vsub.f32 %v439, %v440
  %v442 = vand.u32 %v441, 4294901760
  %443 = vmatpush1.msra.mxu0 %v442
  %444 = vmatprep.subr.mxu0 0.0
  %v445 = vand.u32 %v152, 4294901760
  %v446 = vsub.f32 %v152, %v445
  %v447 = vand.u32 %v446, 4294901760
  %v448 = vsub.f32 %v446, %v447
  %v449 = vand.u32 %v448, 4294901760
  %450 = vmatpush1.msra.mxu0 %v449
  %451 = vmatprep.subr.mxu0 0.0
  %v452 = vand.u32 %v153, 4294901760
  %v453 = vsub.f32 %v153, %v452
  %v454 = vand.u32 %v453, 4294901760
  %v455 = vsub.f32 %v453, %v454
  %v456 = vand.u32 %v455, 4294901760
  %457 = vmatpush1.msra.mxu0 %v456
  %458 = vmatprep.subr.mxu0 0.0
  %v459 = vand.u32 %v154, 4294901760
  %v460 = vsub.f32 %v154, %v459
  %v461 = vand.u32 %v460, 4294901760
  %v462 = vsub.f32 %v460, %v461
  %v463 = vand.u32 %v462, 4294901760
  %464 = vmatpush1.msra.mxu0 %v463
  %465 = vmatprep.subr.mxu0 0.0
  %v466 = vand.u32 %v155, 4294901760
  %v467 = vsub.f32 %v155, %v466
  %v468 = vand.u32 %v467, 4294901760
  %v469 = vsub.f32 %v467, %v468
  %v470 = vand.u32 %v469, 4294901760
  %471 = vmatpush1.msra.mxu0 %v470
  %472 = vmatprep.subr.mxu0 0.0
  %v473 = vand.u32 %v156, 4294901760
  %v474 = vsub.f32 %v156, %v473
  %v475 = vand.u32 %v474, 4294901760
  %v476 = vsub.f32 %v474, %v475
  %v477 = vand.u32 %v476, 4294901760
  %478 = vmatpush1.msra.mxu0 %v477
  %479 = vmatprep.subr.mxu0 0.0
  %v480 = vand.u32 %v157, 4294901760
  %v481 = vsub.f32 %v157, %v480
  %v482 = vand.u32 %v481, 4294901760
  %v483 = vsub.f32 %v481, %v482
  %v484 = vand.u32 %v483, 4294901760
  %485 = vmatpush1.msra.mxu0 %v484
  %486 = vmatprep.subr.mxu0 0.0
  %v487 = vand.u32 %v158, 4294901760
  %v488 = vsub.f32 %v158, %v487
  %v489 = vand.u32 %v488, 4294901760
  %v490 = vsub.f32 %v488, %v489
  %v491 = vand.u32 %v490, 4294901760
  %492 = vmatpush1.msra.mxu0 %v491
  %493 = vmatprep.subr.mxu0 0.0
  %v494 = vand.u32 %v159, 4294901760
  %v495 = vsub.f32 %v159, %v494
  %v496 = vand.u32 %v495, 4294901760
  %v497 = vsub.f32 %v495, %v496
  %v498 = vand.u32 %v497, 4294901760
  %499 = vmatpush1.msra.mxu0 %v498
  %v500 = vand.u32 %v162, 4294901760
  %501 = vmatprep.mubr.f32.mxu0 %v500
  %v502 = vand.u32 %v160, 4294901760
  %503 = vmatmul.mubr.f32.gmra.mrb[0].mxu0 %v502
  %v504 = vpop.f32.mrb[0].mxu0
  %v505 = vadd.f32 %v273, %v504
  %v506 = vpop.f32.mrb[0].mxu0
  %507 = vdwg.mxu0
  %508 = vmatprep.subr.mxu0 0.0
  %v509 = vand.u32 %v116, 4294901760
  %v510 = vsub.f32 %v116, %v509
  %511 = vmatpush1.msra.mxu0 %v510
  %512 = vmatprep.subr.mxu0 0.0
  %v513 = vand.u32 %v117, 4294901760
  %v514 = vsub.f32 %v117, %v513
  %515 = vmatpush1.msra.mxu0 %v514
  %516 = vmatprep.subr.mxu0 0.0
  %v517 = vand.u32 %v118, 4294901760
  %v518 = vsub.f32 %v118, %v517
  %519 = vmatpush1.msra.mxu0 %v518
  %520 = vmatprep.subr.mxu0 0.0
  %v521 = vand.u32 %v119, 4294901760
  %v522 = vsub.f32 %v119, %v521
  %523 = vmatpush1.msra.mxu0 %v522
  %524 = vmatprep.subr.mxu0 0.0
  %v525 = vand.u32 %v120, 4294901760
  %v526 = vsub.f32 %v120, %v525
  %527 = vmatpush1.msra.mxu0 %v526
  %528 = vmatprep.subr.mxu0 0.0
  %v529 = vand.u32 %v121, 4294901760
  %v530 = vsub.f32 %v121, %v529
  %531 = vmatpush1.msra.mxu0 %v530
  %532 = vmatprep.subr.mxu0 0.0
  %v533 = vand.u32 %v122, 4294901760
  %v534 = vsub.f32 %v122, %v533
  %535 = vmatpush1.msra.mxu0 %v534
  %536 = vmatprep.subr.mxu0 0.0
  %v537 = vand.u32 %v123, 4294901760
  %v538 = vsub.f32 %v123, %v537
  %539 = vmatpush1.msra.mxu0 %v538
  %540 = vmatprep.subr.mxu0 0.0
  %v541 = vand.u32 %v128, 4294901760
  %v542 = vsub.f32 %v128, %v541
  %543 = vmatpush1.msra.mxu0 %v542
  %544 = vmatprep.subr.mxu0 0.0
  %v545 = vand.u32 %v129, 4294901760
  %v546 = vsub.f32 %v129, %v545
  %547 = vmatpush1.msra.mxu0 %v546
  %548 = vmatprep.subr.mxu0 0.0
  %v549 = vand.u32 %v130, 4294901760
  %v550 = vsub.f32 %v130, %v549
  %551 = vmatpush1.msra.mxu0 %v550
  %552 = vmatprep.subr.mxu0 0.0
  %v553 = vand.u32 %v131, 4294901760
  %v554 = vsub.f32 %v131, %v553
  %555 = vmatpush1.msra.mxu0 %v554
  %556 = vmatprep.subr.mxu0 0.0
  %v557 = vand.u32 %v132, 4294901760
  %v558 = vsub.f32 %v132, %v557
  %559 = vmatpush1.msra.mxu0 %v558
  %560 = vmatprep.subr.mxu0 0.0
  %v561 = vand.u32 %v133, 4294901760
  %v562 = vsub.f32 %v133, %v561
  %563 = vmatpush1.msra.mxu0 %v562
  %564 = vmatprep.subr.mxu0 0.0
  %v565 = vand.u32 %v134, 4294901760
  %v566 = vsub.f32 %v134, %v565
  %567 = vmatpush1.msra.mxu0 %v566
  %568 = vmatprep.subr.mxu0 0.0
  %v569 = vand.u32 %v135, 4294901760
  %v570 = vsub.f32 %v135, %v569
  %571 = vmatpush1.msra.mxu0 %v570
  %572 = vmatprep.subr.mxu0 0.0
  %v573 = vand.u32 %v140, 4294901760
  %v574 = vsub.f32 %v140, %v573
  %575 = vmatpush1.msra.mxu0 %v574
  %576 = vmatprep.subr.mxu0 0.0
  %v577 = vand.u32 %v141, 4294901760
  %v578 = vsub.f32 %v141, %v577
  %579 = vmatpush1.msra.mxu0 %v578
  %580 = vmatprep.subr.mxu0 0.0
  %v581 = vand.u32 %v142, 4294901760
  %v582 = vsub.f32 %v142, %v581
  %583 = vmatpush1.msra.mxu0 %v582
  %584 = vmatprep.subr.mxu0 0.0
  %v585 = vand.u32 %v143, 4294901760
  %v586 = vsub.f32 %v143, %v585
  %587 = vmatpush1.msra.mxu0 %v586
  %588 = vmatprep.subr.mxu0 0.0
  %v589 = vand.u32 %v144, 4294901760
  %v590 = vsub.f32 %v144, %v589
  %591 = vmatpush1.msra.mxu0 %v590
  %592 = vmatprep.subr.mxu0 0.0
  %v593 = vand.u32 %v145, 4294901760
  %v594 = vsub.f32 %v145, %v593
  %595 = vmatpush1.msra.mxu0 %v594
  %596 = vmatprep.subr.mxu0 0.0
  %v597 = vand.u32 %v146, 4294901760
  %v598 = vsub.f32 %v146, %v597
  %599 = vmatpush1.msra.mxu0 %v598
  %600 = vmatprep.subr.mxu0 0.0
  %v601 = vand.u32 %v147, 4294901760
  %v602 = vsub.f32 %v147, %v601
  %603 = vmatpush1.msra.mxu0 %v602
  %604 = vmatprep.subr.mxu0 0.0
  %v605 = vand.u32 %v152, 4294901760
  %v606 = vsub.f32 %v152, %v605
  %607 = vmatpush1.msra.mxu0 %v606
  %608 = vmatprep.subr.mxu0 0.0
  %v609 = vand.u32 %v153, 4294901760
  %v610 = vsub.f32 %v153, %v609
  %611 = vmatpush1.msra.mxu0 %v610
  %612 = vmatprep.subr.mxu0 0.0
  %v613 = vand.u32 %v154, 4294901760
  %v614 = vsub.f32 %v154, %v613
  %615 = vmatpush1.msra.mxu0 %v614
  %616 = vmatprep.subr.mxu0 0.0
  %v617 = vand.u32 %v155, 4294901760
  %v618 = vsub.f32 %v155, %v617
  %619 = vmatpush1.msra.mxu0 %v618
  %620 = vmatprep.subr.mxu0 0.0
  %v621 = vand.u32 %v156, 4294901760
  %v622 = vsub.f32 %v156, %v621
  %623 = vmatpush1.msra.mxu0 %v622
  %624 = vmatprep.subr.mxu0 0.0
  %v625 = vand.u32 %v157, 4294901760
  %v626 = vsub.f32 %v157, %v625
  %627 = vmatpush1.msra.mxu0 %v626
  %628 = vmatprep.subr.mxu0 0.0
  %v629 = vand.u32 %v158, 4294901760
  %v630 = vsub.f32 %v158, %v629
  %631 = vmatpush1.msra.mxu0 %v630
  %632 = vmatprep.subr.mxu0 0.0
  %v633 = vand.u32 %v159, 4294901760
  %v634 = vsub.f32 %v159, %v633
  %635 = vmatpush1.msra.mxu0 %v634
  %v636 = vand.u32 %v162, 4294901760
  %v637 = vsub.f32 %v162, %v636
  %638 = vmatprep.mubr.f32.mxu0 %v637
  %v639 = vand.u32 %v160, 4294901760
  %v640 = vsub.f32 %v160, %v639
  %641 = vmatmul.mubr.f32.gmra.mrb[0].mxu0 %v640
  %v642 = vpop.f32.mrb[0].mxu0
  %v643 = vadd.f32 %v505, %v642
  %v644 = vpop.f32.mrb[0].mxu0
  %645 = vdwg.mxu0
  %646 = vmatprep.subr.mxu0 0.0
  %v647 = vand.u32 %v116, 4294901760
  %648 = vmatpush1.msra.mxu0 %v647
  %649 = vmatprep.subr.mxu0 0.0
  %v650 = vand.u32 %v117, 4294901760
  %651 = vmatpush1.msra.mxu0 %v650
  %652 = vmatprep.subr.mxu0 0.0
  %v653 = vand.u32 %v118, 4294901760
  %654 = vmatpush1.msra.mxu0 %v653
  %655 = vmatprep.subr.mxu0 0.0
  %v656 = vand.u32 %v119, 4294901760
  %657 = vmatpush1.msra.mxu0 %v656
  %658 = vmatprep.subr.mxu0 0.0
  %v659 = vand.u32 %v120, 4294901760
  %660 = vmatpush1.msra.mxu0 %v659
  %661 = vmatprep.subr.mxu0 0.0
  %v662 = vand.u32 %v121, 4294901760
  %663 = vmatpush1.msra.mxu0 %v662
  %664 = vmatprep.subr.mxu0 0.0
  %v665 = vand.u32 %v122, 4294901760
  %666 = vmatpush1.msra.mxu0 %v665
  %667 = vmatprep.subr.mxu0 0.0
  %v668 = vand.u32 %v123, 4294901760
  %669 = vmatpush1.msra.mxu0 %v668
  %670 = vmatprep.subr.mxu0 0.0
  %v671 = vand.u32 %v128, 4294901760
  %672 = vmatpush1.msra.mxu0 %v671
  %673 = vmatprep.subr.mxu0 0.0
  %v674 = vand.u32 %v129, 4294901760
  %675 = vmatpush1.msra.mxu0 %v674
  %676 = vmatprep.subr.mxu0 0.0
  %v677 = vand.u32 %v130, 4294901760
  %678 = vmatpush1.msra.mxu0 %v677
  %679 = vmatprep.subr.mxu0 0.0
  %v680 = vand.u32 %v131, 4294901760
  %681 = vmatpush1.msra.mxu0 %v680
  %682 = vmatprep.subr.mxu0 0.0
  %v683 = vand.u32 %v132, 4294901760
  %684 = vmatpush1.msra.mxu0 %v683
  %685 = vmatprep.subr.mxu0 0.0
  %v686 = vand.u32 %v133, 4294901760
  %687 = vmatpush1.msra.mxu0 %v686
  %688 = vmatprep.subr.mxu0 0.0
  %v689 = vand.u32 %v134, 4294901760
  %690 = vmatpush1.msra.mxu0 %v689
  %691 = vmatprep.subr.mxu0 0.0
  %v692 = vand.u32 %v135, 4294901760
  %693 = vmatpush1.msra.mxu0 %v692
  %694 = vmatprep.subr.mxu0 0.0
  %v695 = vand.u32 %v140, 4294901760
  %696 = vmatpush1.msra.mxu0 %v695
  %697 = vmatprep.subr.mxu0 0.0
  %v698 = vand.u32 %v141, 4294901760
  %699 = vmatpush1.msra.mxu0 %v698
  %700 = vmatprep.subr.mxu0 0.0
  %v701 = vand.u32 %v142, 4294901760
  %702 = vmatpush1.msra.mxu0 %v701
  %703 = vmatprep.subr.mxu0 0.0
  %v704 = vand.u32 %v143, 4294901760
  %705 = vmatpush1.msra.mxu0 %v704
  %706 = vmatprep.subr.mxu0 0.0
  %v707 = vand.u32 %v144, 4294901760
  %708 = vmatpush1.msra.mxu0 %v707
  %709 = vmatprep.subr.mxu0 0.0
  %v710 = vand.u32 %v145, 4294901760
  %711 = vmatpush1.msra.mxu0 %v710
  %712 = vmatprep.subr.mxu0 0.0
  %v713 = vand.u32 %v146, 4294901760
  %714 = vmatpush1.msra.mxu0 %v713
  %715 = vmatprep.subr.mxu0 0.0
  %v716 = vand.u32 %v147, 4294901760
  %717 = vmatpush1.msra.mxu0 %v716
  %718 = vmatprep.subr.mxu0 0.0
  %v719 = vand.u32 %v152, 4294901760
  %720 = vmatpush1.msra.mxu0 %v719
  %721 = vmatprep.subr.mxu0 0.0
  %v722 = vand.u32 %v153, 4294901760
  %723 = vmatpush1.msra.mxu0 %v722
  %724 = vmatprep.subr.mxu0 0.0
  %v725 = vand.u32 %v154, 4294901760
  %726 = vmatpush1.msra.mxu0 %v725
  %727 = vmatprep.subr.mxu0 0.0
  %v728 = vand.u32 %v155, 4294901760
  %729 = vmatpush1.msra.mxu0 %v728
  %730 = vmatprep.subr.mxu0 0.0
  %v731 = vand.u32 %v156, 4294901760
  %732 = vmatpush1.msra.mxu0 %v731
  %733 = vmatprep.subr.mxu0 0.0
  %v734 = vand.u32 %v157, 4294901760
  %735 = vmatpush1.msra.mxu0 %v734
  %736 = vmatprep.subr.mxu0 0.0
  %v737 = vand.u32 %v158, 4294901760
  %738 = vmatpush1.msra.mxu0 %v737
  %739 = vmatprep.subr.mxu0 0.0
  %v740 = vand.u32 %v159, 4294901760
  %741 = vmatpush1.msra.mxu0 %v740
  %v742 = vand.u32 %v162, 4294901760
  %v743 = vsub.f32 %v162, %v742
  %v744 = vand.u32 %v743, 4294901760
  %745 = vmatprep.mubr.f32.mxu0 %v744
  %v746 = vand.u32 %v160, 4294901760
  %v747 = vsub.f32 %v160, %v746
  %v748 = vand.u32 %v747, 4294901760
  %749 = vmatmul.mubr.f32.gmra.mrb[0].mxu0 %v748
  %v750 = vpop.f32.mrb[0].mxu0
  %v751 = vadd.f32 %v643, %v750
  %v752 = vpop.f32.mrb[0].mxu0
  %753 = vdwg.mxu0
  %754 = vmatprep.subr.mxu0 0.0
  %v755 = vand.u32 %v116, 4294901760
  %v756 = vsub.f32 %v116, %v755
  %v757 = vand.u32 %v756, 4294901760
  %758 = vmatpush1.msra.mxu0 %v757
  %759 = vmatprep.subr.mxu0 0.0
  %v760 = vand.u32 %v117, 4294901760
  %v761 = vsub.f32 %v117, %v760
  %v762 = vand.u32 %v761, 4294901760
  %763 = vmatpush1.msra.mxu0 %v762
  %764 = vmatprep.subr.mxu0 0.0
  %v765 = vand.u32 %v118, 4294901760
  %v766 = vsub.f32 %v118, %v765
  %v767 = vand.u32 %v766, 4294901760
  %768 = vmatpush1.msra.mxu0 %v767
  %769 = vmatprep.subr.mxu0 0.0
  %v770 = vand.u32 %v119, 4294901760
  %v771 = vsub.f32 %v119, %v770
  %v772 = vand.u32 %v771, 4294901760
  %773 = vmatpush1.msra.mxu0 %v772
  %774 = vmatprep.subr.mxu0 0.0
  %v775 = vand.u32 %v120, 4294901760
  %v776 = vsub.f32 %v120, %v775
  %v777 = vand.u32 %v776, 4294901760
  %778 = vmatpush1.msra.mxu0 %v777
  %779 = vmatprep.subr.mxu0 0.0
  %v780 = vand.u32 %v121, 4294901760
  %v781 = vsub.f32 %v121, %v780
  %v782 = vand.u32 %v781, 4294901760
  %783 = vmatpush1.msra.mxu0 %v782
  %784 = vmatprep.subr.mxu0 0.0
  %v785 = vand.u32 %v122, 4294901760
  %v786 = vsub.f32 %v122, %v785
  %v787 = vand.u32 %v786, 4294901760
  %788 = vmatpush1.msra.mxu0 %v787
  %789 = vmatprep.subr.mxu0 0.0
  %v790 = vand.u32 %v123, 4294901760
  %v791 = vsub.f32 %v123, %v790
  %v792 = vand.u32 %v791, 4294901760
  %793 = vmatpush1.msra.mxu0 %v792
  %794 = vmatprep.subr.mxu0 0.0
  %v795 = vand.u32 %v128, 4294901760
  %v796 = vsub.f32 %v128, %v795
  %v797 = vand.u32 %v796, 4294901760
  %798 = vmatpush1.msra.mxu0 %v797
  %799 = vmatprep.subr.mxu0 0.0
  %v800 = vand.u32 %v129, 4294901760
  %v801 = vsub.f32 %v129, %v800
  %v802 = vand.u32 %v801, 4294901760
  %803 = vmatpush1.msra.mxu0 %v802
  %804 = vmatprep.subr.mxu0 0.0
  %v805 = vand.u32 %v130, 4294901760
  %v806 = vsub.f32 %v130, %v805
  %v807 = vand.u32 %v806, 4294901760
  %808 = vmatpush1.msra.mxu0 %v807
  %809 = vmatprep.subr.mxu0 0.0
  %v810 = vand.u32 %v131, 4294901760
  %v811 = vsub.f32 %v131, %v810
  %v812 = vand.u32 %v811, 4294901760
  %813 = vmatpush1.msra.mxu0 %v812
  %814 = vmatprep.subr.mxu0 0.0
  %v815 = vand.u32 %v132, 4294901760
  %v816 = vsub.f32 %v132, %v815
  %v817 = vand.u32 %v816, 4294901760
  %818 = vmatpush1.msra.mxu0 %v817
  %819 = vmatprep.subr.mxu0 0.0
  %v820 = vand.u32 %v133, 4294901760
  %v821 = vsub.f32 %v133, %v820
  %v822 = vand.u32 %v821, 4294901760
  %823 = vmatpush1.msra.mxu0 %v822
  %824 = vmatprep.subr.mxu0 0.0
  %v825 = vand.u32 %v134, 4294901760
  %v826 = vsub.f32 %v134, %v825
  %v827 = vand.u32 %v826, 4294901760
  %828 = vmatpush1.msra.mxu0 %v827
  %829 = vmatprep.subr.mxu0 0.0
  %v830 = vand.u32 %v135, 4294901760
  %v831 = vsub.f32 %v135, %v830
  %v832 = vand.u32 %v831, 4294901760
  %833 = vmatpush1.msra.mxu0 %v832
  %834 = vmatprep.subr.mxu0 0.0
  %v835 = vand.u32 %v140, 4294901760
  %v836 = vsub.f32 %v140, %v835
  %v837 = vand.u32 %v836, 4294901760
  %838 = vmatpush1.msra.mxu0 %v837
  %839 = vmatprep.subr.mxu0 0.0
  %v840 = vand.u32 %v141, 4294901760
  %v841 = vsub.f32 %v141, %v840
  %v842 = vand.u32 %v841, 4294901760
  %843 = vmatpush1.msra.mxu0 %v842
  %844 = vmatprep.subr.mxu0 0.0
  %v845 = vand.u32 %v142, 4294901760
  %v846 = vsub.f32 %v142, %v845
  %v847 = vand.u32 %v846, 4294901760
  %848 = vmatpush1.msra.mxu0 %v847
  %849 = vmatprep.subr.mxu0 0.0
  %v850 = vand.u32 %v143, 4294901760
  %v851 = vsub.f32 %v143, %v850
  %v852 = vand.u32 %v851, 4294901760
  %853 = vmatpush1.msra.mxu0 %v852
  %854 = vmatprep.subr.mxu0 0.0
  %v855 = vand.u32 %v144, 4294901760
  %v856 = vsub.f32 %v144, %v855
  %v857 = vand.u32 %v856, 4294901760
  %858 = vmatpush1.msra.mxu0 %v857
  %859 = vmatprep.subr.mxu0 0.0
  %v860 = vand.u32 %v145, 4294901760
  %v861 = vsub.f32 %v145, %v860
  %v862 = vand.u32 %v861, 4294901760
  %863 = vmatpush1.msra.mxu0 %v862
  %864 = vmatprep.subr.mxu0 0.0
  %v865 = vand.u32 %v146, 4294901760
  %v866 = vsub.f32 %v146, %v865
  %v867 = vand.u32 %v866, 4294901760
  %868 = vmatpush1.msra.mxu0 %v867
  %869 = vmatprep.subr.mxu0 0.0
  %v870 = vand.u32 %v147, 4294901760
  %v871 = vsub.f32 %v147, %v870
  %v872 = vand.u32 %v871, 4294901760
  %873 = vmatpush1.msra.mxu0 %v872
  %874 = vmatprep.subr.mxu0 0.0
  %v875 = vand.u32 %v152, 4294901760
  %v876 = vsub.f32 %v152, %v875
  %v877 = vand.u32 %v876, 4294901760
  %878 = vmatpush1.msra.mxu0 %v877
  %879 = vmatprep.subr.mxu0 0.0
  %v880 = vand.u32 %v153, 4294901760
  %v881 = vsub.f32 %v153, %v880
  %v882 = vand.u32 %v881, 4294901760
  %883 = vmatpush1.msra.mxu0 %v882
  %884 = vmatprep.subr.mxu0 0.0
  %v885 = vand.u32 %v154, 4294901760
  %v886 = vsub.f32 %v154, %v885
  %v887 = vand.u32 %v886, 4294901760
  %888 = vmatpush1.msra.mxu0 %v887
  %889 = vmatprep.subr.mxu0 0.0
  %v890 = vand.u32 %v155, 4294901760
  %v891 = vsub.f32 %v155, %v890
  %v892 = vand.u32 %v891, 4294901760
  %893 = vmatpush1.msra.mxu0 %v892
  %894 = vmatprep.subr.mxu0 0.0
  %v895 = vand.u32 %v156, 4294901760
  %v896 = vsub.f32 %v156, %v895
  %v897 = vand.u32 %v896, 4294901760
  %898 = vmatpush1.msra.mxu0 %v897
  %899 = vmatprep.subr.mxu0 0.0
  %v900 = vand.u32 %v157, 4294901760
  %v901 = vsub.f32 %v157, %v900
  %v902 = vand.u32 %v901, 4294901760
  %903 = vmatpush1.msra.mxu0 %v902
  %904 = vmatprep.subr.mxu0 0.0
  %v905 = vand.u32 %v158, 4294901760
  %v906 = vsub.f32 %v158, %v905
  %v907 = vand.u32 %v906, 4294901760
  %908 = vmatpush1.msra.mxu0 %v907
  %909 = vmatprep.subr.mxu0 0.0
  %v910 = vand.u32 %v159, 4294901760
  %v911 = vsub.f32 %v159, %v910
  %v912 = vand.u32 %v911, 4294901760
  %913 = vmatpush1.msra.mxu0 %v912
  %v914 = vand.u32 %v162, 4294901760
  %915 = vmatprep.mubr.f32.mxu0 %v914
  %v916 = vand.u32 %v160, 4294901760
  %917 = vmatmul.mubr.f32.gmra.mrb[0].mxu0 %v916
  %v918 = vpop.f32.mrb[0].mxu0
  %v919 = vadd.f32 %v751, %v918
  %v920 = vpop.f32.mrb[0].mxu0
  %921 = vdwg.mxu0
  %922 = vmatprep.subr.mxu0 0.0
  %v923 = vand.u32 %v116, 4294901760
  %924 = vmatpush1.msra.mxu0 %v923
  %925 = vmatprep.subr.mxu0 0.0
  %v926 = vand.u32 %v117, 4294901760
  %927 = vmatpush1.msra.mxu0 %v926
  %928 = vmatprep.subr.mxu0 0.0
  %v929 = vand.u32 %v118, 4294901760
  %930 = vmatpush1.msra.mxu0 %v929
  %931 = vmatprep.subr.mxu0 0.0
  %v932 = vand.u32 %v119, 4294901760
  %933 = vmatpush1.msra.mxu0 %v932
  %934 = vmatprep.subr.mxu0 0.0
  %v935 = vand.u32 %v120, 4294901760
  %936 = vmatpush1.msra.mxu0 %v935
  %937 = vmatprep.subr.mxu0 0.0
  %v938 = vand.u32 %v121, 4294901760
  %939 = vmatpush1.msra.mxu0 %v938
  %940 = vmatprep.subr.mxu0 0.0
  %v941 = vand.u32 %v122, 4294901760
  %942 = vmatpush1.msra.mxu0 %v941
  %943 = vmatprep.subr.mxu0 0.0
  %v944 = vand.u32 %v123, 4294901760
  %945 = vmatpush1.msra.mxu0 %v944
  %946 = vmatprep.subr.mxu0 0.0
  %v947 = vand.u32 %v128, 4294901760
  %948 = vmatpush1.msra.mxu0 %v947
  %949 = vmatprep.subr.mxu0 0.0
  %v950 = vand.u32 %v129, 4294901760
  %951 = vmatpush1.msra.mxu0 %v950
  %952 = vmatprep.subr.mxu0 0.0
  %v953 = vand.u32 %v130, 4294901760
  %954 = vmatpush1.msra.mxu0 %v953
  %955 = vmatprep.subr.mxu0 0.0
  %v956 = vand.u32 %v131, 4294901760
  %957 = vmatpush1.msra.mxu0 %v956
  %958 = vmatprep.subr.mxu0 0.0
  %v959 = vand.u32 %v132, 4294901760
  %960 = vmatpush1.msra.mxu0 %v959
  %961 = vmatprep.subr.mxu0 0.0
  %v962 = vand.u32 %v133, 4294901760
  %963 = vmatpush1.msra.mxu0 %v962
  %964 = vmatprep.subr.mxu0 0.0
  %v965 = vand.u32 %v134, 4294901760
  %966 = vmatpush1.msra.mxu0 %v965
  %967 = vmatprep.subr.mxu0 0.0
  %v968 = vand.u32 %v135, 4294901760
  %969 = vmatpush1.msra.mxu0 %v968
  %970 = vmatprep.subr.mxu0 0.0
  %v971 = vand.u32 %v140, 4294901760
  %972 = vmatpush1.msra.mxu0 %v971
  %973 = vmatprep.subr.mxu0 0.0
  %v974 = vand.u32 %v141, 4294901760
  %975 = vmatpush1.msra.mxu0 %v974
  %976 = vmatprep.subr.mxu0 0.0
  %v977 = vand.u32 %v142, 4294901760
  %978 = vmatpush1.msra.mxu0 %v977
  %979 = vmatprep.subr.mxu0 0.0
  %v980 = vand.u32 %v143, 4294901760
  %981 = vmatpush1.msra.mxu0 %v980
  %982 = vmatprep.subr.mxu0 0.0
  %v983 = vand.u32 %v144, 4294901760
  %984 = vmatpush1.msra.mxu0 %v983
  %985 = vmatprep.subr.mxu0 0.0
  %v986 = vand.u32 %v145, 4294901760
  %987 = vmatpush1.msra.mxu0 %v986
  %988 = vmatprep.subr.mxu0 0.0
  %v989 = vand.u32 %v146, 4294901760
  %990 = vmatpush1.msra.mxu0 %v989
  %991 = vmatprep.subr.mxu0 0.0
  %v992 = vand.u32 %v147, 4294901760
  %993 = vmatpush1.msra.mxu0 %v992
  %994 = vmatprep.subr.mxu0 0.0
  %v995 = vand.u32 %v152, 4294901760
  %996 = vmatpush1.msra.mxu0 %v995
  %997 = vmatprep.subr.mxu0 0.0
  %v998 = vand.u32 %v153, 4294901760
  %999 = vmatpush1.msra.mxu0 %v998
  %1000 = vmatprep.subr.mxu0 0.0
  %v1001 = vand.u32 %v154, 4294901760
  %1002 = vmatpush1.msra.mxu0 %v1001
  %1003 = vmatprep.subr.mxu0 0.0
  %v1004 = vand.u32 %v155, 4294901760
  %1005 = vmatpush1.msra.mxu0 %v1004
  %1006 = vmatprep.subr.mxu0 0.0
  %v1007 = vand.u32 %v156, 4294901760
  %1008 = vmatpush1.msra.mxu0 %v1007
  %1009 = vmatprep.subr.mxu0 0.0
  %v1010 = vand.u32 %v157, 4294901760
  %1011 = vmatpush1.msra.mxu0 %v1010
  %1012 = vmatprep.subr.mxu0 0.0
  %v1013 = vand.u32 %v158, 4294901760
  %1014 = vmatpush1.msra.mxu0 %v1013
  %1015 = vmatprep.subr.mxu0 0.0
  %v1016 = vand.u32 %v159, 4294901760
  %1017 = vmatpush1.msra.mxu0 %v1016
  %v1018 = vand.u32 %v162, 4294901760
  %1019 = vmatprep.mubr.f32.mxu0 %v1018
  %v1020 = vand.u32 %v160, 4294901760
  %1021 = vmatmul.mubr.f32.gmra.mrb[0].mxu0 %v1020
  %v1022 = vpop.f32.mrb[0].mxu0
  %v1023 = vadd.f32 %v919, %v1022
  %v1024 = vpop.f32.mrb[0].mxu0
  %1025 = vdwg.mxu0
  %1026 = vst [vmem:[%s2] sm:$0xf] %v1023
  // Predicated region
  $region10: #{epses_plus_linear_forward.4} parent=0 // pred_check
    _
  $region11: #{epses_plus_linear_forward.4} parent=0 // pred_check_branch
    %1028 = sbr.rel (0) target = $region13
  $region12: #{epses_plus_linear_forward.4} parent=0 // pred_region
    _
  $region13: #{epses_plus_linear_forward.4} parent=0 // pred_fallthru
    _
  // Predicated region
  $region14: #{epses_plus_linear_forward.4} parent=0 // pred_check
    _
  $region15: #{epses_plus_linear_forward.4} parent=0 // pred_check_branch
    %1030 = sbr.rel (0) target = $region17
  $region16: #{epses_plus_linear_forward.4} parent=0 // pred_region
    _
  $region17: #{epses_plus_linear_forward.4} parent=0 // pred_fallthru
    _

// kernel: epses_plus_linear_forward.3
$region0: #{epses_plus_linear_forward.3}
  #allocation0 [shape = 'u32[]', space=smem, size = 0x4, offset = 0x4, fixed_abs, tag = 'smem constant byte address 0x4 - core index']
  #allocation1 [shape = 'u32[144,128]{1,0:T(1,128)}', space=vmem, size = 0x12000, scoped, tag = 'internal scratch']
  %s0 = inlined_call_operand.vmem [shape: f32[9,2,128], index: 0, kind: input, shape index: {}]
  %s1 = inlined_call_operand.vmem [shape: f32[2,4,256], index: 1, kind: input, shape index: {}]
  %s2 = inlined_call_operand.vmem [shape: f32[4,128], index: 2, kind: output, shape index: {}]
  %s3 = sld [smem:[#allocation0]]
  $region18: #{epses_plus_linear_forward.3} parent=0
    _
  %s5 = ssub.s32 1, %s3
  %s6 = scalar_select 0, %s5, %s3
  // Predicated region
  $region2: #{epses_plus_linear_forward.3} parent=0 // pred_check
    _
  $region3: #{epses_plus_linear_forward.3} parent=0 // pred_check_branch
    %8 = sbr.rel (0) target = $region5
  $region4: #{epses_plus_linear_forward.3} parent=0 // pred_region
    _
  $region5: #{epses_plus_linear_forward.3} parent=0 // pred_fallthru
    _
  // Predicated region
  $region6: #{epses_plus_linear_forward.3} parent=0 // pred_check
    _
  $region7: #{epses_plus_linear_forward.3} parent=0 // pred_check_branch
    %10 = sbr.rel (0) target = $region9
  $region8: #{epses_plus_linear_forward.3} parent=0 // pred_region
    _
  $region9: #{epses_plus_linear_forward.3} parent=0 // pred_fallthru
    _
  %s11 = scalar_lea.vmem %s0, 10
  %v12 = vld [vmem:[%s11] sm:$0x3]
  %s13 = scalar_lea.vmem %s0, 12
  %v14 = vld [vmem:[%s13] sm:$0x3]
  %v15 = vmul.f32 %v12, %v14
  %s16 = scalar_lea.vmem %s0, 14
  %v17 = vld [vmem:[%s16] sm:$0x3]
  %v18 = vmul.f32 %v15, %v17
  %v20 = vrot.slane %v17, 1
  %v22 = vmul.f32 %v15, %v20
  %v24 = vrot.slane %v14, 1
  %v26 = vmul.f32 %v12, %v24
  %v27 = vmul.f32 %v26, %v17
  %v28 = vmul.f32 %v26, %v20
  %v29 = vrot.slane %v14, 7
  %v31 = vmul.f32 %v12, %v29
  %v32 = vrot.slane %v17, 7
  %v34 = vmul.f32 %v31, %v32
  %v35 = vmul.f32 %v31, %v17
  %v36 = vmul.f32 %v15, %v32
  %v38 = vrot.slane %v22, 7
  %v41 = vrot.slane %v27, 6
  %v44 = vrot.slane %v28, 5
  %v47 = vrot.slane %v34, 5
  %v50 = vrot.slane %v35, 4
  %v53 = vrot.slane %v36, 3
  %v56 = vrot.slane %v18, 2
  %vm58 = vcmask 1040384
  %v59 = vsel %vm58, %v18, %v38
  %vm60 = vcmask 1041408
  %v61 = vsel %vm60, %v59, %v41
  %vm62 = vcmask 1042432
  %v63 = vsel %vm62, %v61, %v44
  %vm64 = vcmask 1043456
  %v65 = vsel %vm64, %v63, %v47
  %vm66 = vcmask 1044480
  %v67 = vsel %vm66, %v65, %v50
  %vm68 = vcmask 1045504
  %v69 = vsel %vm68, %v67, %v53
  %vm70 = vcmask 1046528
  %v71 = vsel %vm70, %v69, %v56
  %s72 = scalar_lea.vmem %s0, 8
  %v73 = vld [vmem:[%s72] sm:$0x3]
  %v74 = vlaneseq
  %v75 = vshrl.u32 %v74, 7
  %v76 = vsub.s32 0, %v75
  %v77 = vrot.slane %v73, %v76
  %v78 = vmul.f32 %v77, %v71
  %v79 = vlaneseq
  %v80 = vshrl.u32 %v79, 7
  %v81 = vsub.s32 1, %v80
  %v82 = vrot.slane %v73, %v81
  %v83 = vmul.f32 %v82, %v71
  %s84 = scalar_lea.vmem %s0, 6
  %v85 = vld [vmem:[%s84] sm:$0x3]
  %v86 = vlaneseq
  %v87 = vshrl.u32 %v86, 7
  %v88 = vsub.s32 0, %v87
  %v89 = vrot.slane %v85, %v88
  %v90 = vmul.f32 %v89, %v78
  %v91 = vmul.f32 %v89, %v83
  %v92 = vlaneseq
  %v93 = vshrl.u32 %v92, 7
  %v94 = vsub.s32 1, %v93
  %v95 = vrot.slane %v85, %v94
  %v96 = vmul.f32 %v95, %v78
  %v97 = vmul.f32 %v95, %v83
  %s98 = scalar_lea.vmem %s0, 4
  %v99 = vld [vmem:[%s98] sm:$0x3]
  %v100 = vlaneseq
  %v101 = vshrl.u32 %v100, 7
  %v102 = vsub.s32 0, %v101
  %v103 = vrot.slane %v99, %v102
  %v104 = vmul.f32 %v103, %v90
  %v105 = vmul.f32 %v103, %v91
  %v106 = vmul.f32 %v103, %v96
  %v107 = vmul.f32 %v103, %v97
  %v108 = vlaneseq
  %v109 = vshrl.u32 %v108, 7
  %v110 = vsub.s32 1, %v109
  %v111 = vrot.slane %v99, %v110
  %v112 = vmul.f32 %v111, %v90
  %v113 = vmul.f32 %v111, %v91
  %v114 = vmul.f32 %v111, %v96
  %v115 = vmul.f32 %v111, %v97
  %s116 = scalar_lea.vmem %s0, 2
  %v117 = vld [vmem:[%s116] sm:$0x3]
  %v118 = vlaneseq
  %v119 = vshrl.u32 %v118, 7
  %v120 = vsub.s32 0, %v119
  %v121 = vrot.slane %v117, %v120
  %v122 = vmul.f32 %v121, %v104
  %v123 = vmul.f32 %v121, %v105
  %v124 = vmul.f32 %v121, %v106
  %v125 = vmul.f32 %v121, %v107
  %v126 = vmul.f32 %v121, %v112
  %v127 = vmul.f32 %v121, %v113
  %v128 = vmul.f32 %v121, %v114
  %v129 = vmul.f32 %v121, %v115
  %v130 = vlaneseq
  %v131 = vshrl.u32 %v130, 7
  %v132 = vsub.s32 1, %v131
  %v133 = vrot.slane %v117, %v132
  %v134 = vmul.f32 %v133, %v104
  %v135 = vmul.f32 %v133, %v105
  %v136 = vmul.f32 %v133, %v106
  %v137 = vmul.f32 %v133, %v107
  %v138 = vmul.f32 %v133, %v112
  %v139 = vmul.f32 %v133, %v113
  %v140 = vmul.f32 %v133, %v114
  %v141 = vmul.f32 %v133, %v115
  %v142 = vld [vmem:[%s0] sm:$0x3]
  %v143 = vlaneseq
  %v144 = vshrl.u32 %v143, 7
  %v145 = vsub.s32 0, %v144
  %v146 = vrot.slane %v142, %v145
  %v147 = vmul.f32 %v146, %v122
  %v148 = vmul.f32 %v146, %v123
  %v149 = vmul.f32 %v146, %v124
  %v150 = vmul.f32 %v146, %v125
  %v151 = vmul.f32 %v146, %v126
  %v152 = vmul.f32 %v146, %v127
  %v153 = vmul.f32 %v146, %v128
  %v154 = vmul.f32 %v146, %v129
  %v155 = vmul.f32 %v146, %v134
  %v156 = vmul.f32 %v146, %v135
  %v157 = vmul.f32 %v146, %v136
  %v158 = vmul.f32 %v146, %v137
  %v159 = vmul.f32 %v146, %v138
  %v160 = vmul.f32 %v146, %v139
  %v161 = vmul.f32 %v146, %v140
  %v162 = vmul.f32 %v146, %v141
  %v163 = vlaneseq
  %v164 = vshrl.u32 %v163, 7
  %v165 = vsub.s32 1, %v164
  %v166 = vrot.slane %v142, %v165
  %v167 = vmul.f32 %v166, %v122
  %v168 = vmul.f32 %v166, %v123
  %v169 = vmul.f32 %v166, %v124
  %v170 = vmul.f32 %v166, %v125
  %v171 = vmul.f32 %v166, %v126
  %v172 = vmul.f32 %v166, %v127
  %v173 = vmul.f32 %v166, %v128
  %v174 = vmul.f32 %v166, %v129
  %v175 = vmul.f32 %v166, %v134
  %v176 = vmul.f32 %v166, %v135
  %v177 = vmul.f32 %v166, %v136
  %v178 = vmul.f32 %v166, %v137
  %v179 = vmul.f32 %v166, %v138
  %v180 = vmul.f32 %v166, %v139
  %v181 = vmul.f32 %v166, %v140
  %v182 = vmul.f32 %v166, %v141
  %v183 = vld [vmem:[%s1] sm:$0xff]
  %v185 = vcombine.high %v183, %v183
  %187 = vmatprep.subr.mxu0 0.0
  %v188 = vand.u32 %v147, 4294901760
  %189 = vmatpush1.msra.mxu0 %v188
  %190 = vmatprep.subr.mxu0 0.0
  %v191 = vand.u32 %v148, 4294901760
  %192 = vmatpush1.msra.mxu0 %v191
  %193 = vmatprep.subr.mxu0 0.0
  %v194 = vand.u32 %v149, 4294901760
  %195 = vmatpush1.msra.mxu0 %v194
  %196 = vmatprep.subr.mxu0 0.0
  %v197 = vand.u32 %v150, 4294901760
  %198 = vmatpush1.msra.mxu0 %v197
  %199 = vmatprep.subr.mxu0 0.0
  %v200 = vand.u32 %v151, 4294901760
  %201 = vmatpush1.msra.mxu0 %v200
  %202 = vmatprep.subr.mxu0 0.0
  %v203 = vand.u32 %v152, 4294901760
  %204 = vmatpush1.msra.mxu0 %v203
  %205 = vmatprep.subr.mxu0 0.0
  %v206 = vand.u32 %v153, 4294901760
  %207 = vmatpush1.msra.mxu0 %v206
  %208 = vmatprep.subr.mxu0 0.0
  %v209 = vand.u32 %v154, 4294901760
  %210 = vmatpush1.msra.mxu0 %v209
  %211 = vmatprep.subr.mxu0 0.0
  %v212 = vand.u32 %v155, 4294901760
  %213 = vmatpush1.msra.mxu0 %v212
  %214 = vmatprep.subr.mxu0 0.0
  %v215 = vand.u32 %v156, 4294901760
  %216 = vmatpush1.msra.mxu0 %v215
  %217 = vmatprep.subr.mxu0 0.0
  %v218 = vand.u32 %v157, 4294901760
  %219 = vmatpush1.msra.mxu0 %v218
  %220 = vmatprep.subr.mxu0 0.0
  %v221 = vand.u32 %v158, 4294901760
  %222 = vmatpush1.msra.mxu0 %v221
  %223 = vmatprep.subr.mxu0 0.0
  %v224 = vand.u32 %v159, 4294901760
  %225 = vmatpush1.msra.mxu0 %v224
  %226 = vmatprep.subr.mxu0 0.0
  %v227 = vand.u32 %v160, 4294901760
  %228 = vmatpush1.msra.mxu0 %v227
  %229 = vmatprep.subr.mxu0 0.0
  %v230 = vand.u32 %v161, 4294901760
  %231 = vmatpush1.msra.mxu0 %v230
  %232 = vmatprep.subr.mxu0 0.0
  %v233 = vand.u32 %v162, 4294901760
  %234 = vmatpush1.msra.mxu0 %v233
  %235 = vmatprep.subr.mxu0 0.0
  %v236 = vand.u32 %v167, 4294901760
  %237 = vmatpush1.msra.mxu0 %v236
  %238 = vmatprep.subr.mxu0 0.0
  %v239 = vand.u32 %v168, 4294901760
  %240 = vmatpush1.msra.mxu0 %v239
  %241 = vmatprep.subr.mxu0 0.0
  %v242 = vand.u32 %v169, 4294901760
  %243 = vmatpush1.msra.mxu0 %v242
  %244 = vmatprep.subr.mxu0 0.0
  %v245 = vand.u32 %v170, 4294901760
  %246 = vmatpush1.msra.mxu0 %v245
  %247 = vmatprep.subr.mxu0 0.0
  %v248 = vand.u32 %v171, 4294901760
  %249 = vmatpush1.msra.mxu0 %v248
  %250 = vmatprep.subr.mxu0 0.0
  %v251 = vand.u32 %v172, 4294901760
  %252 = vmatpush1.msra.mxu0 %v251
  %253 = vmatprep.subr.mxu0 0.0
  %v254 = vand.u32 %v173, 4294901760
  %255 = vmatpush1.msra.mxu0 %v254
  %256 = vmatprep.subr.mxu0 0.0
  %v257 = vand.u32 %v174, 4294901760
  %258 = vmatpush1.msra.mxu0 %v257
  %259 = vmatprep.subr.mxu0 0.0
  %v260 = vand.u32 %v175, 4294901760
  %261 = vmatpush1.msra.mxu0 %v260
  %262 = vmatprep.subr.mxu0 0.0
  %v263 = vand.u32 %v176, 4294901760
  %264 = vmatpush1.msra.mxu0 %v263
  %265 = vmatprep.subr.mxu0 0.0
  %v266 = vand.u32 %v177, 4294901760
  %267 = vmatpush1.msra.mxu0 %v266
  %268 = vmatprep.subr.mxu0 0.0
  %v269 = vand.u32 %v178, 4294901760
  %270 = vmatpush1.msra.mxu0 %v269
  %271 = vmatprep.subr.mxu0 0.0
  %v272 = vand.u32 %v179, 4294901760
  %273 = vmatpush1.msra.mxu0 %v272
  %274 = vmatprep.subr.mxu0 0.0
  %v275 = vand.u32 %v180, 4294901760
  %276 = vmatpush1.msra.mxu0 %v275
  %277 = vmatprep.subr.mxu0 0.0
  %v278 = vand.u32 %v181, 4294901760
  %279 = vmatpush1.msra.mxu0 %v278
  %280 = vmatprep.subr.mxu0 0.0
  %v281 = vand.u32 %v182, 4294901760
  %282 = vmatpush1.msra.mxu0 %v281
  %v283 = vand.u32 %v185, 4294901760
  %v284 = vsub.f32 %v185, %v283
  %v285 = vand.u32 %v284, 4294901760
  %v286 = vsub.f32 %v284, %v285
  %v287 = vand.u32 %v286, 4294901760
  %288 = vmatprep.mubr.f32.mxu0 %v287
  %v289 = vand.u32 %v183, 4294901760
  %v290 = vsub.f32 %v183, %v289
  %v291 = vand.u32 %v290, 4294901760
  %v292 = vsub.f32 %v290, %v291
  %v293 = vand.u32 %v292, 4294901760
  %294 = vmatmul.mubr.f32.gmra.mrb[0].mxu0 %v293
  %v295 = vpop.f32.mrb[0].mxu0
  %v296 = vadd.f32 0.0, %v295
  %v297 = vpop.f32.mrb[0].mxu0
  %298 = vdwg.mxu0
  %299 = vmatprep.subr.mxu0 0.0
  %v300 = vand.u32 %v147, 4294901760
  %v301 = vsub.f32 %v147, %v300
  %v302 = vand.u32 %v301, 4294901760
  %v303 = vsub.f32 %v301, %v302
  %v304 = vand.u32 %v303, 4294901760
  %305 = vmatpush1.msra.mxu0 %v304
  %306 = vmatprep.subr.mxu0 0.0
  %v307 = vand.u32 %v148, 4294901760
  %v308 = vsub.f32 %v148, %v307
  %v309 = vand.u32 %v308, 4294901760
  %v310 = vsub.f32 %v308, %v309
  %v311 = vand.u32 %v310, 4294901760
  %312 = vmatpush1.msra.mxu0 %v311
  %313 = vmatprep.subr.mxu0 0.0
  %v314 = vand.u32 %v149, 4294901760
  %v315 = vsub.f32 %v149, %v314
  %v316 = vand.u32 %v315, 4294901760
  %v317 = vsub.f32 %v315, %v316
  %v318 = vand.u32 %v317, 4294901760
  %319 = vmatpush1.msra.mxu0 %v318
  %320 = vmatprep.subr.mxu0 0.0
  %v321 = vand.u32 %v150, 4294901760
  %v322 = vsub.f32 %v150, %v321
  %v323 = vand.u32 %v322, 4294901760
  %v324 = vsub.f32 %v322, %v323
  %v325 = vand.u32 %v324, 4294901760
  %326 = vmatpush1.msra.mxu0 %v325
  %327 = vmatprep.subr.mxu0 0.0
  %v328 = vand.u32 %v151, 4294901760
  %v329 = vsub.f32 %v151, %v328
  %v330 = vand.u32 %v329, 4294901760
  %v331 = vsub.f32 %v329, %v330
  %v332 = vand.u32 %v331, 4294901760
  %333 = vmatpush1.msra.mxu0 %v332
  %334 = vmatprep.subr.mxu0 0.0
  %v335 = vand.u32 %v152, 4294901760
  %v336 = vsub.f32 %v152, %v335
  %v337 = vand.u32 %v336, 4294901760
  %v338 = vsub.f32 %v336, %v337
  %v339 = vand.u32 %v338, 4294901760
  %340 = vmatpush1.msra.mxu0 %v339
  %341 = vmatprep.subr.mxu0 0.0
  %v342 = vand.u32 %v153, 4294901760
  %v343 = vsub.f32 %v153, %v342
  %v344 = vand.u32 %v343, 4294901760
  %v345 = vsub.f32 %v343, %v344
  %v346 = vand.u32 %v345, 4294901760
  %347 = vmatpush1.msra.mxu0 %v346
  %348 = vmatprep.subr.mxu0 0.0
  %v349 = vand.u32 %v154, 4294901760
  %v350 = vsub.f32 %v154, %v349
  %v351 = vand.u32 %v350, 4294901760
  %v352 = vsub.f32 %v350, %v351
  %v353 = vand.u32 %v352, 4294901760
  %354 = vmatpush1.msra.mxu0 %v353
  %355 = vmatprep.subr.mxu0 0.0
  %v356 = vand.u32 %v155, 4294901760
  %v357 = vsub.f32 %v155, %v356
  %v358 = vand.u32 %v357, 4294901760
  %v359 = vsub.f32 %v357, %v358
  %v360 = vand.u32 %v359, 4294901760
  %361 = vmatpush1.msra.mxu0 %v360
  %362 = vmatprep.subr.mxu0 0.0
  %v363 = vand.u32 %v156, 4294901760
  %v364 = vsub.f32 %v156, %v363
  %v365 = vand.u32 %v364, 4294901760
  %v366 = vsub.f32 %v364, %v365
  %v367 = vand.u32 %v366, 4294901760
  %368 = vmatpush1.msra.mxu0 %v367
  %369 = vmatprep.subr.mxu0 0.0
  %v370 = vand.u32 %v157, 4294901760
  %v371 = vsub.f32 %v157, %v370
  %v372 = vand.u32 %v371, 4294901760
  %v373 = vsub.f32 %v371, %v372
  %v374 = vand.u32 %v373, 4294901760
  %375 = vmatpush1.msra.mxu0 %v374
  %376 = vmatprep.subr.mxu0 0.0
  %v377 = vand.u32 %v158, 4294901760
  %v378 = vsub.f32 %v158, %v377
  %v379 = vand.u32 %v378, 4294901760
  %v380 = vsub.f32 %v378, %v379
  %v381 = vand.u32 %v380, 4294901760
  %382 = vmatpush1.msra.mxu0 %v381
  %383 = vmatprep.subr.mxu0 0.0
  %v384 = vand.u32 %v159, 4294901760
  %v385 = vsub.f32 %v159, %v384
  %v386 = vand.u32 %v385, 4294901760
  %v387 = vsub.f32 %v385, %v386
  %v388 = vand.u32 %v387, 4294901760
  %389 = vmatpush1.msra.mxu0 %v388
  %390 = vmatprep.subr.mxu0 0.0
  %v391 = vand.u32 %v160, 4294901760
  %v392 = vsub.f32 %v160, %v391
  %v393 = vand.u32 %v392, 4294901760
  %v394 = vsub.f32 %v392, %v393
  %v395 = vand.u32 %v394, 4294901760
  %396 = vmatpush1.msra.mxu0 %v395
  %397 = vmatprep.subr.mxu0 0.0
  %v398 = vand.u32 %v161, 4294901760
  %v399 = vsub.f32 %v161, %v398
  %v400 = vand.u32 %v399, 4294901760
  %v401 = vsub.f32 %v399, %v400
  %v402 = vand.u32 %v401, 4294901760
  %403 = vmatpush1.msra.mxu0 %v402
  %404 = vmatprep.subr.mxu0 0.0
  %v405 = vand.u32 %v162, 4294901760
  %v406 = vsub.f32 %v162, %v405
  %v407 = vand.u32 %v406, 4294901760
  %v408 = vsub.f32 %v406, %v407
  %v409 = vand.u32 %v408, 4294901760
  %410 = vmatpush1.msra.mxu0 %v409
  %411 = vmatprep.subr.mxu0 0.0
  %v412 = vand.u32 %v167, 4294901760
  %v413 = vsub.f32 %v167, %v412
  %v414 = vand.u32 %v413, 4294901760
  %v415 = vsub.f32 %v413, %v414
  %v416 = vand.u32 %v415, 4294901760
  %417 = vmatpush1.msra.mxu0 %v416
  %418 = vmatprep.subr.mxu0 0.0
  %v419 = vand.u32 %v168, 4294901760
  %v420 = vsub.f32 %v168, %v419
  %v421 = vand.u32 %v420, 4294901760
  %v422 = vsub.f32 %v420, %v421
  %v423 = vand.u32 %v422, 4294901760
  %424 = vmatpush1.msra.mxu0 %v423
  %425 = vmatprep.subr.mxu0 0.0
  %v426 = vand.u32 %v169, 4294901760
  %v427 = vsub.f32 %v169, %v426
  %v428 = vand.u32 %v427, 4294901760
  %v429 = vsub.f32 %v427, %v428
  %v430 = vand.u32 %v429, 4294901760
  %431 = vmatpush1.msra.mxu0 %v430
  %432 = vmatprep.subr.mxu0 0.0
  %v433 = vand.u32 %v170, 4294901760
  %v434 = vsub.f32 %v170, %v433
  %v435 = vand.u32 %v434, 4294901760
  %v436 = vsub.f32 %v434, %v435
  %v437 = vand.u32 %v436, 4294901760
  %438 = vmatpush1.msra.mxu0 %v437
  %439 = vmatprep.subr.mxu0 0.0
  %v440 = vand.u32 %v171, 4294901760
  %v441 = vsub.f32 %v171, %v440
  %v442 = vand.u32 %v441, 4294901760
  %v443 = vsub.f32 %v441, %v442
  %v444 = vand.u32 %v443, 4294901760
  %445 = vmatpush1.msra.mxu0 %v444
  %446 = vmatprep.subr.mxu0 0.0
  %v447 = vand.u32 %v172, 4294901760
  %v448 = vsub.f32 %v172, %v447
  %v449 = vand.u32 %v448, 4294901760
  %v450 = vsub.f32 %v448, %v449
  %v451 = vand.u32 %v450, 4294901760
  %452 = vmatpush1.msra.mxu0 %v451
  %453 = vmatprep.subr.mxu0 0.0
  %v454 = vand.u32 %v173, 4294901760
  %v455 = vsub.f32 %v173, %v454
  %v456 = vand.u32 %v455, 4294901760
  %v457 = vsub.f32 %v455, %v456
  %v458 = vand.u32 %v457, 4294901760
  %459 = vmatpush1.msra.mxu0 %v458
  %460 = vmatprep.subr.mxu0 0.0
  %v461 = vand.u32 %v174, 4294901760
  %v462 = vsub.f32 %v174, %v461
  %v463 = vand.u32 %v462, 4294901760
  %v464 = vsub.f32 %v462, %v463
  %v465 = vand.u32 %v464, 4294901760
  %466 = vmatpush1.msra.mxu0 %v465
  %467 = vmatprep.subr.mxu0 0.0
  %v468 = vand.u32 %v175, 4294901760
  %v469 = vsub.f32 %v175, %v468
  %v470 = vand.u32 %v469, 4294901760
  %v471 = vsub.f32 %v469, %v470
  %v472 = vand.u32 %v471, 4294901760
  %473 = vmatpush1.msra.mxu0 %v472
  %474 = vmatprep.subr.mxu0 0.0
  %v475 = vand.u32 %v176, 4294901760
  %v476 = vsub.f32 %v176, %v475
  %v477 = vand.u32 %v476, 4294901760
  %v478 = vsub.f32 %v476, %v477
  %v479 = vand.u32 %v478, 4294901760
  %480 = vmatpush1.msra.mxu0 %v479
  %481 = vmatprep.subr.mxu0 0.0
  %v482 = vand.u32 %v177, 4294901760
  %v483 = vsub.f32 %v177, %v482
  %v484 = vand.u32 %v483, 4294901760
  %v485 = vsub.f32 %v483, %v484
  %v486 = vand.u32 %v485, 4294901760
  %487 = vmatpush1.msra.mxu0 %v486
  %488 = vmatprep.subr.mxu0 0.0
  %v489 = vand.u32 %v178, 4294901760
  %v490 = vsub.f32 %v178, %v489
  %v491 = vand.u32 %v490, 4294901760
  %v492 = vsub.f32 %v490, %v491
  %v493 = vand.u32 %v492, 4294901760
  %494 = vmatpush1.msra.mxu0 %v493
  %495 = vmatprep.subr.mxu0 0.0
  %v496 = vand.u32 %v179, 4294901760
  %v497 = vsub.f32 %v179, %v496
  %v498 = vand.u32 %v497, 4294901760
  %v499 = vsub.f32 %v497, %v498
  %v500 = vand.u32 %v499, 4294901760
  %501 = vmatpush1.msra.mxu0 %v500
  %502 = vmatprep.subr.mxu0 0.0
  %v503 = vand.u32 %v180, 4294901760
  %v504 = vsub.f32 %v180, %v503
  %v505 = vand.u32 %v504, 4294901760
  %v506 = vsub.f32 %v504, %v505
  %v507 = vand.u32 %v506, 4294901760
  %508 = vmatpush1.msra.mxu0 %v507
  %509 = vmatprep.subr.mxu0 0.0
  %v510 = vand.u32 %v181, 4294901760
  %v511 = vsub.f32 %v181, %v510
  %v512 = vand.u32 %v511, 4294901760
  %v513 = vsub.f32 %v511, %v512
  %v514 = vand.u32 %v513, 4294901760
  %515 = vmatpush1.msra.mxu0 %v514
  %516 = vmatprep.subr.mxu0 0.0
  %v517 = vand.u32 %v182, 4294901760
  %v518 = vsub.f32 %v182, %v517
  %v519 = vand.u32 %v518, 4294901760
  %v520 = vsub.f32 %v518, %v519
  %v521 = vand.u32 %v520, 4294901760
  %522 = vmatpush1.msra.mxu0 %v521
  %v523 = vand.u32 %v185, 4294901760
  %524 = vmatprep.mubr.f32.mxu0 %v523
  %v525 = vand.u32 %v183, 4294901760
  %526 = vmatmul.mubr.f32.gmra.mrb[0].mxu0 %v525
  %v527 = vpop.f32.mrb[0].mxu0
  %v528 = vadd.f32 %v296, %v527
  %v529 = vpop.f32.mrb[0].mxu0
  %530 = vdwg.mxu0
  %531 = vmatprep.subr.mxu0 0.0
  %v532 = vand.u32 %v147, 4294901760
  %v533 = vsub.f32 %v147, %v532
  %534 = vmatpush1.msra.mxu0 %v533
  %535 = vmatprep.subr.mxu0 0.0
  %v536 = vand.u32 %v148, 4294901760
  %v537 = vsub.f32 %v148, %v536
  %538 = vmatpush1.msra.mxu0 %v537
  %539 = vmatprep.subr.mxu0 0.0
  %v540 = vand.u32 %v149, 4294901760
  %v541 = vsub.f32 %v149, %v540
  %542 = vmatpush1.msra.mxu0 %v541
  %543 = vmatprep.subr.mxu0 0.0
  %v544 = vand.u32 %v150, 4294901760
  %v545 = vsub.f32 %v150, %v544
  %546 = vmatpush1.msra.mxu0 %v545
  %547 = vmatprep.subr.mxu0 0.0
  %v548 = vand.u32 %v151, 4294901760
  %v549 = vsub.f32 %v151, %v548
  %550 = vmatpush1.msra.mxu0 %v549
  %551 = vmatprep.subr.mxu0 0.0
  %v552 = vand.u32 %v152, 4294901760
  %v553 = vsub.f32 %v152, %v552
  %554 = vmatpush1.msra.mxu0 %v553
  %555 = vmatprep.subr.mxu0 0.0
  %v556 = vand.u32 %v153, 4294901760
  %v557 = vsub.f32 %v153, %v556
  %558 = vmatpush1.msra.mxu0 %v557
  %559 = vmatprep.subr.mxu0 0.0
  %v560 = vand.u32 %v154, 4294901760
  %v561 = vsub.f32 %v154, %v560
  %562 = vmatpush1.msra.mxu0 %v561
  %563 = vmatprep.subr.mxu0 0.0
  %v564 = vand.u32 %v155, 4294901760
  %v565 = vsub.f32 %v155, %v564
  %566 = vmatpush1.msra.mxu0 %v565
  %567 = vmatprep.subr.mxu0 0.0
  %v568 = vand.u32 %v156, 4294901760
  %v569 = vsub.f32 %v156, %v568
  %570 = vmatpush1.msra.mxu0 %v569
  %571 = vmatprep.subr.mxu0 0.0
  %v572 = vand.u32 %v157, 4294901760
  %v573 = vsub.f32 %v157, %v572
  %574 = vmatpush1.msra.mxu0 %v573
  %575 = vmatprep.subr.mxu0 0.0
  %v576 = vand.u32 %v158, 4294901760
  %v577 = vsub.f32 %v158, %v576
  %578 = vmatpush1.msra.mxu0 %v577
  %579 = vmatprep.subr.mxu0 0.0
  %v580 = vand.u32 %v159, 4294901760
  %v581 = vsub.f32 %v159, %v580
  %582 = vmatpush1.msra.mxu0 %v581
  %583 = vmatprep.subr.mxu0 0.0
  %v584 = vand.u32 %v160, 4294901760
  %v585 = vsub.f32 %v160, %v584
  %586 = vmatpush1.msra.mxu0 %v585
  %587 = vmatprep.subr.mxu0 0.0
  %v588 = vand.u32 %v161, 4294901760
  %v589 = vsub.f32 %v161, %v588
  %590 = vmatpush1.msra.mxu0 %v589
  %591 = vmatprep.subr.mxu0 0.0
  %v592 = vand.u32 %v162, 4294901760
  %v593 = vsub.f32 %v162, %v592
  %594 = vmatpush1.msra.mxu0 %v593
  %595 = vmatprep.subr.mxu0 0.0
  %v596 = vand.u32 %v167, 4294901760
  %v597 = vsub.f32 %v167, %v596
  %598 = vmatpush1.msra.mxu0 %v597
  %599 = vmatprep.subr.mxu0 0.0
  %v600 = vand.u32 %v168, 4294901760
  %v601 = vsub.f32 %v168, %v600
  %602 = vmatpush1.msra.mxu0 %v601
  %603 = vmatprep.subr.mxu0 0.0
  %v604 = vand.u32 %v169, 4294901760
  %v605 = vsub.f32 %v169, %v604
  %606 = vmatpush1.msra.mxu0 %v605
  %607 = vmatprep.subr.mxu0 0.0
  %v608 = vand.u32 %v170, 4294901760
  %v609 = vsub.f32 %v170, %v608
  %610 = vmatpush1.msra.mxu0 %v609
  %611 = vmatprep.subr.mxu0 0.0
  %v612 = vand.u32 %v171, 4294901760
  %v613 = vsub.f32 %v171, %v612
  %614 = vmatpush1.msra.mxu0 %v613
  %615 = vmatprep.subr.mxu0 0.0
  %v616 = vand.u32 %v172, 4294901760
  %v617 = vsub.f32 %v172, %v616
  %618 = vmatpush1.msra.mxu0 %v617
  %619 = vmatprep.subr.mxu0 0.0
  %v620 = vand.u32 %v173, 4294901760
  %v621 = vsub.f32 %v173, %v620
  %622 = vmatpush1.msra.mxu0 %v621
  %623 = vmatprep.subr.mxu0 0.0
  %v624 = vand.u32 %v174, 4294901760
  %v625 = vsub.f32 %v174, %v624
  %626 = vmatpush1.msra.mxu0 %v625
  %627 = vmatprep.subr.mxu0 0.0
  %v628 = vand.u32 %v175, 4294901760
  %v629 = vsub.f32 %v175, %v628
  %630 = vmatpush1.msra.mxu0 %v629
  %631 = vmatprep.subr.mxu0 0.0
  %v632 = vand.u32 %v176, 4294901760
  %v633 = vsub.f32 %v176, %v632
  %634 = vmatpush1.msra.mxu0 %v633
  %635 = vmatprep.subr.mxu0 0.0
  %v636 = vand.u32 %v177, 4294901760
  %v637 = vsub.f32 %v177, %v636
  %638 = vmatpush1.msra.mxu0 %v637
  %639 = vmatprep.subr.mxu0 0.0
  %v640 = vand.u32 %v178, 4294901760
  %v641 = vsub.f32 %v178, %v640
  %642 = vmatpush1.msra.mxu0 %v641
  %643 = vmatprep.subr.mxu0 0.0
  %v644 = vand.u32 %v179, 4294901760
  %v645 = vsub.f32 %v179, %v644
  %646 = vmatpush1.msra.mxu0 %v645
  %647 = vmatprep.subr.mxu0 0.0
  %v648 = vand.u32 %v180, 4294901760
  %v649 = vsub.f32 %v180, %v648
  %650 = vmatpush1.msra.mxu0 %v649
  %651 = vmatprep.subr.mxu0 0.0
  %v652 = vand.u32 %v181, 4294901760
  %v653 = vsub.f32 %v181, %v652
  %654 = vmatpush1.msra.mxu0 %v653
  %655 = vmatprep.subr.mxu0 0.0
  %v656 = vand.u32 %v182, 4294901760
  %v657 = vsub.f32 %v182, %v656
  %658 = vmatpush1.msra.mxu0 %v657
  %v659 = vand.u32 %v185, 4294901760
  %v660 = vsub.f32 %v185, %v659
  %661 = vmatprep.mubr.f32.mxu0 %v660
  %v662 = vand.u32 %v183, 4294901760
  %v663 = vsub.f32 %v183, %v662
  %664 = vmatmul.mubr.f32.gmra.mrb[0].mxu0 %v663
  %v665 = vpop.f32.mrb[0].mxu0
  %v666 = vadd.f32 %v528, %v665
  %v667 = vpop.f32.mrb[0].mxu0
  %668 = vdwg.mxu0
  %669 = vmatprep.subr.mxu0 0.0
  %v670 = vand.u32 %v147, 4294901760
  %671 = vmatpush1.msra.mxu0 %v670
  %672 = vmatprep.subr.mxu0 0.0
  %v673 = vand.u32 %v148, 4294901760
  %674 = vmatpush1.msra.mxu0 %v673
  %675 = vmatprep.subr.mxu0 0.0
  %v676 = vand.u32 %v149, 4294901760
  %677 = vmatpush1.msra.mxu0 %v676
  %678 = vmatprep.subr.mxu0 0.0
  %v679 = vand.u32 %v150, 4294901760
  %680 = vmatpush1.msra.mxu0 %v679
  %681 = vmatprep.subr.mxu0 0.0
  %v682 = vand.u32 %v151, 4294901760
  %683 = vmatpush1.msra.mxu0 %v682
  %684 = vmatprep.subr.mxu0 0.0
  %v685 = vand.u32 %v152, 4294901760
  %686 = vmatpush1.msra.mxu0 %v685
  %687 = vmatprep.subr.mxu0 0.0
  %v688 = vand.u32 %v153, 4294901760
  %689 = vmatpush1.msra.mxu0 %v688
  %690 = vmatprep.subr.mxu0 0.0
  %v691 = vand.u32 %v154, 4294901760
  %692 = vmatpush1.msra.mxu0 %v691
  %693 = vmatprep.subr.mxu0 0.0
  %v694 = vand.u32 %v155, 4294901760
  %695 = vmatpush1.msra.mxu0 %v694
  %696 = vmatprep.subr.mxu0 0.0
  %v697 = vand.u32 %v156, 4294901760
  %698 = vmatpush1.msra.mxu0 %v697
  %699 = vmatprep.subr.mxu0 0.0
  %v700 = vand.u32 %v157, 4294901760
  %701 = vmatpush1.msra.mxu0 %v700
  %702 = vmatprep.subr.mxu0 0.0
  %v703 = vand.u32 %v158, 4294901760
  %704 = vmatpush1.msra.mxu0 %v703
  %705 = vmatprep.subr.mxu0 0.0
  %v706 = vand.u32 %v159, 4294901760
  %707 = vmatpush1.msra.mxu0 %v706
  %708 = vmatprep.subr.mxu0 0.0
  %v709 = vand.u32 %v160, 4294901760
  %710 = vmatpush1.msra.mxu0 %v709
  %711 = vmatprep.subr.mxu0 0.0
  %v712 = vand.u32 %v161, 4294901760
  %713 = vmatpush1.msra.mxu0 %v712
  %714 = vmatprep.subr.mxu0 0.0
  %v715 = vand.u32 %v162, 4294901760
  %716 = vmatpush1.msra.mxu0 %v715
  %717 = vmatprep.subr.mxu0 0.0
  %v718 = vand.u32 %v167, 4294901760
  %719 = vmatpush1.msra.mxu0 %v718
  %720 = vmatprep.subr.mxu0 0.0
  %v721 = vand.u32 %v168, 4294901760
  %722 = vmatpush1.msra.mxu0 %v721
  %723 = vmatprep.subr.mxu0 0.0
  %v724 = vand.u32 %v169, 4294901760
  %725 = vmatpush1.msra.mxu0 %v724
  %726 = vmatprep.subr.mxu0 0.0
  %v727 = vand.u32 %v170, 4294901760
  %728 = vmatpush1.msra.mxu0 %v727
  %729 = vmatprep.subr.mxu0 0.0
  %v730 = vand.u32 %v171, 4294901760
  %731 = vmatpush1.msra.mxu0 %v730
  %732 = vmatprep.subr.mxu0 0.0
  %v733 = vand.u32 %v172, 4294901760
  %734 = vmatpush1.msra.mxu0 %v733
  %735 = vmatprep.subr.mxu0 0.0
  %v736 = vand.u32 %v173, 4294901760
  %737 = vmatpush1.msra.mxu0 %v736
  %738 = vmatprep.subr.mxu0 0.0
  %v739 = vand.u32 %v174, 4294901760
  %740 = vmatpush1.msra.mxu0 %v739
  %741 = vmatprep.subr.mxu0 0.0
  %v742 = vand.u32 %v175, 4294901760
  %743 = vmatpush1.msra.mxu0 %v742
  %744 = vmatprep.subr.mxu0 0.0
  %v745 = vand.u32 %v176, 4294901760
  %746 = vmatpush1.msra.mxu0 %v745
  %747 = vmatprep.subr.mxu0 0.0
  %v748 = vand.u32 %v177, 4294901760
  %749 = vmatpush1.msra.mxu0 %v748
  %750 = vmatprep.subr.mxu0 0.0
  %v751 = vand.u32 %v178, 4294901760
  %752 = vmatpush1.msra.mxu0 %v751
  %753 = vmatprep.subr.mxu0 0.0
  %v754 = vand.u32 %v179, 4294901760
  %755 = vmatpush1.msra.mxu0 %v754
  %756 = vmatprep.subr.mxu0 0.0
  %v757 = vand.u32 %v180, 4294901760
  %758 = vmatpush1.msra.mxu0 %v757
  %759 = vmatprep.subr.mxu0 0.0
  %v760 = vand.u32 %v181, 4294901760
  %761 = vmatpush1.msra.mxu0 %v760
  %762 = vmatprep.subr.mxu0 0.0
  %v763 = vand.u32 %v182, 4294901760
  %764 = vmatpush1.msra.mxu0 %v763
  %v765 = vand.u32 %v185, 4294901760
  %v766 = vsub.f32 %v185, %v765
  %v767 = vand.u32 %v766, 4294901760
  %768 = vmatprep.mubr.f32.mxu0 %v767
  %v769 = vand.u32 %v183, 4294901760
  %v770 = vsub.f32 %v183, %v769
  %v771 = vand.u32 %v770, 4294901760
  %772 = vmatmul.mubr.f32.gmra.mrb[0].mxu0 %v771
  %v773 = vpop.f32.mrb[0].mxu0
  %v774 = vadd.f32 %v666, %v773
  %v775 = vpop.f32.mrb[0].mxu0
  %776 = vdwg.mxu0
  %777 = vmatprep.subr.mxu0 0.0
  %v778 = vand.u32 %v147, 4294901760
  %v779 = vsub.f32 %v147, %v778
  %v780 = vand.u32 %v779, 4294901760
  %781 = vmatpush1.msra.mxu0 %v780
  %782 = vmatprep.subr.mxu0 0.0
  %v783 = vand.u32 %v148, 4294901760
  %v784 = vsub.f32 %v148, %v783
  %v785 = vand.u32 %v784, 4294901760
  %786 = vmatpush1.msra.mxu0 %v785
  %787 = vmatprep.subr.mxu0 0.0
  %v788 = vand.u32 %v149, 4294901760
  %v789 = vsub.f32 %v149, %v788
  %v790 = vand.u32 %v789, 4294901760
  %791 = vmatpush1.msra.mxu0 %v790
  %792 = vmatprep.subr.mxu0 0.0
  %v793 = vand.u32 %v150, 4294901760
  %v794 = vsub.f32 %v150, %v793
  %v795 = vand.u32 %v794, 4294901760
  %796 = vmatpush1.msra.mxu0 %v795
  %797 = vmatprep.subr.mxu0 0.0
  %v798 = vand.u32 %v151, 4294901760
  %v799 = vsub.f32 %v151, %v798
  %v800 = vand.u32 %v799, 4294901760
  %801 = vmatpush1.msra.mxu0 %v800
  %802 = vmatprep.subr.mxu0 0.0
  %v803 = vand.u32 %v152, 4294901760
  %v804 = vsub.f32 %v152, %v803
  %v805 = vand.u32 %v804, 4294901760
  %806 = vmatpush1.msra.mxu0 %v805
  %807 = vmatprep.subr.mxu0 0.0
  %v808 = vand.u32 %v153, 4294901760
  %v809 = vsub.f32 %v153, %v808
  %v810 = vand.u32 %v809, 4294901760
  %811 = vmatpush1.msra.mxu0 %v810
  %812 = vmatprep.subr.mxu0 0.0
  %v813 = vand.u32 %v154, 4294901760
  %v814 = vsub.f32 %v154, %v813
  %v815 = vand.u32 %v814, 4294901760
  %816 = vmatpush1.msra.mxu0 %v815
  %817 = vmatprep.subr.mxu0 0.0
  %v818 = vand.u32 %v155, 4294901760
  %v819 = vsub.f32 %v155, %v818
  %v820 = vand.u32 %v819, 4294901760
  %821 = vmatpush1.msra.mxu0 %v820
  %822 = vmatprep.subr.mxu0 0.0
  %v823 = vand.u32 %v156, 4294901760
  %v824 = vsub.f32 %v156, %v823
  %v825 = vand.u32 %v824, 4294901760
  %826 = vmatpush1.msra.mxu0 %v825
  %827 = vmatprep.subr.mxu0 0.0
  %v828 = vand.u32 %v157, 4294901760
  %v829 = vsub.f32 %v157, %v828
  %v830 = vand.u32 %v829, 4294901760
  %831 = vmatpush1.msra.mxu0 %v830
  %832 = vmatprep.subr.mxu0 0.0
  %v833 = vand.u32 %v158, 4294901760
  %v834 = vsub.f32 %v158, %v833
  %v835 = vand.u32 %v834, 4294901760
  %836 = vmatpush1.msra.mxu0 %v835
  %837 = vmatprep.subr.mxu0 0.0
  %v838 = vand.u32 %v159, 4294901760
  %v839 = vsub.f32 %v159, %v838
  %v840 = vand.u32 %v839, 4294901760
  %841 = vmatpush1.msra.mxu0 %v840
  %842 = vmatprep.subr.mxu0 0.0
  %v843 = vand.u32 %v160, 4294901760
  %v844 = vsub.f32 %v160, %v843
  %v845 = vand.u32 %v844, 4294901760
  %846 = vmatpush1.msra.mxu0 %v845
  %847 = vmatprep.subr.mxu0 0.0
  %v848 = vand.u32 %v161, 4294901760
  %v849 = vsub.f32 %v161, %v848
  %v850 = vand.u32 %v849, 4294901760
  %851 = vmatpush1.msra.mxu0 %v850
  %852 = vmatprep.subr.mxu0 0.0
  %v853 = vand.u32 %v162, 4294901760
  %v854 = vsub.f32 %v162, %v853
  %v855 = vand.u32 %v854, 4294901760
  %856 = vmatpush1.msra.mxu0 %v855
  %857 = vmatprep.subr.mxu0 0.0
  %v858 = vand.u32 %v167, 4294901760
  %v859 = vsub.f32 %v167, %v858
  %v860 = vand.u32 %v859, 4294901760
  %861 = vmatpush1.msra.mxu0 %v860
  %862 = vmatprep.subr.mxu0 0.0
  %v863 = vand.u32 %v168, 4294901760
  %v864 = vsub.f32 %v168, %v863
  %v865 = vand.u32 %v864, 4294901760
  %866 = vmatpush1.msra.mxu0 %v865
  %867 = vmatprep.subr.mxu0 0.0
  %v868 = vand.u32 %v169, 4294901760
  %v869 = vsub.f32 %v169, %v868
  %v870 = vand.u32 %v869, 4294901760
  %871 = vmatpush1.msra.mxu0 %v870
  %872 = vmatprep.subr.mxu0 0.0
  %v873 = vand.u32 %v170, 4294901760
  %v874 = vsub.f32 %v170, %v873
  %v875 = vand.u32 %v874, 4294901760
  %876 = vmatpush1.msra.mxu0 %v875
  %877 = vmatprep.subr.mxu0 0.0
  %v878 = vand.u32 %v171, 4294901760
  %v879 = vsub.f32 %v171, %v878
  %v880 = vand.u32 %v879, 4294901760
  %881 = vmatpush1.msra.mxu0 %v880
  %882 = vmatprep.subr.mxu0 0.0
  %v883 = vand.u32 %v172, 4294901760
  %v884 = vsub.f32 %v172, %v883
  %v885 = vand.u32 %v884, 4294901760
  %886 = vmatpush1.msra.mxu0 %v885
  %887 = vmatprep.subr.mxu0 0.0
  %v888 = vand.u32 %v173, 4294901760
  %v889 = vsub.f32 %v173, %v888
  %v890 = vand.u32 %v889, 4294901760
  %891 = vmatpush1.msra.mxu0 %v890
  %892 = vmatprep.subr.mxu0 0.0
  %v893 = vand.u32 %v174, 4294901760
  %v894 = vsub.f32 %v174, %v893
  %v895 = vand.u32 %v894, 4294901760
  %896 = vmatpush1.msra.mxu0 %v895
  %897 = vmatprep.subr.mxu0 0.0
  %v898 = vand.u32 %v175, 4294901760
  %v899 = vsub.f32 %v175, %v898
  %v900 = vand.u32 %v899, 4294901760
  %901 = vmatpush1.msra.mxu0 %v900
  %902 = vmatprep.subr.mxu0 0.0
  %v903 = vand.u32 %v176, 4294901760
  %v904 = vsub.f32 %v176, %v903
  %v905 = vand.u32 %v904, 4294901760
  %906 = vmatpush1.msra.mxu0 %v905
  %907 = vmatprep.subr.mxu0 0.0
  %v908 = vand.u32 %v177, 4294901760
  %v909 = vsub.f32 %v177, %v908
  %v910 = vand.u32 %v909, 4294901760
  %911 = vmatpush1.msra.mxu0 %v910
  %912 = vmatprep.subr.mxu0 0.0
  %v913 = vand.u32 %v178, 4294901760
  %v914 = vsub.f32 %v178, %v913
  %v915 = vand.u32 %v914, 4294901760
  %916 = vmatpush1.msra.mxu0 %v915
  %917 = vmatprep.subr.mxu0 0.0
  %v918 = vand.u32 %v179, 4294901760
  %v919 = vsub.f32 %v179, %v918
  %v920 = vand.u32 %v919, 4294901760
  %921 = vmatpush1.msra.mxu0 %v920
  %922 = vmatprep.subr.mxu0 0.0
  %v923 = vand.u32 %v180, 4294901760
  %v924 = vsub.f32 %v180, %v923
  %v925 = vand.u32 %v924, 4294901760
  %926 = vmatpush1.msra.mxu0 %v925
  %927 = vmatprep.subr.mxu0 0.0
  %v928 = vand.u32 %v181, 4294901760
  %v929 = vsub.f32 %v181, %v928
  %v930 = vand.u32 %v929, 4294901760
  %931 = vmatpush1.msra.mxu0 %v930
  %932 = vmatprep.subr.mxu0 0.0
  %v933 = vand.u32 %v182, 4294901760
  %v934 = vsub.f32 %v182, %v933
  %v935 = vand.u32 %v934, 4294901760
  %936 = vmatpush1.msra.mxu0 %v935
  %v937 = vand.u32 %v185, 4294901760
  %938 = vmatprep.mubr.f32.mxu0 %v937
  %v939 = vand.u32 %v183, 4294901760
  %940 = vmatmul.mubr.f32.gmra.mrb[0].mxu0 %v939
  %v941 = vpop.f32.mrb[0].mxu0
  %v942 = vadd.f32 %v774, %v941
  %v943 = vpop.f32.mrb[0].mxu0
  %944 = vdwg.mxu0
  %945 = vmatprep.subr.mxu0 0.0
  %v946 = vand.u32 %v147, 4294901760
  %947 = vmatpush1.msra.mxu0 %v946
  %948 = vmatprep.subr.mxu0 0.0
  %v949 = vand.u32 %v148, 4294901760
  %950 = vmatpush1.msra.mxu0 %v949
  %951 = vmatprep.subr.mxu0 0.0
  %v952 = vand.u32 %v149, 4294901760
  %953 = vmatpush1.msra.mxu0 %v952
  %954 = vmatprep.subr.mxu0 0.0
  %v955 = vand.u32 %v150, 4294901760
  %956 = vmatpush1.msra.mxu0 %v955
  %957 = vmatprep.subr.mxu0 0.0
  %v958 = vand.u32 %v151, 4294901760
  %959 = vmatpush1.msra.mxu0 %v958
  %960 = vmatprep.subr.mxu0 0.0
  %v961 = vand.u32 %v152, 4294901760
  %962 = vmatpush1.msra.mxu0 %v961
  %963 = vmatprep.subr.mxu0 0.0
  %v964 = vand.u32 %v153, 4294901760
  %965 = vmatpush1.msra.mxu0 %v964
  %966 = vmatprep.subr.mxu0 0.0
  %v967 = vand.u32 %v154, 4294901760
  %968 = vmatpush1.msra.mxu0 %v967
  %969 = vmatprep.subr.mxu0 0.0
  %v970 = vand.u32 %v155, 4294901760
  %971 = vmatpush1.msra.mxu0 %v970
  %972 = vmatprep.subr.mxu0 0.0
  %v973 = vand.u32 %v156, 4294901760
  %974 = vmatpush1.msra.mxu0 %v973
  %975 = vmatprep.subr.mxu0 0.0
  %v976 = vand.u32 %v157, 4294901760
  %977 = vmatpush1.msra.mxu0 %v976
  %978 = vmatprep.subr.mxu0 0.0
  %v979 = vand.u32 %v158, 4294901760
  %980 = vmatpush1.msra.mxu0 %v979
  %981 = vmatprep.subr.mxu0 0.0
  %v982 = vand.u32 %v159, 4294901760
  %983 = vmatpush1.msra.mxu0 %v982
  %984 = vmatprep.subr.mxu0 0.0
  %v985 = vand.u32 %v160, 4294901760
  %986 = vmatpush1.msra.mxu0 %v985
  %987 = vmatprep.subr.mxu0 0.0
  %v988 = vand.u32 %v161, 4294901760
  %989 = vmatpush1.msra.mxu0 %v988
  %990 = vmatprep.subr.mxu0 0.0
  %v991 = vand.u32 %v162, 4294901760
  %992 = vmatpush1.msra.mxu0 %v991
  %993 = vmatprep.subr.mxu0 0.0
  %v994 = vand.u32 %v167, 4294901760
  %995 = vmatpush1.msra.mxu0 %v994
  %996 = vmatprep.subr.mxu0 0.0
  %v997 = vand.u32 %v168, 4294901760
  %998 = vmatpush1.msra.mxu0 %v997
  %999 = vmatprep.subr.mxu0 0.0
  %v1000 = vand.u32 %v169, 4294901760
  %1001 = vmatpush1.msra.mxu0 %v1000
  %1002 = vmatprep.subr.mxu0 0.0
  %v1003 = vand.u32 %v170, 4294901760
  %1004 = vmatpush1.msra.mxu0 %v1003
  %1005 = vmatprep.subr.mxu0 0.0
  %v1006 = vand.u32 %v171, 4294901760
  %1007 = vmatpush1.msra.mxu0 %v1006
  %1008 = vmatprep.subr.mxu0 0.0
  %v1009 = vand.u32 %v172, 4294901760
  %1010 = vmatpush1.msra.mxu0 %v1009
  %1011 = vmatprep.subr.mxu0 0.0
  %v1012 = vand.u32 %v173, 4294901760
  %1013 = vmatpush1.msra.mxu0 %v1012
  %1014 = vmatprep.subr.mxu0 0.0
  %v1015 = vand.u32 %v174, 4294901760
  %1016 = vmatpush1.msra.mxu0 %v1015
  %1017 = vmatprep.subr.mxu0 0.0
  %v1018 = vand.u32 %v175, 4294901760
  %1019 = vmatpush1.msra.mxu0 %v1018
  %1020 = vmatprep.subr.mxu0 0.0
  %v1021 = vand.u32 %v176, 4294901760
  %1022 = vmatpush1.msra.mxu0 %v1021
  %1023 = vmatprep.subr.mxu0 0.0
  %v1024 = vand.u32 %v177, 4294901760
  %1025 = vmatpush1.msra.mxu0 %v1024
  %1026 = vmatprep.subr.mxu0 0.0
  %v1027 = vand.u32 %v178, 4294901760
  %1028 = vmatpush1.msra.mxu0 %v1027
  %1029 = vmatprep.subr.mxu0 0.0
  %v1030 = vand.u32 %v179, 4294901760
  %1031 = vmatpush1.msra.mxu0 %v1030
  %1032 = vmatprep.subr.mxu0 0.0
  %v1033 = vand.u32 %v180, 4294901760
  %1034 = vmatpush1.msra.mxu0 %v1033
  %1035 = vmatprep.subr.mxu0 0.0
  %v1036 = vand.u32 %v181, 4294901760
  %1037 = vmatpush1.msra.mxu0 %v1036
  %1038 = vmatprep.subr.mxu0 0.0
  %v1039 = vand.u32 %v182, 4294901760
  %1040 = vmatpush1.msra.mxu0 %v1039
  %v1041 = vand.u32 %v185, 4294901760
  %1042 = vmatprep.mubr.f32.mxu0 %v1041
  %v1043 = vand.u32 %v183, 4294901760
  %1044 = vmatmul.mubr.f32.gmra.mrb[0].mxu0 %v1043
  %v1045 = vpop.f32.mrb[0].mxu0
  %v1046 = vadd.f32 %v942, %v1045
  %v1047 = vpop.f32.mrb[0].mxu0
  %1048 = vdwg.mxu0
  %s1049 = scalar_lea.vmem %s0, 16
  %v1050 = vld [vmem:[%s1049] sm:$0x3]
  %v1051 = vlaneseq
  %v1052 = vshrl.u32 %v1051, 7
  %v1053 = vsub.s32 0, %v1052
  %v1054 = vrot.slane %v1050, %v1053
  %v1055 = vmul.f32 %v1046, %v1054
  %s1056 = scalar_lea.vmem %s1, 8
  %v1057 = vld [vmem:[%s1056] sm:$0xff]
  %v1059 = vcombine.high %v1057, %v1057
  %1061 = vmatprep.subr.mxu0 0.0
  %v1062 = vand.u32 %v147, 4294901760
  %1063 = vmatpush1.msra.mxu0 %v1062
  %1064 = vmatprep.subr.mxu0 0.0
  %v1065 = vand.u32 %v148, 4294901760
  %1066 = vmatpush1.msra.mxu0 %v1065
  %1067 = vmatprep.subr.mxu0 0.0
  %v1068 = vand.u32 %v149, 4294901760
  %1069 = vmatpush1.msra.mxu0 %v1068
  %1070 = vmatprep.subr.mxu0 0.0
  %v1071 = vand.u32 %v150, 4294901760
  %1072 = vmatpush1.msra.mxu0 %v1071
  %1073 = vmatprep.subr.mxu0 0.0
  %v1074 = vand.u32 %v151, 4294901760
  %1075 = vmatpush1.msra.mxu0 %v1074
  %1076 = vmatprep.subr.mxu0 0.0
  %v1077 = vand.u32 %v152, 4294901760
  %1078 = vmatpush1.msra.mxu0 %v1077
  %1079 = vmatprep.subr.mxu0 0.0
  %v1080 = vand.u32 %v153, 4294901760
  %1081 = vmatpush1.msra.mxu0 %v1080
  %1082 = vmatprep.subr.mxu0 0.0
  %v1083 = vand.u32 %v154, 4294901760
  %1084 = vmatpush1.msra.mxu0 %v1083
  %1085 = vmatprep.subr.mxu0 0.0
  %v1086 = vand.u32 %v155, 4294901760
  %1087 = vmatpush1.msra.mxu0 %v1086
  %1088 = vmatprep.subr.mxu0 0.0
  %v1089 = vand.u32 %v156, 4294901760
  %1090 = vmatpush1.msra.mxu0 %v1089
  %1091 = vmatprep.subr.mxu0 0.0
  %v1092 = vand.u32 %v157, 4294901760
  %1093 = vmatpush1.msra.mxu0 %v1092
  %1094 = vmatprep.subr.mxu0 0.0
  %v1095 = vand.u32 %v158, 4294901760
  %1096 = vmatpush1.msra.mxu0 %v1095
  %1097 = vmatprep.subr.mxu0 0.0
  %v1098 = vand.u32 %v159, 4294901760
  %1099 = vmatpush1.msra.mxu0 %v1098
  %1100 = vmatprep.subr.mxu0 0.0
  %v1101 = vand.u32 %v160, 4294901760
  %1102 = vmatpush1.msra.mxu0 %v1101
  %1103 = vmatprep.subr.mxu0 0.0
  %v1104 = vand.u32 %v161, 4294901760
  %1105 = vmatpush1.msra.mxu0 %v1104
  %1106 = vmatprep.subr.mxu0 0.0
  %v1107 = vand.u32 %v162, 4294901760
  %1108 = vmatpush1.msra.mxu0 %v1107
  %1109 = vmatprep.subr.mxu0 0.0
  %v1110 = vand.u32 %v167, 4294901760
  %1111 = vmatpush1.msra.mxu0 %v1110
  %1112 = vmatprep.subr.mxu0 0.0
  %v1113 = vand.u32 %v168, 4294901760
  %1114 = vmatpush1.msra.mxu0 %v1113
  %1115 = vmatprep.subr.mxu0 0.0
  %v1116 = vand.u32 %v169, 4294901760
  %1117 = vmatpush1.msra.mxu0 %v1116
  %1118 = vmatprep.subr.mxu0 0.0
  %v1119 = vand.u32 %v170, 4294901760
  %1120 = vmatpush1.msra.mxu0 %v1119
  %1121 = vmatprep.subr.mxu0 0.0
  %v1122 = vand.u32 %v171, 4294901760
  %1123 = vmatpush1.msra.mxu0 %v1122
  %1124 = vmatprep.subr.mxu0 0.0
  %v1125 = vand.u32 %v172, 4294901760
  %1126 = vmatpush1.msra.mxu0 %v1125
  %1127 = vmatprep.subr.mxu0 0.0
  %v1128 = vand.u32 %v173, 4294901760
  %1129 = vmatpush1.msra.mxu0 %v1128
  %1130 = vmatprep.subr.mxu0 0.0
  %v1131 = vand.u32 %v174, 4294901760
  %1132 = vmatpush1.msra.mxu0 %v1131
  %1133 = vmatprep.subr.mxu0 0.0
  %v1134 = vand.u32 %v175, 4294901760
  %1135 = vmatpush1.msra.mxu0 %v1134
  %1136 = vmatprep.subr.mxu0 0.0
  %v1137 = vand.u32 %v176, 4294901760
  %1138 = vmatpush1.msra.mxu0 %v1137
  %1139 = vmatprep.subr.mxu0 0.0
  %v1140 = vand.u32 %v177, 4294901760
  %1141 = vmatpush1.msra.mxu0 %v1140
  %1142 = vmatprep.subr.mxu0 0.0
  %v1143 = vand.u32 %v178, 4294901760
  %1144 = vmatpush1.msra.mxu0 %v1143
  %1145 = vmatprep.subr.mxu0 0.0
  %v1146 = vand.u32 %v179, 4294901760
  %1147 = vmatpush1.msra.mxu0 %v1146
  %1148 = vmatprep.subr.mxu0 0.0
  %v1149 = vand.u32 %v180, 4294901760
  %1150 = vmatpush1.msra.mxu0 %v1149
  %1151 = vmatprep.subr.mxu0 0.0
  %v1152 = vand.u32 %v181, 4294901760
  %1153 = vmatpush1.msra.mxu0 %v1152
  %1154 = vmatprep.subr.mxu0 0.0
  %v1155 = vand.u32 %v182, 4294901760
  %1156 = vmatpush1.msra.mxu0 %v1155
  %v1157 = vand.u32 %v1059, 4294901760
  %v1158 = vsub.f32 %v1059, %v1157
  %v1159 = vand.u32 %v1158, 4294901760
  %v1160 = vsub.f32 %v1158, %v1159
  %v1161 = vand.u32 %v1160, 4294901760
  %1162 = vmatprep.mubr.f32.mxu0 %v1161
  %v1163 = vand.u32 %v1057, 4294901760
  %v1164 = vsub.f32 %v1057, %v1163
  %v1165 = vand.u32 %v1164, 4294901760
  %v1166 = vsub.f32 %v1164, %v1165
  %v1167 = vand.u32 %v1166, 4294901760
  %1168 = vmatmul.mubr.f32.gmra.mrb[0].mxu0 %v1167
  %v1169 = vpop.f32.mrb[0].mxu0
  %v1170 = vadd.f32 0.0, %v1169
  %v1171 = vpop.f32.mrb[0].mxu0
  %1172 = vdwg.mxu0
  %1173 = vmatprep.subr.mxu0 0.0
  %v1174 = vand.u32 %v147, 4294901760
  %v1175 = vsub.f32 %v147, %v1174
  %v1176 = vand.u32 %v1175, 4294901760
  %v1177 = vsub.f32 %v1175, %v1176
  %v1178 = vand.u32 %v1177, 4294901760
  %1179 = vmatpush1.msra.mxu0 %v1178
  %1180 = vmatprep.subr.mxu0 0.0
  %v1181 = vand.u32 %v148, 4294901760
  %v1182 = vsub.f32 %v148, %v1181
  %v1183 = vand.u32 %v1182, 4294901760
  %v1184 = vsub.f32 %v1182, %v1183
  %v1185 = vand.u32 %v1184, 4294901760
  %1186 = vmatpush1.msra.mxu0 %v1185
  %1187 = vmatprep.subr.mxu0 0.0
  %v1188 = vand.u32 %v149, 4294901760
  %v1189 = vsub.f32 %v149, %v1188
  %v1190 = vand.u32 %v1189, 4294901760
  %v1191 = vsub.f32 %v1189, %v1190
  %v1192 = vand.u32 %v1191, 4294901760
  %1193 = vmatpush1.msra.mxu0 %v1192
  %1194 = vmatprep.subr.mxu0 0.0
  %v1195 = vand.u32 %v150, 4294901760
  %v1196 = vsub.f32 %v150, %v1195
  %v1197 = vand.u32 %v1196, 4294901760
  %v1198 = vsub.f32 %v1196, %v1197
  %v1199 = vand.u32 %v1198, 4294901760
  %1200 = vmatpush1.msra.mxu0 %v1199
  %1201 = vmatprep.subr.mxu0 0.0
  %v1202 = vand.u32 %v151, 4294901760
  %v1203 = vsub.f32 %v151, %v1202
  %v1204 = vand.u32 %v1203, 4294901760
  %v1205 = vsub.f32 %v1203, %v1204
  %v1206 = vand.u32 %v1205, 4294901760
  %1207 = vmatpush1.msra.mxu0 %v1206
  %1208 = vmatprep.subr.mxu0 0.0
  %v1209 = vand.u32 %v152, 4294901760
  %v1210 = vsub.f32 %v152, %v1209
  %v1211 = vand.u32 %v1210, 4294901760
  %v1212 = vsub.f32 %v1210, %v1211
  %v1213 = vand.u32 %v1212, 4294901760
  %1214 = vmatpush1.msra.mxu0 %v1213
  %1215 = vmatprep.subr.mxu0 0.0
  %v1216 = vand.u32 %v153, 4294901760
  %v1217 = vsub.f32 %v153, %v1216
  %v1218 = vand.u32 %v1217, 4294901760
  %v1219 = vsub.f32 %v1217, %v1218
  %v1220 = vand.u32 %v1219, 4294901760
  %1221 = vmatpush1.msra.mxu0 %v1220
  %1222 = vmatprep.subr.mxu0 0.0
  %v1223 = vand.u32 %v154, 4294901760
  %v1224 = vsub.f32 %v154, %v1223
  %v1225 = vand.u32 %v1224, 4294901760
  %v1226 = vsub.f32 %v1224, %v1225
  %v1227 = vand.u32 %v1226, 4294901760
  %1228 = vmatpush1.msra.mxu0 %v1227
  %1229 = vmatprep.subr.mxu0 0.0
  %v1230 = vand.u32 %v155, 4294901760
  %v1231 = vsub.f32 %v155, %v1230
  %v1232 = vand.u32 %v1231, 4294901760
  %v1233 = vsub.f32 %v1231, %v1232
  %v1234 = vand.u32 %v1233, 4294901760
  %1235 = vmatpush1.msra.mxu0 %v1234
  %1236 = vmatprep.subr.mxu0 0.0
  %v1237 = vand.u32 %v156, 4294901760
  %v1238 = vsub.f32 %v156, %v1237
  %v1239 = vand.u32 %v1238, 4294901760
  %v1240 = vsub.f32 %v1238, %v1239
  %v1241 = vand.u32 %v1240, 4294901760
  %1242 = vmatpush1.msra.mxu0 %v1241
  %1243 = vmatprep.subr.mxu0 0.0
  %v1244 = vand.u32 %v157, 4294901760
  %v1245 = vsub.f32 %v157, %v1244
  %v1246 = vand.u32 %v1245, 4294901760
  %v1247 = vsub.f32 %v1245, %v1246
  %v1248 = vand.u32 %v1247, 4294901760
  %1249 = vmatpush1.msra.mxu0 %v1248
  %1250 = vmatprep.subr.mxu0 0.0
  %v1251 = vand.u32 %v158, 4294901760
  %v1252 = vsub.f32 %v158, %v1251
  %v1253 = vand.u32 %v1252, 4294901760
  %v1254 = vsub.f32 %v1252, %v1253
  %v1255 = vand.u32 %v1254, 4294901760
  %1256 = vmatpush1.msra.mxu0 %v1255
  %1257 = vmatprep.subr.mxu0 0.0
  %v1258 = vand.u32 %v159, 4294901760
  %v1259 = vsub.f32 %v159, %v1258
  %v1260 = vand.u32 %v1259, 4294901760
  %v1261 = vsub.f32 %v1259, %v1260
  %v1262 = vand.u32 %v1261, 4294901760
  %1263 = vmatpush1.msra.mxu0 %v1262
  %1264 = vmatprep.subr.mxu0 0.0
  %v1265 = vand.u32 %v160, 4294901760
  %v1266 = vsub.f32 %v160, %v1265
  %v1267 = vand.u32 %v1266, 4294901760
  %v1268 = vsub.f32 %v1266, %v1267
  %v1269 = vand.u32 %v1268, 4294901760
  %1270 = vmatpush1.msra.mxu0 %v1269
  %1271 = vmatprep.subr.mxu0 0.0
  %v1272 = vand.u32 %v161, 4294901760
  %v1273 = vsub.f32 %v161, %v1272
  %v1274 = vand.u32 %v1273, 4294901760
  %v1275 = vsub.f32 %v1273, %v1274
  %v1276 = vand.u32 %v1275, 4294901760
  %1277 = vmatpush1.msra.mxu0 %v1276
  %1278 = vmatprep.subr.mxu0 0.0
  %v1279 = vand.u32 %v162, 4294901760
  %v1280 = vsub.f32 %v162, %v1279
  %v1281 = vand.u32 %v1280, 4294901760
  %v1282 = vsub.f32 %v1280, %v1281
  %v1283 = vand.u32 %v1282, 4294901760
  %1284 = vmatpush1.msra.mxu0 %v1283
  %1285 = vmatprep.subr.mxu0 0.0
  %v1286 = vand.u32 %v167, 4294901760
  %v1287 = vsub.f32 %v167, %v1286
  %v1288 = vand.u32 %v1287, 4294901760
  %v1289 = vsub.f32 %v1287, %v1288
  %v1290 = vand.u32 %v1289, 4294901760
  %1291 = vmatpush1.msra.mxu0 %v1290
  %1292 = vmatprep.subr.mxu0 0.0
  %v1293 = vand.u32 %v168, 4294901760
  %v1294 = vsub.f32 %v168, %v1293
  %v1295 = vand.u32 %v1294, 4294901760
  %v1296 = vsub.f32 %v1294, %v1295
  %v1297 = vand.u32 %v1296, 4294901760
  %1298 = vmatpush1.msra.mxu0 %v1297
  %1299 = vmatprep.subr.mxu0 0.0
  %v1300 = vand.u32 %v169, 4294901760
  %v1301 = vsub.f32 %v169, %v1300
  %v1302 = vand.u32 %v1301, 4294901760
  %v1303 = vsub.f32 %v1301, %v1302
  %v1304 = vand.u32 %v1303, 4294901760
  %1305 = vmatpush1.msra.mxu0 %v1304
  %1306 = vmatprep.subr.mxu0 0.0
  %v1307 = vand.u32 %v170, 4294901760
  %v1308 = vsub.f32 %v170, %v1307
  %v1309 = vand.u32 %v1308, 4294901760
  %v1310 = vsub.f32 %v1308, %v1309
  %v1311 = vand.u32 %v1310, 4294901760
  %1312 = vmatpush1.msra.mxu0 %v1311
  %1313 = vmatprep.subr.mxu0 0.0
  %v1314 = vand.u32 %v171, 4294901760
  %v1315 = vsub.f32 %v171, %v1314
  %v1316 = vand.u32 %v1315, 4294901760
  %v1317 = vsub.f32 %v1315, %v1316
  %v1318 = vand.u32 %v1317, 4294901760
  %1319 = vmatpush1.msra.mxu0 %v1318
  %1320 = vmatprep.subr.mxu0 0.0
  %v1321 = vand.u32 %v172, 4294901760
  %v1322 = vsub.f32 %v172, %v1321
  %v1323 = vand.u32 %v1322, 4294901760
  %v1324 = vsub.f32 %v1322, %v1323
  %v1325 = vand.u32 %v1324, 4294901760
  %1326 = vmatpush1.msra.mxu0 %v1325
  %1327 = vmatprep.subr.mxu0 0.0
  %v1328 = vand.u32 %v173, 4294901760
  %v1329 = vsub.f32 %v173, %v1328
  %v1330 = vand.u32 %v1329, 4294901760
  %v1331 = vsub.f32 %v1329, %v1330
  %v1332 = vand.u32 %v1331, 4294901760
  %1333 = vmatpush1.msra.mxu0 %v1332
  %1334 = vmatprep.subr.mxu0 0.0
  %v1335 = vand.u32 %v174, 4294901760
  %v1336 = vsub.f32 %v174, %v1335
  %v1337 = vand.u32 %v1336, 4294901760
  %v1338 = vsub.f32 %v1336, %v1337
  %v1339 = vand.u32 %v1338, 4294901760
  %1340 = vmatpush1.msra.mxu0 %v1339
  %1341 = vmatprep.subr.mxu0 0.0
  %v1342 = vand.u32 %v175, 4294901760
  %v1343 = vsub.f32 %v175, %v1342
  %v1344 = vand.u32 %v1343, 4294901760
  %v1345 = vsub.f32 %v1343, %v1344
  %v1346 = vand.u32 %v1345, 4294901760
  %1347 = vmatpush1.msra.mxu0 %v1346
  %1348 = vmatprep.subr.mxu0 0.0
  %v1349 = vand.u32 %v176, 4294901760
  %v1350 = vsub.f32 %v176, %v1349
  %v1351 = vand.u32 %v1350, 4294901760
  %v1352 = vsub.f32 %v1350, %v1351
  %v1353 = vand.u32 %v1352, 4294901760
  %1354 = vmatpush1.msra.mxu0 %v1353
  %1355 = vmatprep.subr.mxu0 0.0
  %v1356 = vand.u32 %v177, 4294901760
  %v1357 = vsub.f32 %v177, %v1356
  %v1358 = vand.u32 %v1357, 4294901760
  %v1359 = vsub.f32 %v1357, %v1358
  %v1360 = vand.u32 %v1359, 4294901760
  %1361 = vmatpush1.msra.mxu0 %v1360
  %1362 = vmatprep.subr.mxu0 0.0
  %v1363 = vand.u32 %v178, 4294901760
  %v1364 = vsub.f32 %v178, %v1363
  %v1365 = vand.u32 %v1364, 4294901760
  %v1366 = vsub.f32 %v1364, %v1365
  %v1367 = vand.u32 %v1366, 4294901760
  %1368 = vmatpush1.msra.mxu0 %v1367
  %1369 = vmatprep.subr.mxu0 0.0
  %v1370 = vand.u32 %v179, 4294901760
  %v1371 = vsub.f32 %v179, %v1370
  %v1372 = vand.u32 %v1371, 4294901760
  %v1373 = vsub.f32 %v1371, %v1372
  %v1374 = vand.u32 %v1373, 4294901760
  %1375 = vmatpush1.msra.mxu0 %v1374
  %1376 = vmatprep.subr.mxu0 0.0
  %v1377 = vand.u32 %v180, 4294901760
  %v1378 = vsub.f32 %v180, %v1377
  %v1379 = vand.u32 %v1378, 4294901760
  %v1380 = vsub.f32 %v1378, %v1379
  %v1381 = vand.u32 %v1380, 4294901760
  %1382 = vmatpush1.msra.mxu0 %v1381
  %1383 = vmatprep.subr.mxu0 0.0
  %v1384 = vand.u32 %v181, 4294901760
  %v1385 = vsub.f32 %v181, %v1384
  %v1386 = vand.u32 %v1385, 4294901760
  %v1387 = vsub.f32 %v1385, %v1386
  %v1388 = vand.u32 %v1387, 4294901760
  %1389 = vmatpush1.msra.mxu0 %v1388
  %1390 = vmatprep.subr.mxu0 0.0
  %v1391 = vand.u32 %v182, 4294901760
  %v1392 = vsub.f32 %v182, %v1391
  %v1393 = vand.u32 %v1392, 4294901760
  %v1394 = vsub.f32 %v1392, %v1393
  %v1395 = vand.u32 %v1394, 4294901760
  %1396 = vmatpush1.msra.mxu0 %v1395
  %v1397 = vand.u32 %v1059, 4294901760
  %1398 = vmatprep.mubr.f32.mxu0 %v1397
  %v1399 = vand.u32 %v1057, 4294901760
  %1400 = vmatmul.mubr.f32.gmra.mrb[0].mxu0 %v1399
  %v1401 = vpop.f32.mrb[0].mxu0
  %v1402 = vadd.f32 %v1170, %v1401
  %v1403 = vpop.f32.mrb[0].mxu0
  %1404 = vdwg.mxu0
  %1405 = vmatprep.subr.mxu0 0.0
  %v1406 = vand.u32 %v147, 4294901760
  %v1407 = vsub.f32 %v147, %v1406
  %1408 = vmatpush1.msra.mxu0 %v1407
  %1409 = vmatprep.subr.mxu0 0.0
  %v1410 = vand.u32 %v148, 4294901760
  %v1411 = vsub.f32 %v148, %v1410
  %1412 = vmatpush1.msra.mxu0 %v1411
  %1413 = vmatprep.subr.mxu0 0.0
  %v1414 = vand.u32 %v149, 4294901760
  %v1415 = vsub.f32 %v149, %v1414
  %1416 = vmatpush1.msra.mxu0 %v1415
  %1417 = vmatprep.subr.mxu0 0.0
  %v1418 = vand.u32 %v150, 4294901760
  %v1419 = vsub.f32 %v150, %v1418
  %1420 = vmatpush1.msra.mxu0 %v1419
  %1421 = vmatprep.subr.mxu0 0.0
  %v1422 = vand.u32 %v151, 4294901760
  %v1423 = vsub.f32 %v151, %v1422
  %1424 = vmatpush1.msra.mxu0 %v1423
  %1425 = vmatprep.subr.mxu0 0.0
  %v1426 = vand.u32 %v152, 4294901760
  %v1427 = vsub.f32 %v152, %v1426
  %1428 = vmatpush1.msra.mxu0 %v1427
  %1429 = vmatprep.subr.mxu0 0.0
  %v1430 = vand.u32 %v153, 4294901760
  %v1431 = vsub.f32 %v153, %v1430
  %1432 = vmatpush1.msra.mxu0 %v1431
  %1433 = vmatprep.subr.mxu0 0.0
  %v1434 = vand.u32 %v154, 4294901760
  %v1435 = vsub.f32 %v154, %v1434
  %1436 = vmatpush1.msra.mxu0 %v1435
  %1437 = vmatprep.subr.mxu0 0.0
  %v1438 = vand.u32 %v155, 4294901760
  %v1439 = vsub.f32 %v155, %v1438
  %1440 = vmatpush1.msra.mxu0 %v1439
  %1441 = vmatprep.subr.mxu0 0.0
  %v1442 = vand.u32 %v156, 4294901760
  %v1443 = vsub.f32 %v156, %v1442
  %1444 = vmatpush1.msra.mxu0 %v1443
  %1445 = vmatprep.subr.mxu0 0.0
  %v1446 = vand.u32 %v157, 4294901760
  %v1447 = vsub.f32 %v157, %v1446
  %1448 = vmatpush1.msra.mxu0 %v1447
  %1449 = vmatprep.subr.mxu0 0.0
  %v1450 = vand.u32 %v158, 4294901760
  %v1451 = vsub.f32 %v158, %v1450
  %1452 = vmatpush1.msra.mxu0 %v1451
  %1453 = vmatprep.subr.mxu0 0.0
  %v1454 = vand.u32 %v159, 4294901760
  %v1455 = vsub.f32 %v159, %v1454
  %1456 = vmatpush1.msra.mxu0 %v1455
  %1457 = vmatprep.subr.mxu0 0.0
  %v1458 = vand.u32 %v160, 4294901760
  %v1459 = vsub.f32 %v160, %v1458
  %1460 = vmatpush1.msra.mxu0 %v1459
  %1461 = vmatprep.subr.mxu0 0.0
  %v1462 = vand.u32 %v161, 4294901760
  %v1463 = vsub.f32 %v161, %v1462
  %1464 = vmatpush1.msra.mxu0 %v1463
  %1465 = vmatprep.subr.mxu0 0.0
  %v1466 = vand.u32 %v162, 4294901760
  %v1467 = vsub.f32 %v162, %v1466
  %1468 = vmatpush1.msra.mxu0 %v1467
  %1469 = vmatprep.subr.mxu0 0.0
  %v1470 = vand.u32 %v167, 4294901760
  %v1471 = vsub.f32 %v167, %v1470
  %1472 = vmatpush1.msra.mxu0 %v1471
  %1473 = vmatprep.subr.mxu0 0.0
  %v1474 = vand.u32 %v168, 4294901760
  %v1475 = vsub.f32 %v168, %v1474
  %1476 = vmatpush1.msra.mxu0 %v1475
  %1477 = vmatprep.subr.mxu0 0.0
  %v1478 = vand.u32 %v169, 4294901760
  %v1479 = vsub.f32 %v169, %v1478
  %1480 = vmatpush1.msra.mxu0 %v1479
  %1481 = vmatprep.subr.mxu0 0.0
  %v1482 = vand.u32 %v170, 4294901760
  %v1483 = vsub.f32 %v170, %v1482
  %1484 = vmatpush1.msra.mxu0 %v1483
  %1485 = vmatprep.subr.mxu0 0.0
  %v1486 = vand.u32 %v171, 4294901760
  %v1487 = vsub.f32 %v171, %v1486
  %1488 = vmatpush1.msra.mxu0 %v1487
  %1489 = vmatprep.subr.mxu0 0.0
  %v1490 = vand.u32 %v172, 4294901760
  %v1491 = vsub.f32 %v172, %v1490
  %1492 = vmatpush1.msra.mxu0 %v1491
  %1493 = vmatprep.subr.mxu0 0.0
  %v1494 = vand.u32 %v173, 4294901760
  %v1495 = vsub.f32 %v173, %v1494
  %1496 = vmatpush1.msra.mxu0 %v1495
  %1497 = vmatprep.subr.mxu0 0.0
  %v1498 = vand.u32 %v174, 4294901760
  %v1499 = vsub.f32 %v174, %v1498
  %1500 = vmatpush1.msra.mxu0 %v1499
  %1501 = vmatprep.subr.mxu0 0.0
  %v1502 = vand.u32 %v175, 4294901760
  %v1503 = vsub.f32 %v175, %v1502
  %1504 = vmatpush1.msra.mxu0 %v1503
  %1505 = vmatprep.subr.mxu0 0.0
  %v1506 = vand.u32 %v176, 4294901760
  %v1507 = vsub.f32 %v176, %v1506
  %1508 = vmatpush1.msra.mxu0 %v1507
  %1509 = vmatprep.subr.mxu0 0.0
  %v1510 = vand.u32 %v177, 4294901760
  %v1511 = vsub.f32 %v177, %v1510
  %1512 = vmatpush1.msra.mxu0 %v1511
  %1513 = vmatprep.subr.mxu0 0.0
  %v1514 = vand.u32 %v178, 4294901760
  %v1515 = vsub.f32 %v178, %v1514
  %1516 = vmatpush1.msra.mxu0 %v1515
  %1517 = vmatprep.subr.mxu0 0.0
  %v1518 = vand.u32 %v179, 4294901760
  %v1519 = vsub.f32 %v179, %v1518
  %1520 = vmatpush1.msra.mxu0 %v1519
  %1521 = vmatprep.subr.mxu0 0.0
  %v1522 = vand.u32 %v180, 4294901760
  %v1523 = vsub.f32 %v180, %v1522
  %1524 = vmatpush1.msra.mxu0 %v1523
  %1525 = vmatprep.subr.mxu0 0.0
  %v1526 = vand.u32 %v181, 4294901760
  %v1527 = vsub.f32 %v181, %v1526
  %1528 = vmatpush1.msra.mxu0 %v1527
  %1529 = vmatprep.subr.mxu0 0.0
  %v1530 = vand.u32 %v182, 4294901760
  %v1531 = vsub.f32 %v182, %v1530
  %1532 = vmatpush1.msra.mxu0 %v1531
  %v1533 = vand.u32 %v1059, 4294901760
  %v1534 = vsub.f32 %v1059, %v1533
  %1535 = vmatprep.mubr.f32.mxu0 %v1534
  %v1536 = vand.u32 %v1057, 4294901760
  %v1537 = vsub.f32 %v1057, %v1536
  %1538 = vmatmul.mubr.f32.gmra.mrb[0].mxu0 %v1537
  %v1539 = vpop.f32.mrb[0].mxu0
  %v1540 = vadd.f32 %v1402, %v1539
  %v1541 = vpop.f32.mrb[0].mxu0
  %1542 = vdwg.mxu0
  %1543 = vmatprep.subr.mxu0 0.0
  %v1544 = vand.u32 %v147, 4294901760
  %1545 = vmatpush1.msra.mxu0 %v1544
  %1546 = vmatprep.subr.mxu0 0.0
  %v1547 = vand.u32 %v148, 4294901760
  %1548 = vmatpush1.msra.mxu0 %v1547
  %1549 = vmatprep.subr.mxu0 0.0
  %v1550 = vand.u32 %v149, 4294901760
  %1551 = vmatpush1.msra.mxu0 %v1550
  %1552 = vmatprep.subr.mxu0 0.0
  %v1553 = vand.u32 %v150, 4294901760
  %1554 = vmatpush1.msra.mxu0 %v1553
  %1555 = vmatprep.subr.mxu0 0.0
  %v1556 = vand.u32 %v151, 4294901760
  %1557 = vmatpush1.msra.mxu0 %v1556
  %1558 = vmatprep.subr.mxu0 0.0
  %v1559 = vand.u32 %v152, 4294901760
  %1560 = vmatpush1.msra.mxu0 %v1559
  %1561 = vmatprep.subr.mxu0 0.0
  %v1562 = vand.u32 %v153, 4294901760
  %1563 = vmatpush1.msra.mxu0 %v1562
  %1564 = vmatprep.subr.mxu0 0.0
  %v1565 = vand.u32 %v154, 4294901760
  %1566 = vmatpush1.msra.mxu0 %v1565
  %1567 = vmatprep.subr.mxu0 0.0
  %v1568 = vand.u32 %v155, 4294901760
  %1569 = vmatpush1.msra.mxu0 %v1568
  %1570 = vmatprep.subr.mxu0 0.0
  %v1571 = vand.u32 %v156, 4294901760
  %1572 = vmatpush1.msra.mxu0 %v1571
  %1573 = vmatprep.subr.mxu0 0.0
  %v1574 = vand.u32 %v157, 4294901760
  %1575 = vmatpush1.msra.mxu0 %v1574
  %1576 = vmatprep.subr.mxu0 0.0
  %v1577 = vand.u32 %v158, 4294901760
  %1578 = vmatpush1.msra.mxu0 %v1577
  %1579 = vmatprep.subr.mxu0 0.0
  %v1580 = vand.u32 %v159, 4294901760
  %1581 = vmatpush1.msra.mxu0 %v1580
  %1582 = vmatprep.subr.mxu0 0.0
  %v1583 = vand.u32 %v160, 4294901760
  %1584 = vmatpush1.msra.mxu0 %v1583
  %1585 = vmatprep.subr.mxu0 0.0
  %v1586 = vand.u32 %v161, 4294901760
  %1587 = vmatpush1.msra.mxu0 %v1586
  %1588 = vmatprep.subr.mxu0 0.0
  %v1589 = vand.u32 %v162, 4294901760
  %1590 = vmatpush1.msra.mxu0 %v1589
  %1591 = vmatprep.subr.mxu0 0.0
  %v1592 = vand.u32 %v167, 4294901760
  %1593 = vmatpush1.msra.mxu0 %v1592
  %1594 = vmatprep.subr.mxu0 0.0
  %v1595 = vand.u32 %v168, 4294901760
  %1596 = vmatpush1.msra.mxu0 %v1595
  %1597 = vmatprep.subr.mxu0 0.0
  %v1598 = vand.u32 %v169, 4294901760
  %1599 = vmatpush1.msra.mxu0 %v1598
  %1600 = vmatprep.subr.mxu0 0.0
  %v1601 = vand.u32 %v170, 4294901760
  %1602 = vmatpush1.msra.mxu0 %v1601
  %1603 = vmatprep.subr.mxu0 0.0
  %v1604 = vand.u32 %v171, 4294901760
  %1605 = vmatpush1.msra.mxu0 %v1604
  %1606 = vmatprep.subr.mxu0 0.0
  %v1607 = vand.u32 %v172, 4294901760
  %1608 = vmatpush1.msra.mxu0 %v1607
  %1609 = vmatprep.subr.mxu0 0.0
  %v1610 = vand.u32 %v173, 4294901760
  %1611 = vmatpush1.msra.mxu0 %v1610
  %1612 = vmatprep.subr.mxu0 0.0
  %v1613 = vand.u32 %v174, 4294901760
  %1614 = vmatpush1.msra.mxu0 %v1613
  %1615 = vmatprep.subr.mxu0 0.0
  %v1616 = vand.u32 %v175, 4294901760
  %1617 = vmatpush1.msra.mxu0 %v1616
  %1618 = vmatprep.subr.mxu0 0.0
  %v1619 = vand.u32 %v176, 4294901760
  %1620 = vmatpush1.msra.mxu0 %v1619
  %1621 = vmatprep.subr.mxu0 0.0
  %v1622 = vand.u32 %v177, 4294901760
  %1623 = vmatpush1.msra.mxu0 %v1622
  %1624 = vmatprep.subr.mxu0 0.0
  %v1625 = vand.u32 %v178, 4294901760
  %1626 = vmatpush1.msra.mxu0 %v1625
  %1627 = vmatprep.subr.mxu0 0.0
  %v1628 = vand.u32 %v179, 4294901760
  %1629 = vmatpush1.msra.mxu0 %v1628
  %1630 = vmatprep.subr.mxu0 0.0
  %v1631 = vand.u32 %v180, 4294901760
  %1632 = vmatpush1.msra.mxu0 %v1631
  %1633 = vmatprep.subr.mxu0 0.0
  %v1634 = vand.u32 %v181, 4294901760
  %1635 = vmatpush1.msra.mxu0 %v1634
  %1636 = vmatprep.subr.mxu0 0.0
  %v1637 = vand.u32 %v182, 4294901760
  %1638 = vmatpush1.msra.mxu0 %v1637
  %v1639 = vand.u32 %v1059, 4294901760
  %v1640 = vsub.f32 %v1059, %v1639
  %v1641 = vand.u32 %v1640, 4294901760
  %1642 = vmatprep.mubr.f32.mxu0 %v1641
  %v1643 = vand.u32 %v1057, 4294901760
  %v1644 = vsub.f32 %v1057, %v1643
  %v1645 = vand.u32 %v1644, 4294901760
  %1646 = vmatmul.mubr.f32.gmra.mrb[0].mxu0 %v1645
  %v1647 = vpop.f32.mrb[0].mxu0
  %v1648 = vadd.f32 %v1540, %v1647
  %v1649 = vpop.f32.mrb[0].mxu0
  %1650 = vdwg.mxu0
  %1651 = vmatprep.subr.mxu0 0.0
  %v1652 = vand.u32 %v147, 4294901760
  %v1653 = vsub.f32 %v147, %v1652
  %v1654 = vand.u32 %v1653, 4294901760
  %1655 = vmatpush1.msra.mxu0 %v1654
  %1656 = vmatprep.subr.mxu0 0.0
  %v1657 = vand.u32 %v148, 4294901760
  %v1658 = vsub.f32 %v148, %v1657
  %v1659 = vand.u32 %v1658, 4294901760
  %1660 = vmatpush1.msra.mxu0 %v1659
  %1661 = vmatprep.subr.mxu0 0.0
  %v1662 = vand.u32 %v149, 4294901760
  %v1663 = vsub.f32 %v149, %v1662
  %v1664 = vand.u32 %v1663, 4294901760
  %1665 = vmatpush1.msra.mxu0 %v1664
  %1666 = vmatprep.subr.mxu0 0.0
  %v1667 = vand.u32 %v150, 4294901760
  %v1668 = vsub.f32 %v150, %v1667
  %v1669 = vand.u32 %v1668, 4294901760
  %1670 = vmatpush1.msra.mxu0 %v1669
  %1671 = vmatprep.subr.mxu0 0.0
  %v1672 = vand.u32 %v151, 4294901760
  %v1673 = vsub.f32 %v151, %v1672
  %v1674 = vand.u32 %v1673, 4294901760
  %1675 = vmatpush1.msra.mxu0 %v1674
  %1676 = vmatprep.subr.mxu0 0.0
  %v1677 = vand.u32 %v152, 4294901760
  %v1678 = vsub.f32 %v152, %v1677
  %v1679 = vand.u32 %v1678, 4294901760
  %1680 = vmatpush1.msra.mxu0 %v1679
  %1681 = vmatprep.subr.mxu0 0.0
  %v1682 = vand.u32 %v153, 4294901760
  %v1683 = vsub.f32 %v153, %v1682
  %v1684 = vand.u32 %v1683, 4294901760
  %1685 = vmatpush1.msra.mxu0 %v1684
  %1686 = vmatprep.subr.mxu0 0.0
  %v1687 = vand.u32 %v154, 4294901760
  %v1688 = vsub.f32 %v154, %v1687
  %v1689 = vand.u32 %v1688, 4294901760
  %1690 = vmatpush1.msra.mxu0 %v1689
  %1691 = vmatprep.subr.mxu0 0.0
  %v1692 = vand.u32 %v155, 4294901760
  %v1693 = vsub.f32 %v155, %v1692
  %v1694 = vand.u32 %v1693, 4294901760
  %1695 = vmatpush1.msra.mxu0 %v1694
  %1696 = vmatprep.subr.mxu0 0.0
  %v1697 = vand.u32 %v156, 4294901760
  %v1698 = vsub.f32 %v156, %v1697
  %v1699 = vand.u32 %v1698, 4294901760
  %1700 = vmatpush1.msra.mxu0 %v1699
  %1701 = vmatprep.subr.mxu0 0.0
  %v1702 = vand.u32 %v157, 4294901760
  %v1703 = vsub.f32 %v157, %v1702
  %v1704 = vand.u32 %v1703, 4294901760
  %1705 = vmatpush1.msra.mxu0 %v1704
  %1706 = vmatprep.subr.mxu0 0.0
  %v1707 = vand.u32 %v158, 4294901760
  %v1708 = vsub.f32 %v158, %v1707
  %v1709 = vand.u32 %v1708, 4294901760
  %1710 = vmatpush1.msra.mxu0 %v1709
  %1711 = vmatprep.subr.mxu0 0.0
  %v1712 = vand.u32 %v159, 4294901760
  %v1713 = vsub.f32 %v159, %v1712
  %v1714 = vand.u32 %v1713, 4294901760
  %1715 = vmatpush1.msra.mxu0 %v1714
  %1716 = vmatprep.subr.mxu0 0.0
  %v1717 = vand.u32 %v160, 4294901760
  %v1718 = vsub.f32 %v160, %v1717
  %v1719 = vand.u32 %v1718, 4294901760
  %1720 = vmatpush1.msra.mxu0 %v1719
  %1721 = vmatprep.subr.mxu0 0.0
  %v1722 = vand.u32 %v161, 4294901760
  %v1723 = vsub.f32 %v161, %v1722
  %v1724 = vand.u32 %v1723, 4294901760
  %1725 = vmatpush1.msra.mxu0 %v1724
  %1726 = vmatprep.subr.mxu0 0.0
  %v1727 = vand.u32 %v162, 4294901760
  %v1728 = vsub.f32 %v162, %v1727
  %v1729 = vand.u32 %v1728, 4294901760
  %1730 = vmatpush1.msra.mxu0 %v1729
  %1731 = vmatprep.subr.mxu0 0.0
  %v1732 = vand.u32 %v167, 4294901760
  %v1733 = vsub.f32 %v167, %v1732
  %v1734 = vand.u32 %v1733, 4294901760
  %1735 = vmatpush1.msra.mxu0 %v1734
  %1736 = vmatprep.subr.mxu0 0.0
  %v1737 = vand.u32 %v168, 4294901760
  %v1738 = vsub.f32 %v168, %v1737
  %v1739 = vand.u32 %v1738, 4294901760
  %1740 = vmatpush1.msra.mxu0 %v1739
  %1741 = vmatprep.subr.mxu0 0.0
  %v1742 = vand.u32 %v169, 4294901760
  %v1743 = vsub.f32 %v169, %v1742
  %v1744 = vand.u32 %v1743, 4294901760
  %1745 = vmatpush1.msra.mxu0 %v1744
  %1746 = vmatprep.subr.mxu0 0.0
  %v1747 = vand.u32 %v170, 4294901760
  %v1748 = vsub.f32 %v170, %v1747
  %v1749 = vand.u32 %v1748, 4294901760
  %1750 = vmatpush1.msra.mxu0 %v1749
  %1751 = vmatprep.subr.mxu0 0.0
  %v1752 = vand.u32 %v171, 4294901760
  %v1753 = vsub.f32 %v171, %v1752
  %v1754 = vand.u32 %v1753, 4294901760
  %1755 = vmatpush1.msra.mxu0 %v1754
  %1756 = vmatprep.subr.mxu0 0.0
  %v1757 = vand.u32 %v172, 4294901760
  %v1758 = vsub.f32 %v172, %v1757
  %v1759 = vand.u32 %v1758, 4294901760
  %1760 = vmatpush1.msra.mxu0 %v1759
  %1761 = vmatprep.subr.mxu0 0.0
  %v1762 = vand.u32 %v173, 4294901760
  %v1763 = vsub.f32 %v173, %v1762
  %v1764 = vand.u32 %v1763, 4294901760
  %1765 = vmatpush1.msra.mxu0 %v1764
  %1766 = vmatprep.subr.mxu0 0.0
  %v1767 = vand.u32 %v174, 4294901760
  %v1768 = vsub.f32 %v174, %v1767
  %v1769 = vand.u32 %v1768, 4294901760
  %1770 = vmatpush1.msra.mxu0 %v1769
  %1771 = vmatprep.subr.mxu0 0.0
  %v1772 = vand.u32 %v175, 4294901760
  %v1773 = vsub.f32 %v175, %v1772
  %v1774 = vand.u32 %v1773, 4294901760
  %1775 = vmatpush1.msra.mxu0 %v1774
  %1776 = vmatprep.subr.mxu0 0.0
  %v1777 = vand.u32 %v176, 4294901760
  %v1778 = vsub.f32 %v176, %v1777
  %v1779 = vand.u32 %v1778, 4294901760
  %1780 = vmatpush1.msra.mxu0 %v1779
  %1781 = vmatprep.subr.mxu0 0.0
  %v1782 = vand.u32 %v177, 4294901760
  %v1783 = vsub.f32 %v177, %v1782
  %v1784 = vand.u32 %v1783, 4294901760
  %1785 = vmatpush1.msra.mxu0 %v1784
  %1786 = vmatprep.subr.mxu0 0.0
  %v1787 = vand.u32 %v178, 4294901760
  %v1788 = vsub.f32 %v178, %v1787
  %v1789 = vand.u32 %v1788, 4294901760
  %1790 = vmatpush1.msra.mxu0 %v1789
  %1791 = vmatprep.subr.mxu0 0.0
  %v1792 = vand.u32 %v179, 4294901760
  %v1793 = vsub.f32 %v179, %v1792
  %v1794 = vand.u32 %v1793, 4294901760
  %1795 = vmatpush1.msra.mxu0 %v1794
  %1796 = vmatprep.subr.mxu0 0.0
  %v1797 = vand.u32 %v180, 4294901760
  %v1798 = vsub.f32 %v180, %v1797
  %v1799 = vand.u32 %v1798, 4294901760
  %1800 = vmatpush1.msra.mxu0 %v1799
  %1801 = vmatprep.subr.mxu0 0.0
  %v1802 = vand.u32 %v181, 4294901760
  %v1803 = vsub.f32 %v181, %v1802
  %v1804 = vand.u32 %v1803, 4294901760
  %1805 = vmatpush1.msra.mxu0 %v1804
  %1806 = vmatprep.subr.mxu0 0.0
  %v1807 = vand.u32 %v182, 4294901760
  %v1808 = vsub.f32 %v182, %v1807
  %v1809 = vand.u32 %v1808, 4294901760
  %1810 = vmatpush1.msra.mxu0 %v1809
  %v1811 = vand.u32 %v1059, 4294901760
  %1812 = vmatprep.mubr.f32.mxu0 %v1811
  %v1813 = vand.u32 %v1057, 4294901760
  %1814 = vmatmul.mubr.f32.gmra.mrb[0].mxu0 %v1813
  %v1815 = vpop.f32.mrb[0].mxu0
  %v1816 = vadd.f32 %v1648, %v1815
  %v1817 = vpop.f32.mrb[0].mxu0
  %1818 = vdwg.mxu0
  %1819 = vmatprep.subr.mxu0 0.0
  %v1820 = vand.u32 %v147, 4294901760
  %1821 = vmatpush1.msra.mxu0 %v1820
  %1822 = vmatprep.subr.mxu0 0.0
  %v1823 = vand.u32 %v148, 4294901760
  %1824 = vmatpush1.msra.mxu0 %v1823
  %1825 = vmatprep.subr.mxu0 0.0
  %v1826 = vand.u32 %v149, 4294901760
  %1827 = vmatpush1.msra.mxu0 %v1826
  %1828 = vmatprep.subr.mxu0 0.0
  %v1829 = vand.u32 %v150, 4294901760
  %1830 = vmatpush1.msra.mxu0 %v1829
  %1831 = vmatprep.subr.mxu0 0.0
  %v1832 = vand.u32 %v151, 4294901760
  %1833 = vmatpush1.msra.mxu0 %v1832
  %1834 = vmatprep.subr.mxu0 0.0
  %v1835 = vand.u32 %v152, 4294901760
  %1836 = vmatpush1.msra.mxu0 %v1835
  %1837 = vmatprep.subr.mxu0 0.0
  %v1838 = vand.u32 %v153, 4294901760
  %1839 = vmatpush1.msra.mxu0 %v1838
  %1840 = vmatprep.subr.mxu0 0.0
  %v1841 = vand.u32 %v154, 4294901760
  %1842 = vmatpush1.msra.mxu0 %v1841
  %1843 = vmatprep.subr.mxu0 0.0
  %v1844 = vand.u32 %v155, 4294901760
  %1845 = vmatpush1.msra.mxu0 %v1844
  %1846 = vmatprep.subr.mxu0 0.0
  %v1847 = vand.u32 %v156, 4294901760
  %1848 = vmatpush1.msra.mxu0 %v1847
  %1849 = vmatprep.subr.mxu0 0.0
  %v1850 = vand.u32 %v157, 4294901760
  %1851 = vmatpush1.msra.mxu0 %v1850
  %1852 = vmatprep.subr.mxu0 0.0
  %v1853 = vand.u32 %v158, 4294901760
  %1854 = vmatpush1.msra.mxu0 %v1853
  %1855 = vmatprep.subr.mxu0 0.0
  %v1856 = vand.u32 %v159, 4294901760
  %1857 = vmatpush1.msra.mxu0 %v1856
  %1858 = vmatprep.subr.mxu0 0.0
  %v1859 = vand.u32 %v160, 4294901760
  %1860 = vmatpush1.msra.mxu0 %v1859
  %1861 = vmatprep.subr.mxu0 0.0
  %v1862 = vand.u32 %v161, 4294901760
  %1863 = vmatpush1.msra.mxu0 %v1862
  %1864 = vmatprep.subr.mxu0 0.0
  %v1865 = vand.u32 %v162, 4294901760
  %1866 = vmatpush1.msra.mxu0 %v1865
  %1867 = vmatprep.subr.mxu0 0.0
  %v1868 = vand.u32 %v167, 4294901760
  %1869 = vmatpush1.msra.mxu0 %v1868
  %1870 = vmatprep.subr.mxu0 0.0
  %v1871 = vand.u32 %v168, 4294901760
  %1872 = vmatpush1.msra.mxu0 %v1871
  %1873 = vmatprep.subr.mxu0 0.0
  %v1874 = vand.u32 %v169, 4294901760
  %1875 = vmatpush1.msra.mxu0 %v1874
  %1876 = vmatprep.subr.mxu0 0.0
  %v1877 = vand.u32 %v170, 4294901760
  %1878 = vmatpush1.msra.mxu0 %v1877
  %1879 = vmatprep.subr.mxu0 0.0
  %v1880 = vand.u32 %v171, 4294901760
  %1881 = vmatpush1.msra.mxu0 %v1880
  %1882 = vmatprep.subr.mxu0 0.0
  %v1883 = vand.u32 %v172, 4294901760
  %1884 = vmatpush1.msra.mxu0 %v1883
  %1885 = vmatprep.subr.mxu0 0.0
  %v1886 = vand.u32 %v173, 4294901760
  %1887 = vmatpush1.msra.mxu0 %v1886
  %1888 = vmatprep.subr.mxu0 0.0
  %v1889 = vand.u32 %v174, 4294901760
  %1890 = vmatpush1.msra.mxu0 %v1889
  %1891 = vmatprep.subr.mxu0 0.0
  %v1892 = vand.u32 %v175, 4294901760
  %1893 = vmatpush1.msra.mxu0 %v1892
  %1894 = vmatprep.subr.mxu0 0.0
  %v1895 = vand.u32 %v176, 4294901760
  %1896 = vmatpush1.msra.mxu0 %v1895
  %1897 = vmatprep.subr.mxu0 0.0
  %v1898 = vand.u32 %v177, 4294901760
  %1899 = vmatpush1.msra.mxu0 %v1898
  %1900 = vmatprep.subr.mxu0 0.0
  %v1901 = vand.u32 %v178, 4294901760
  %1902 = vmatpush1.msra.mxu0 %v1901
  %1903 = vmatprep.subr.mxu0 0.0
  %v1904 = vand.u32 %v179, 4294901760
  %1905 = vmatpush1.msra.mxu0 %v1904
  %1906 = vmatprep.subr.mxu0 0.0
  %v1907 = vand.u32 %v180, 4294901760
  %1908 = vmatpush1.msra.mxu0 %v1907
  %1909 = vmatprep.subr.mxu0 0.0
  %v1910 = vand.u32 %v181, 4294901760
  %1911 = vmatpush1.msra.mxu0 %v1910
  %1912 = vmatprep.subr.mxu0 0.0
  %v1913 = vand.u32 %v182, 4294901760
  %1914 = vmatpush1.msra.mxu0 %v1913
  %v1915 = vand.u32 %v1059, 4294901760
  %1916 = vmatprep.mubr.f32.mxu0 %v1915
  %v1917 = vand.u32 %v1057, 4294901760
  %1918 = vmatmul.mubr.f32.gmra.mrb[0].mxu0 %v1917
  %v1919 = vpop.f32.mrb[0].mxu0
  %v1920 = vadd.f32 %v1816, %v1919
  %v1921 = vpop.f32.mrb[0].mxu0
  %1922 = vdwg.mxu0
  %v1923 = vlaneseq
  %v1924 = vshrl.u32 %v1923, 7
  %v1925 = vsub.s32 1, %v1924
  %v1926 = vrot.slane %v1050, %v1925
  %v1927 = vmul.f32 %v1920, %v1926
  %v1928 = vadd.f32 %v1055, %v1927
  %1929 = vst [vmem:[%s2] sm:$0xf] %v1928
  // Predicated region
  $region10: #{epses_plus_linear_forward.3} parent=0 // pred_check
    _
  $region11: #{epses_plus_linear_forward.3} parent=0 // pred_check_branch
    %1931 = sbr.rel (0) target = $region13
  $region12: #{epses_plus_linear_forward.3} parent=0 // pred_region
    _
  $region13: #{epses_plus_linear_forward.3} parent=0 // pred_fallthru
    _
  // Predicated region
  $region14: #{epses_plus_linear_forward.3} parent=0 // pred_check
    _
  $region15: #{epses_plus_linear_forward.3} parent=0 // pred_check_branch
    %1933 = sbr.rel (0) target = $region17
  $region16: #{epses_plus_linear_forward.3} parent=0 // pred_region
    _
  $region17: #{epses_plus_linear_forward.3} parent=0 // pred_fallthru
    _

</llo_original>
